<compile_context>
chip_gen: v6e
topology: v6e:2x2x1
jax: 0.10.0
libtpu: 0.0.40
codegen_flags: <defaults>
</compile_context>

<pallas_src>
import functools
import math

import jax
import jax.numpy as jnp
from jax import lax
from jax.experimental import pallas as pl
from jax.experimental.pallas import tpu as pltpu

LN_EPS = 1e-5
INV_SQRT2 = 1.0 / math.sqrt(2.0)
LANE = 128          # TPU lane width; each head's q/k/v group is padded to this

_PARAM_ORDER = ("ln1_g", "ln1_b", "wqkv", "bqkv", "wo", "bo",
                "ln2_g", "ln2_b", "w1", "b1", "w2", "b2")


# ---------------------------------------------------------------------------
# In-kernel helpers
# ---------------------------------------------------------------------------
def _layernorm(x, gamma, beta):
    mu = jnp.mean(x, axis=-1, keepdims=True)
    var = jnp.mean((x - mu) ** 2, axis=-1, keepdims=True)
    return (x - mu) * lax.rsqrt(var + LN_EPS) * gamma + beta


# ---------------------------------------------------------------------------
# Fused all-layers kernel: grid axis = layer index ("arbitrary", sequential).
# Activation lives in a VMEM scratch across layers; weights for layer l+1 are
# prefetched by the BlockSpec pipeline while layer l computes.
# ---------------------------------------------------------------------------
def transformer_kernel(x_ref,
                       ln1g_ref, ln1b_ref, wqkv_ref, bqkv_ref, wo_ref, bo_ref,
                       ln2g_ref, ln2b_ref, w1_ref, b1_ref, w2_ref, b2_ref,
                       o_ref, act_sc, ctx_sc, *, batch, seq, heads, dp):
    f32, bf16 = jnp.float32, jnp.bfloat16
    layer = pl.program_id(0)
    n_layers = pl.num_programs(0)
    hp = heads * dp                       # padded "heads * head_dim" width
    m = batch * seq                       # flattened matmul M dimension

    # Seed the VMEM-resident activation from the HBM input at the first layer.
    @pl.when(layer == 0)
    def _():
        act_sc[...] = x_ref[...]

    x = act_sc[...]                                            # (M, DIM) f32

    # ---- Attention block (Residual wrapper in the source does NOT add) ----
    xn = _layernorm(x, ln1g_ref[...], ln1b_ref[...])
    # scale (dim**-0.5) is already folded into the Q columns of wqkv/bqkv.
    qkv = jnp.dot(xn.astype(bf16), wqkv_ref[...],
                  preferred_element_type=f32) + bqkv_ref[...]  # (M, 3*hp) f32
    qkv = qkv.reshape(batch, seq, 3 * hp)                      # leading-dim split (free)

    for h in range(heads):                                     # small static loop
        # 128-lane-aligned slices of the padded per-head groups (zero-cost).
        q = qkv[:, :, h * dp:(h + 1) * dp].astype(bf16)                    # (B, N, dp)
        k = qkv[:, :, hp + h * dp: hp + (h + 1) * dp].astype(bf16)
        v = qkv[:, :, 2 * hp + h * dp: 2 * hp + (h + 1) * dp].astype(bf16)
        dots = jnp.einsum("bqd,bkd->bqk", q, k,
                          preferred_element_type=f32)                      # (B, N, N)
        dots = dots - jnp.max(dots, axis=-1, keepdims=True)
        e = jnp.exp(dots)
        p = e * pl.reciprocal(jnp.sum(e, axis=-1, keepdims=True), approx=True)
        # lane-aligned store of the per-head context into VMEM scratch
        ctx_sc[:, :, h * dp:(h + 1) * dp] = jnp.einsum(
            "bqk,bkd->bqd", p.astype(bf16), v, preferred_element_type=f32)

    ctx = ctx_sc[...].reshape(m, hp)                           # leading-dim merge (free)
    a = jnp.dot(ctx.astype(bf16), wo_ref[...],
                preferred_element_type=f32) + bo_ref[...]      # (M, DIM) f32

    # ---- MLP block (Residual wrapper does NOT add) ----
    xn2 = _layernorm(a, ln2g_ref[...], ln2b_ref[...])
    hid = jnp.dot(xn2.astype(bf16), w1_ref[...],
                  preferred_element_type=f32) + b1_ref[...]    # (M, MLP)
    hid = 0.5 * hid * (1.0 + lax.erf(hid * INV_SQRT2))         # exact GELU, f32
    out = jnp.dot(hid.astype(bf16), w2_ref[...],
                  preferred_element_type=f32) + b2_ref[...]    # (M, DIM)

    act_sc[...] = out                                          # carry to next layer

    @pl.when(layer == n_layers - 1)
    def _():
        o_ref[...] = out.astype(o_ref.dtype)


# ---------------------------------------------------------------------------
# pallas_call wrapper (single fused call over all layers)
# ---------------------------------------------------------------------------
def transformer_forward(x, packed, heads):
    """Pallas forward of the `Transformer` module (mask=None, inference)."""
    B, N, DIM = x.shape
    depth = packed["wqkv"].shape[0]
    hp = packed["wo"].shape[1]            # heads * padded head width
    dp = hp // heads
    M = B * N

    plist = [packed[k] for k in _PARAM_ORDER]
    kernel = functools.partial(transformer_kernel,
                               batch=B, seq=N, heads=heads, dp=dp)

    act_spec = pl.BlockSpec((M, DIM), lambda l: (0, 0))
    # all stacked params are 3-D (depth, rows, cols); layer axis squeezed out
    w_specs = [pl.BlockSpec((None,) + p.shape[1:], lambda l: (l, 0, 0)) for p in plist]

    out = pl.pallas_call(
        kernel,
        out_shape=jax.ShapeDtypeStruct((M, DIM), jnp.float32),
        grid=(depth,),
        in_specs=[act_spec] + w_specs,
        out_specs=act_spec,
        scratch_shapes=[pltpu.VMEM((M, DIM), jnp.float32),      # carried activation
                        pltpu.VMEM((B, N, hp), jnp.float32)],   # per-head context
        compiler_params=pltpu.CompilerParams(
            dimension_semantics=("arbitrary",),                 # layer axis is sequential
            vmem_limit_bytes=32 * 1024 * 1024),
    )(x.reshape(M, DIM), *plist)
    return out.reshape(B, N, DIM)


# ---------------------------------------------------------------------------
# Deterministic parameter init (mirrors the torch __init__); f32 master copies
# ---------------------------------------------------------------------------
def _xavier_uniform(key, out_features, in_features):
    bound = math.sqrt(6.0 / (in_features + out_features))
    w = jax.random.uniform(key, (out_features, in_features), jnp.float32, -bound, bound)
    return w.T                            # stored (in, out), f32


def init_transformer_params(key, depth, dim, mlp_dim):
    layers = []
    for _ in range(depth):
        key, k_qkv, k_o, k_1, k_2, k_b1, k_b2 = jax.random.split(key, 7)
        layers.append({
            "ln1_g": jnp.ones((1, dim), jnp.float32),
            "ln1_b": jnp.zeros((1, dim), jnp.float32),
            "wqkv": _xavier_uniform(k_qkv, 3 * dim, dim),       # (dim, 3*dim)
            "bqkv": jnp.zeros((1, 3 * dim), jnp.float32),
            "wo": _xavier_uniform(k_o, dim, dim),               # (dim, dim)
            "bo": jnp.zeros((1, dim), jnp.float32),
            "ln2_g": jnp.ones((1, dim), jnp.float32),
            "ln2_b": jnp.zeros((1, dim), jnp.float32),
            "w1": _xavier_uniform(k_1, mlp_dim, dim),           # (dim, mlp)
            "b1": 1e-6 * jax.random.normal(k_b1, (1, mlp_dim), jnp.float32),
            "w2": _xavier_uniform(k_2, dim, mlp_dim),           # (mlp, dim)
            "b2": 1e-6 * jax.random.normal(k_b2, (1, dim), jnp.float32),
        })
    return layers


def pack_params(layers, heads, dim):
    """Stack weights along a leading depth axis, pad per-head q/k/v groups to a full
    128-lane group, fold the attention scale into the Q weights, cast matmul weights
    to bf16.  One-time transform done outside the kernel."""
    d = dim // heads
    dp = max(d, LANE)
    scale = dim ** (-0.5)
    f32, bf16 = jnp.float32, jnp.bfloat16

    def pad_cols(w, s=1.0):               # (..., heads*d) -> (..., heads*dp)
        lead = w.shape[:-1]
        w4 = (w * s).reshape(lead + (heads, d))
        out = jnp.zeros(lead + (heads, dp), f32).at[..., :d].set(w4)
        return out.reshape(lead + (heads * dp,))

    acc = {k: [] for k in _PARAM_ORDER}
    for p in layers:
        wq, wk, wv = p["wqkv"][:, :dim], p["wqkv"][:, dim:2 * dim], p["wqkv"][:, 2 * dim:]
        bq, bk, bv = p["bqkv"][:, :dim], p["bqkv"][:, dim:2 * dim], p["bqkv"][:, 2 * dim:]
        wqkv_p = jnp.concatenate([pad_cols(wq, scale), pad_cols(wk), pad_cols(wv)], -1)
        bqkv_p = jnp.concatenate([pad_cols(bq, scale), pad_cols(bk), pad_cols(bv)], -1)
        wo_p = jnp.zeros((heads, dp, dim), f32).at[:, :d, :].set(
            p["wo"].reshape(heads, d, dim)).reshape(heads * dp, dim)
        acc["ln1_g"].append(p["ln1_g"]); acc["ln1_b"].append(p["ln1_b"])
        acc["wqkv"].append(wqkv_p.astype(bf16)); acc["bqkv"].append(bqkv_p)
        acc["wo"].append(wo_p.astype(bf16)); acc["bo"].append(p["bo"])
        acc["ln2_g"].append(p["ln2_g"]); acc["ln2_b"].append(p["ln2_b"])
        acc["w1"].append(p["w1"].astype(bf16)); acc["b1"].append(p["b1"])
        acc["w2"].append(p["w2"].astype(bf16)); acc["b2"].append(p["b2"])
    return {k: jnp.stack(v) for k, v in acc.items()}


# ---------------------------------------------------------------------------
# Pure-JAX reference (faithful to the torch module; same bf16-operand policy)
# ---------------------------------------------------------------------------
def reference_forward(x, layers, heads):
    dim = x.shape[-1]
    d = dim // heads
    scale = dim ** (-0.5)
    f32, bf16 = jnp.float32, jnp.bfloat16

    def ln(v, g, b):
        mu = jnp.mean(v, axis=-1, keepdims=True)
        var = jnp.mean((v - mu) ** 2, axis=-1, keepdims=True)
        return (v - mu) * lax.rsqrt(var + LN_EPS) * g + b

    for p in layers:
        B, N, _ = x.shape
        xn = ln(x, p["ln1_g"], p["ln1_b"])
        qkv = jnp.dot(xn.astype(bf16), p["wqkv"].astype(bf16),
                      preferred_element_type=f32) + p["bqkv"]
        qkv = qkv.reshape(B, N, 3, heads, d)
        q = jnp.transpose(qkv[:, :, 0], (0, 2, 1, 3)).astype(bf16)
        k = jnp.transpose(qkv[:, :, 1], (0, 2, 1, 3)).astype(bf16)
        v = jnp.transpose(qkv[:, :, 2], (0, 2, 1, 3)).astype(bf16)
        dots = jnp.einsum("bhid,bhjd->bhij", q, k, preferred_element_type=f32) * scale
        dots = dots - jnp.max(dots, axis=-1, keepdims=True)
        e = jnp.exp(dots)
        attn = e / jnp.sum(e, axis=-1, keepdims=True)
        out = jnp.einsum("bhij,bhjd->bhid", attn.astype(bf16), v,
                         preferred_element_type=f32)
        out = jnp.transpose(out, (0, 2, 1, 3)).reshape(B, N, dim)
        x = jnp.dot(out.astype(bf16), p["wo"].astype(bf16),
                    preferred_element_type=f32) + p["bo"]

        xn2 = ln(x, p["ln2_g"], p["ln2_b"])
        h = jnp.dot(xn2.astype(bf16), p["w1"].astype(bf16),
                    preferred_element_type=f32) + p["b1"]
        h = 0.5 * h * (1.0 + lax.erf(h * INV_SQRT2))
        x = jnp.dot(h.astype(bf16), p["w2"].astype(bf16),
                    preferred_element_type=f32) + p["b2"]
    return x


# ---------------------------------------------------------------------------
if __name__ == "__main__":
    # Small but lane-friendly shapes: DIM = 128 (one lane group), head_dim = 32.
    B, N, DIM, HEADS, MLP_DIM, DEPTH = 2, 16, 128, 4, 256, 2

    root = jax.random.PRNGKey(0)
    k_x, k_p = jax.random.split(root)
    x = jax.random.normal(k_x, (B, N, DIM), jnp.float32)
    layers = init_transformer_params(k_p, DEPTH, DIM, MLP_DIM)
    packed = pack_params(layers, HEADS, DIM)

    fwd = jax.jit(functools.partial(transformer_forward, heads=HEADS))
    out = jax.block_until_ready(fwd(x, packed))
    ref = jax.block_until_ready(reference_forward(x, layers, HEADS))

    assert out.shape == (B, N, DIM)
    max_err = float(jnp.max(jnp.abs(out - ref)))
    # Both paths use bf16 MXU operands with f32 accumulation; residual mismatch comes
    # from the scale folded into the bf16 Q weights (reference scales dots in f32)
    # and the approx softmax reciprocal.
    assert jnp.allclose(out, ref, atol=5e-2, rtol=5e-2), f"max abs err = {max_err}"
    print("KERNEL_OK")
</pallas_src>

<mosaic_0001>
module attributes {stable_mosaic.version = 11 : i64} {
  func.func @transformer_kernel(%arg0: i32, %arg1: memref<32x128xf32, #tpu.memory_space<vmem>>, %arg2: memref<1x1x128xf32, #tpu.memory_space<vmem>>, %arg3: memref<1x1x128xf32, #tpu.memory_space<vmem>>, %arg4: memref<1x128x1536xbf16, #tpu.memory_space<vmem>>, %arg5: memref<1x1x1536xf32, #tpu.memory_space<vmem>>, %arg6: memref<1x512x128xbf16, #tpu.memory_space<vmem>>, %arg7: memref<1x1x128xf32, #tpu.memory_space<vmem>>, %arg8: memref<1x1x128xf32, #tpu.memory_space<vmem>>, %arg9: memref<1x1x128xf32, #tpu.memory_space<vmem>>, %arg10: memref<1x128x256xbf16, #tpu.memory_space<vmem>>, %arg11: memref<1x1x256xf32, #tpu.memory_space<vmem>>, %arg12: memref<1x256x128xbf16, #tpu.memory_space<vmem>>, %arg13: memref<1x1x128xf32, #tpu.memory_space<vmem>>, %arg14: memref<32x128xf32, #tpu.memory_space<vmem>>, %arg15: memref<32x128xf32, #tpu.memory_space<vmem>>, %arg16: memref<2x16x512xf32, #tpu.memory_space<vmem>>) attributes {dimension_semantics = [#tpu.dimension_semantics<arbitrary>], iteration_bounds = array<i64: 2>, scalar_prefetch = 0 : i64, scratch_operands = 2 : i64, tpu.core_type = #tpu.core_type<tc>, window_params = [{pipeline_mode = #tpu.pipeline_mode<synchronous>, transform_indices = @transform_0, window_bounds = array<i64: 32, 128>}, {transform_indices = @transform_1, window_bounds = array<i64: 1, 1, 128>}, {transform_indices = @transform_2, window_bounds = array<i64: 1, 1, 128>}, {transform_indices = @transform_3, window_bounds = array<i64: 1, 128, 1536>}, {transform_indices = @transform_4, window_bounds = array<i64: 1, 1, 1536>}, {transform_indices = @transform_5, window_bounds = array<i64: 1, 512, 128>}, {transform_indices = @transform_6, window_bounds = array<i64: 1, 1, 128>}, {transform_indices = @transform_7, window_bounds = array<i64: 1, 1, 128>}, {transform_indices = @transform_8, window_bounds = array<i64: 1, 1, 128>}, {transform_indices = @transform_9, window_bounds = array<i64: 1, 128, 256>}, {transform_indices = @transform_10, window_bounds = array<i64: 1, 1, 256>}, {transform_indices = @transform_11, window_bounds = array<i64: 1, 256, 128>}, {transform_indices = @transform_12, window_bounds = array<i64: 1, 1, 128>}, {pipeline_mode = #tpu.pipeline_mode<synchronous>, transform_indices = @transform_13, window_bounds = array<i64: 32, 128>}]} {
    %c0_i32 = arith.constant 0 : i32
    %0 = arith.cmpi eq, %arg0, %c0_i32 : i32
    %1 = arith.extui %0 : i1 to i32
    %c0_i32_0 = arith.constant 0 : i32
    %2 = arith.cmpi ne, %1, %c0_i32_0 : i32
    scf.if %2 {
      %c0_85 = arith.constant 0 : index
      %c0_86 = arith.constant 0 : index
      %183 = vector.load %arg1[%c0_85, %c0_86] : memref<32x128xf32, #tpu.memory_space<vmem>>, vector<32x128xf32>
      %c0_87 = arith.constant 0 : index
      %c0_88 = arith.constant 0 : index
      %184 = vector.load %arg15[%c0_87, %c0_88] : memref<32x128xf32, #tpu.memory_space<vmem>>, vector<32x128xf32>
      tpu.vector_store %arg15[%c0_87, %c0_88], %183 {strides = array<i32>} : memref<32x128xf32, #tpu.memory_space<vmem>>, vector<32x128xf32>,
    } else {
    }
    %c0 = arith.constant 0 : index
    %c0_1 = arith.constant 0 : index
    %3 = vector.load %arg15[%c0, %c0_1] : memref<32x128xf32, #tpu.memory_space<vmem>>, vector<32x128xf32>
    %c0_2 = arith.constant 0 : index
    %c0_3 = arith.constant 0 : index
    %c0_4 = arith.constant 0 : index
    %4 = vector.load %arg2[%c0_2, %c0_3, %c0_4] : memref<1x1x128xf32, #tpu.memory_space<vmem>>, vector<1x1x128xf32>
    %5 = vector.shape_cast %4 : vector<1x1x128xf32> to vector<1x128xf32>
    %c0_5 = arith.constant 0 : index
    %c0_6 = arith.constant 0 : index
    %c0_7 = arith.constant 0 : index
    %6 = vector.load %arg3[%c0_5, %c0_6, %c0_7] : memref<1x1x128xf32, #tpu.memory_space<vmem>>, vector<1x1x128xf32>
    %7 = vector.shape_cast %6 : vector<1x1x128xf32> to vector<1x128xf32>
    %cst = arith.constant dense<0.000000e+00> : vector<32xf32>
    %8 = vector.multi_reduction <add>, %3, %cst [1] : vector<32x128xf32> to vector<32xf32>
    %9 = vector.shape_cast %8 : vector<32xf32> to vector<32x1xf32>
    %cst_8 = arith.constant 1.280000e+02 : f32
    %10 = vector.broadcast %cst_8 : f32 to vector<32x1xf32>
    %11 = arith.divf %9, %10 : vector<32x1xf32>
    %12 = vector.broadcast %11 : vector<32x1xf32> to vector<32x128xf32>
    %13 = arith.subf %3, %12 : vector<32x128xf32>
    %14 = arith.mulf %13, %13 : vector<32x128xf32>
    %cst_9 = arith.constant dense<0.000000e+00> : vector<32xf32>
    %15 = vector.multi_reduction <add>, %14, %cst_9 [1] : vector<32x128xf32> to vector<32xf32>
    %16 = vector.shape_cast %15 : vector<32xf32> to vector<32x1xf32>
    %cst_10 = arith.constant 1.280000e+02 : f32
    %17 = vector.broadcast %cst_10 : f32 to vector<32x1xf32>
    %18 = arith.divf %16, %17 : vector<32x1xf32>
    %19 = vector.broadcast %11 : vector<32x1xf32> to vector<32x128xf32>
    %20 = arith.subf %3, %19 : vector<32x128xf32>
    %cst_11 = arith.constant 9.99999974E-6 : f32
    %21 = vector.broadcast %cst_11 : f32 to vector<32x1xf32>
    %22 = arith.addf %18, %21 : vector<32x1xf32>
    %23 = math.rsqrt %22 : vector<32x1xf32>
    %24 = vector.broadcast %23 : vector<32x1xf32> to vector<32x128xf32>
    %25 = arith.mulf %20, %24 : vector<32x128xf32>
    %26 = vector.broadcast %5 : vector<1x128xf32> to vector<32x128xf32>
    %27 = arith.mulf %25, %26 : vector<32x128xf32>
    %28 = vector.broadcast %7 : vector<1x128xf32> to vector<32x128xf32>
    %29 = arith.addf %27, %28 : vector<32x128xf32>
    %30 = arith.truncf %29 : vector<32x128xf32> to vector<32x128xbf16>
    %c0_12 = arith.constant 0 : index
    %c0_13 = arith.constant 0 : index
    %c0_14 = arith.constant 0 : index
    %31 = vector.load %arg4[%c0_12, %c0_13, %c0_14] : memref<1x128x1536xbf16, #tpu.memory_space<vmem>>, vector<1x128x1536xbf16>
    %32 = vector.shape_cast %31 : vector<1x128x1536xbf16> to vector<128x1536xbf16>
    %cst_15 = arith.constant dense<0.000000e+00> : vector<32x1536xf32>
    %33 = tpu.matmul %30, %32, %cst_15 {dimension_numbers = #tpu.dot_dimension_numbers<[1], [0], [0], [1], [0, 0, 1, 1], [], []>} : vector<32x128xbf16>, vector<128x1536xbf16>, vector<32x1536xf32> -> vector<32x1536xf32>
    %c0_16 = arith.constant 0 : index
    %c0_17 = arith.constant 0 : index
    %c0_18 = arith.constant 0 : index
    %34 = vector.load %arg5[%c0_16, %c0_17, %c0_18] : memref<1x1x1536xf32, #tpu.memory_space<vmem>>, vector<1x1x1536xf32>
    %35 = vector.shape_cast %34 : vector<1x1x1536xf32> to vector<1x1536xf32>
    %36 = vector.broadcast %35 : vector<1x1536xf32> to vector<32x1536xf32>
    %37 = arith.addf %33, %36 : vector<32x1536xf32>
    %38 = vector.shape_cast %37 : vector<32x1536xf32> to vector<2x16x1536xf32>
    %39 = vector.extract_strided_slice %38 {offsets = [0, 0, 0], sizes = [2, 16, 128], strides = [1, 1, 1]} : vector<2x16x1536xf32> to vector<2x16x128xf32>
    %40 = arith.truncf %39 : vector<2x16x128xf32> to vector<2x16x128xbf16>
    %41 = vector.extract_strided_slice %38 {offsets = [0, 0, 512], sizes = [2, 16, 128], strides = [1, 1, 1]} : vector<2x16x1536xf32> to vector<2x16x128xf32>
    %42 = arith.truncf %41 : vector<2x16x128xf32> to vector<2x16x128xbf16>
    %43 = vector.extract_strided_slice %38 {offsets = [0, 0, 1024], sizes = [2, 16, 128], strides = [1, 1, 1]} : vector<2x16x1536xf32> to vector<2x16x128xf32>
    %44 = arith.truncf %43 : vector<2x16x128xf32> to vector<2x16x128xbf16>
    "tpu.trace_start"() <{level = 10 : i32, message = "bqd,bkd->bqk"}> : () -> ()
    %cst_19 = arith.constant dense<0.000000e+00> : vector<2x16x16xf32>
    %45 = tpu.matmul %40, %42, %cst_19 {dimension_numbers = #tpu.dot_dimension_numbers<[2], [2], [1], [1], [0, 0, 0, 1, 1, 1], [0], [0]>} : vector<2x16x128xbf16>, vector<2x16x128xbf16>, vector<2x16x16xf32> -> vector<2x16x16xf32>
    "tpu.trace_stop"() : () -> ()
    %cst_20 = arith.constant dense<0xFF800000> : vector<2x16xf32>
    %46 = vector.multi_reduction <maximumf>, %45, %cst_20 [2] : vector<2x16x16xf32> to vector<2x16xf32>
    %47 = vector.shape_cast %46 : vector<2x16xf32> to vector<2x16x1xf32>
    %48 = vector.broadcast %47 : vector<2x16x1xf32> to vector<2x16x16xf32>
    %49 = arith.subf %45, %48 : vector<2x16x16xf32>
    %50 = math.exp %49 : vector<2x16x16xf32>
    %cst_21 = arith.constant dense<0.000000e+00> : vector<2x16xf32>
    %51 = vector.multi_reduction <add>, %50, %cst_21 [2] : vector<2x16x16xf32> to vector<2x16xf32>
    %52 = vector.shape_cast %51 : vector<2x16xf32> to vector<2x16x1xf32>
    %53 = tpu.reciprocal %52 {approx = true} : vector<2x16x1xf32> -> vector<2x16x1xf32>
    %54 = vector.broadcast %53 : vector<2x16x1xf32> to vector<2x16x16xf32>
    %55 = arith.mulf %50, %54 : vector<2x16x16xf32>
    %56 = arith.truncf %55 : vector<2x16x16xf32> to vector<2x16x16xbf16>
    "tpu.trace_start"() <{level = 10 : i32, message = "bqk,bkd->bqd"}> : () -> ()
    %cst_22 = arith.constant dense<0.000000e+00> : vector<2x16x128xf32>
    %57 = tpu.matmul %56, %44, %cst_22 {dimension_numbers = #tpu.dot_dimension_numbers<[2], [1], [1], [2], [0, 0, 0, 1, 1, 2], [0], [0]>} : vector<2x16x16xbf16>, vector<2x16x128xbf16>, vector<2x16x128xf32> -> vector<2x16x128xf32>
    "tpu.trace_stop"() : () -> ()
    %c0_23 = arith.constant 0 : index
    %c0_24 = arith.constant 0 : index
    %c0_25 = arith.constant 0 : index
    %58 = vector.load %arg16[%c0_23, %c0_24, %c0_25] : memref<2x16x512xf32, #tpu.memory_space<vmem>>, vector<2x16x128xf32>
    tpu.vector_store %arg16[%c0_23, %c0_24, %c0_25], %57 {strides = array<i32>} : memref<2x16x512xf32, #tpu.memory_space<vmem>>, vector<2x16x128xf32>,
    %59 = vector.extract_strided_slice %38 {offsets = [0, 0, 128], sizes = [2, 16, 128], strides = [1, 1, 1]} : vector<2x16x1536xf32> to vector<2x16x128xf32>
    %60 = arith.truncf %59 : vector<2x16x128xf32> to vector<2x16x128xbf16>
    %61 = vector.extract_strided_slice %38 {offsets = [0, 0, 640], sizes = [2, 16, 128], strides = [1, 1, 1]} : vector<2x16x1536xf32> to vector<2x16x128xf32>
    %62 = arith.truncf %61 : vector<2x16x128xf32> to vector<2x16x128xbf16>
    %63 = vector.extract_strided_slice %38 {offsets = [0, 0, 1152], sizes = [2, 16, 128], strides = [1, 1, 1]} : vector<2x16x1536xf32> to vector<2x16x128xf32>
    %64 = arith.truncf %63 : vector<2x16x128xf32> to vector<2x16x128xbf16>
    "tpu.trace_start"() <{level = 10 : i32, message = "bqd,bkd->bqk"}> : () -> ()
    %cst_26 = arith.constant dense<0.000000e+00> : vector<2x16x16xf32>
    %65 = tpu.matmul %60, %62, %cst_26 {dimension_numbers = #tpu.dot_dimension_numbers<[2], [2], [1], [1], [0, 0, 0, 1, 1, 1], [0], [0]>} : vector<2x16x128xbf16>, vector<2x16x128xbf16>, vector<2x16x16xf32> -> vector<2x16x16xf32>
    "tpu.trace_stop"() : () -> ()
    %cst_27 = arith.constant dense<0xFF800000> : vector<2x16xf32>
    %66 = vector.multi_reduction <maximumf>, %65, %cst_27 [2] : vector<2x16x16xf32> to vector<2x16xf32>
    %67 = vector.shape_cast %66 : vector<2x16xf32> to vector<2x16x1xf32>
    %68 = vector.broadcast %67 : vector<2x16x1xf32> to vector<2x16x16xf32>
    %69 = arith.subf %65, %68 : vector<2x16x16xf32>
    %70 = math.exp %69 : vector<2x16x16xf32>
    %cst_28 = arith.constant dense<0.000000e+00> : vector<2x16xf32>
    %71 = vector.multi_reduction <add>, %70, %cst_28 [2] : vector<2x16x16xf32> to vector<2x16xf32>
    %72 = vector.shape_cast %71 : vector<2x16xf32> to vector<2x16x1xf32>
    %73 = tpu.reciprocal %72 {approx = true} : vector<2x16x1xf32> -> vector<2x16x1xf32>
    %74 = vector.broadcast %73 : vector<2x16x1xf32> to vector<2x16x16xf32>
    %75 = arith.mulf %70, %74 : vector<2x16x16xf32>
    %76 = arith.truncf %75 : vector<2x16x16xf32> to vector<2x16x16xbf16>
    "tpu.trace_start"() <{level = 10 : i32, message = "bqk,bkd->bqd"}> : () -> ()
    %cst_29 = arith.constant dense<0.000000e+00> : vector<2x16x128xf32>
    %77 = tpu.matmul %76, %64, %cst_29 {dimension_numbers = #tpu.dot_dimension_numbers<[2], [1], [1], [2], [0, 0, 0, 1, 1, 2], [0], [0]>} : vector<2x16x16xbf16>, vector<2x16x128xbf16>, vector<2x16x128xf32> -> vector<2x16x128xf32>
    "tpu.trace_stop"() : () -> ()
    %c0_30 = arith.constant 0 : index
    %c0_31 = arith.constant 0 : index
    %c128 = arith.constant 128 : index
    %78 = vector.load %arg16[%c0_30, %c0_31, %c128] : memref<2x16x512xf32, #tpu.memory_space<vmem>>, vector<2x16x128xf32>
    tpu.vector_store %arg16[%c0_30, %c0_31, %c128], %77 {strides = array<i32>} : memref<2x16x512xf32, #tpu.memory_space<vmem>>, vector<2x16x128xf32>,
    %79 = vector.extract_strided_slice %38 {offsets = [0, 0, 256], sizes = [2, 16, 128], strides = [1, 1, 1]} : vector<2x16x1536xf32> to vector<2x16x128xf32>
    %80 = arith.truncf %79 : vector<2x16x128xf32> to vector<2x16x128xbf16>
    %81 = vector.extract_strided_slice %38 {offsets = [0, 0, 768], sizes = [2, 16, 128], strides = [1, 1, 1]} : vector<2x16x1536xf32> to vector<2x16x128xf32>
    %82 = arith.truncf %81 : vector<2x16x128xf32> to vector<2x16x128xbf16>
    %83 = vector.extract_strided_slice %38 {offsets = [0, 0, 1280], sizes = [2, 16, 128], strides = [1, 1, 1]} : vector<2x16x1536xf32> to vector<2x16x128xf32>
    %84 = arith.truncf %83 : vector<2x16x128xf32> to vector<2x16x128xbf16>
    "tpu.trace_start"() <{level = 10 : i32, message = "bqd,bkd->bqk"}> : () -> ()
    %cst_32 = arith.constant dense<0.000000e+00> : vector<2x16x16xf32>
    %85 = tpu.matmul %80, %82, %cst_32 {dimension_numbers = #tpu.dot_dimension_numbers<[2], [2], [1], [1], [0, 0, 0, 1, 1, 1], [0], [0]>} : vector<2x16x128xbf16>, vector<2x16x128xbf16>, vector<2x16x16xf32> -> vector<2x16x16xf32>
    "tpu.trace_stop"() : () -> ()
    %cst_33 = arith.constant dense<0xFF800000> : vector<2x16xf32>
    %86 = vector.multi_reduction <maximumf>, %85, %cst_33 [2] : vector<2x16x16xf32> to vector<2x16xf32>
    %87 = vector.shape_cast %86 : vector<2x16xf32> to vector<2x16x1xf32>
    %88 = vector.broadcast %87 : vector<2x16x1xf32> to vector<2x16x16xf32>
    %89 = arith.subf %85, %88 : vector<2x16x16xf32>
    %90 = math.exp %89 : vector<2x16x16xf32>
    %cst_34 = arith.constant dense<0.000000e+00> : vector<2x16xf32>
    %91 = vector.multi_reduction <add>, %90, %cst_34 [2] : vector<2x16x16xf32> to vector<2x16xf32>
    %92 = vector.shape_cast %91 : vector<2x16xf32> to vector<2x16x1xf32>
    %93 = tpu.reciprocal %92 {approx = true} : vector<2x16x1xf32> -> vector<2x16x1xf32>
    %94 = vector.broadcast %93 : vector<2x16x1xf32> to vector<2x16x16xf32>
    %95 = arith.mulf %90, %94 : vector<2x16x16xf32>
    %96 = arith.truncf %95 : vector<2x16x16xf32> to vector<2x16x16xbf16>
    "tpu.trace_start"() <{level = 10 : i32, message = "bqk,bkd->bqd"}> : () -> ()
    %cst_35 = arith.constant dense<0.000000e+00> : vector<2x16x128xf32>
    %97 = tpu.matmul %96, %84, %cst_35 {dimension_numbers = #tpu.dot_dimension_numbers<[2], [1], [1], [2], [0, 0, 0, 1, 1, 2], [0], [0]>} : vector<2x16x16xbf16>, vector<2x16x128xbf16>, vector<2x16x128xf32> -> vector<2x16x128xf32>
    "tpu.trace_stop"() : () -> ()
    %c0_36 = arith.constant 0 : index
    %c0_37 = arith.constant 0 : index
    %c256 = arith.constant 256 : index
    %98 = vector.load %arg16[%c0_36, %c0_37, %c256] : memref<2x16x512xf32, #tpu.memory_space<vmem>>, vector<2x16x128xf32>
    tpu.vector_store %arg16[%c0_36, %c0_37, %c256], %97 {strides = array<i32>} : memref<2x16x512xf32, #tpu.memory_space<vmem>>, vector<2x16x128xf32>,
    %99 = vector.extract_strided_slice %38 {offsets = [0, 0, 384], sizes = [2, 16, 128], strides = [1, 1, 1]} : vector<2x16x1536xf32> to vector<2x16x128xf32>
    %100 = arith.truncf %99 : vector<2x16x128xf32> to vector<2x16x128xbf16>
    %101 = vector.extract_strided_slice %38 {offsets = [0, 0, 896], sizes = [2, 16, 128], strides = [1, 1, 1]} : vector<2x16x1536xf32> to vector<2x16x128xf32>
    %102 = arith.truncf %101 : vector<2x16x128xf32> to vector<2x16x128xbf16>
    %103 = vector.extract_strided_slice %38 {offsets = [0, 0, 1408], sizes = [2, 16, 128], strides = [1, 1, 1]} : vector<2x16x1536xf32> to vector<2x16x128xf32>
    %104 = arith.truncf %103 : vector<2x16x128xf32> to vector<2x16x128xbf16>
    "tpu.trace_start"() <{level = 10 : i32, message = "bqd,bkd->bqk"}> : () -> ()
    %cst_38 = arith.constant dense<0.000000e+00> : vector<2x16x16xf32>
    %105 = tpu.matmul %100, %102, %cst_38 {dimension_numbers = #tpu.dot_dimension_numbers<[2], [2], [1], [1], [0, 0, 0, 1, 1, 1], [0], [0]>} : vector<2x16x128xbf16>, vector<2x16x128xbf16>, vector<2x16x16xf32> -> vector<2x16x16xf32>
    "tpu.trace_stop"() : () -> ()
    %cst_39 = arith.constant dense<0xFF800000> : vector<2x16xf32>
    %106 = vector.multi_reduction <maximumf>, %105, %cst_39 [2] : vector<2x16x16xf32> to vector<2x16xf32>
    %107 = vector.shape_cast %106 : vector<2x16xf32> to vector<2x16x1xf32>
    %108 = vector.broadcast %107 : vector<2x16x1xf32> to vector<2x16x16xf32>
    %109 = arith.subf %105, %108 : vector<2x16x16xf32>
    %110 = math.exp %109 : vector<2x16x16xf32>
    %cst_40 = arith.constant dense<0.000000e+00> : vector<2x16xf32>
    %111 = vector.multi_reduction <add>, %110, %cst_40 [2] : vector<2x16x16xf32> to vector<2x16xf32>
    %112 = vector.shape_cast %111 : vector<2x16xf32> to vector<2x16x1xf32>
    %113 = tpu.reciprocal %112 {approx = true} : vector<2x16x1xf32> -> vector<2x16x1xf32>
    %114 = vector.broadcast %113 : vector<2x16x1xf32> to vector<2x16x16xf32>
    %115 = arith.mulf %110, %114 : vector<2x16x16xf32>
    %116 = arith.truncf %115 : vector<2x16x16xf32> to vector<2x16x16xbf16>
    "tpu.trace_start"() <{level = 10 : i32, message = "bqk,bkd->bqd"}> : () -> ()
    %cst_41 = arith.constant dense<0.000000e+00> : vector<2x16x128xf32>
    %117 = tpu.matmul %116, %104, %cst_41 {dimension_numbers = #tpu.dot_dimension_numbers<[2], [1], [1], [2], [0, 0, 0, 1, 1, 2], [0], [0]>} : vector<2x16x16xbf16>, vector<2x16x128xbf16>, vector<2x16x128xf32> -> vector<2x16x128xf32>
    "tpu.trace_stop"() : () -> ()
    %c0_42 = arith.constant 0 : index
    %c0_43 = arith.constant 0 : index
    %c384 = arith.constant 384 : index
    %118 = vector.load %arg16[%c0_42, %c0_43, %c384] : memref<2x16x512xf32, #tpu.memory_space<vmem>>, vector<2x16x128xf32>
    tpu.vector_store %arg16[%c0_42, %c0_43, %c384], %117 {strides = array<i32>} : memref<2x16x512xf32, #tpu.memory_space<vmem>>, vector<2x16x128xf32>,
    %c0_44 = arith.constant 0 : index
    %c0_45 = arith.constant 0 : index
    %c0_46 = arith.constant 0 : index
    %119 = vector.load %arg16[%c0_44, %c0_45, %c0_46] : memref<2x16x512xf32, #tpu.memory_space<vmem>>, vector<2x16x512xf32>
    %120 = vector.shape_cast %119 : vector<2x16x512xf32> to vector<32x512xf32>
    %121 = arith.truncf %120 : vector<32x512xf32> to vector<32x512xbf16>
    %c0_47 = arith.constant 0 : index
    %c0_48 = arith.constant 0 : index
    %c0_49 = arith.constant 0 : index
    %122 = vector.load %arg6[%c0_47, %c0_48, %c0_49] : memref<1x512x128xbf16, #tpu.memory_space<vmem>>, vector<1x512x128xbf16>
    %123 = vector.shape_cast %122 : vector<1x512x128xbf16> to vector<512x128xbf16>
    %cst_50 = arith.constant dense<0.000000e+00> : vector<32x128xf32>
    %124 = tpu.matmul %121, %123, %cst_50 {dimension_numbers = #tpu.dot_dimension_numbers<[1], [0], [0], [1], [0, 0, 1, 1], [], []>} : vector<32x512xbf16>, vector<512x128xbf16>, vector<32x128xf32> -> vector<32x128xf32>
    %c0_51 = arith.constant 0 : index
    %c0_52 = arith.constant 0 : index
    %c0_53 = arith.constant 0 : index
    %125 = vector.load %arg7[%c0_51, %c0_52, %c0_53] : memref<1x1x128xf32, #tpu.memory_space<vmem>>, vector<1x1x128xf32>
    %126 = vector.shape_cast %125 : vector<1x1x128xf32> to vector<1x128xf32>
    %127 = vector.broadcast %126 : vector<1x128xf32> to vector<32x128xf32>
    %128 = arith.addf %124, %127 : vector<32x128xf32>
    %c0_54 = arith.constant 0 : index
    %c0_55 = arith.constant 0 : index
    %c0_56 = arith.constant 0 : index
    %129 = vector.load %arg8[%c0_54, %c0_55, %c0_56] : memref<1x1x128xf32, #tpu.memory_space<vmem>>, vector<1x1x128xf32>
    %130 = vector.shape_cast %129 : vector<1x1x128xf32> to vector<1x128xf32>
    %c0_57 = arith.constant 0 : index
    %c0_58 = arith.constant 0 : index
    %c0_59 = arith.constant 0 : index
    %131 = vector.load %arg9[%c0_57, %c0_58, %c0_59] : memref<1x1x128xf32, #tpu.memory_space<vmem>>, vector<1x1x128xf32>
    %132 = vector.shape_cast %131 : vector<1x1x128xf32> to vector<1x128xf32>
    %cst_60 = arith.constant dense<0.000000e+00> : vector<32xf32>
    %133 = vector.multi_reduction <add>, %128, %cst_60 [1] : vector<32x128xf32> to vector<32xf32>
    %134 = vector.shape_cast %133 : vector<32xf32> to vector<32x1xf32>
    %cst_61 = arith.constant 1.280000e+02 : f32
    %135 = vector.broadcast %cst_61 : f32 to vector<32x1xf32>
    %136 = arith.divf %134, %135 : vector<32x1xf32>
    %137 = vector.broadcast %136 : vector<32x1xf32> to vector<32x128xf32>
    %138 = arith.subf %128, %137 : vector<32x128xf32>
    %139 = arith.mulf %138, %138 : vector<32x128xf32>
    %cst_62 = arith.constant dense<0.000000e+00> : vector<32xf32>
    %140 = vector.multi_reduction <add>, %139, %cst_62 [1] : vector<32x128xf32> to vector<32xf32>
    %141 = vector.shape_cast %140 : vector<32xf32> to vector<32x1xf32>
    %cst_63 = arith.constant 1.280000e+02 : f32
    %142 = vector.broadcast %cst_63 : f32 to vector<32x1xf32>
    %143 = arith.divf %141, %142 : vector<32x1xf32>
    %144 = vector.broadcast %136 : vector<32x1xf32> to vector<32x128xf32>
    %145 = arith.subf %128, %144 : vector<32x128xf32>
    %cst_64 = arith.constant 9.99999974E-6 : f32
    %146 = vector.broadcast %cst_64 : f32 to vector<32x1xf32>
    %147 = arith.addf %143, %146 : vector<32x1xf32>
    %148 = math.rsqrt %147 : vector<32x1xf32>
    %149 = vector.broadcast %148 : vector<32x1xf32> to vector<32x128xf32>
    %150 = arith.mulf %145, %149 : vector<32x128xf32>
    %151 = vector.broadcast %130 : vector<1x128xf32> to vector<32x128xf32>
    %152 = arith.mulf %150, %151 : vector<32x128xf32>
    %153 = vector.broadcast %132 : vector<1x128xf32> to vector<32x128xf32>
    %154 = arith.addf %152, %153 : vector<32x128xf32>
    %155 = arith.truncf %154 : vector<32x128xf32> to vector<32x128xbf16>
    %c0_65 = arith.constant 0 : index
    %c0_66 = arith.constant 0 : index
    %c0_67 = arith.constant 0 : index
    %156 = vector.load %arg10[%c0_65, %c0_66, %c0_67] : memref<1x128x256xbf16, #tpu.memory_space<vmem>>, vector<1x128x256xbf16>
    %157 = vector.shape_cast %156 : vector<1x128x256xbf16> to vector<128x256xbf16>
    %cst_68 = arith.constant dense<0.000000e+00> : vector<32x256xf32>
    %158 = tpu.matmul %155, %157, %cst_68 {dimension_numbers = #tpu.dot_dimension_numbers<[1], [0], [0], [1], [0, 0, 1, 1], [], []>} : vector<32x128xbf16>, vector<128x256xbf16>, vector<32x256xf32> -> vector<32x256xf32>
    %c0_69 = arith.constant 0 : index
    %c0_70 = arith.constant 0 : index
    %c0_71 = arith.constant 0 : index
    %159 = vector.load %arg11[%c0_69, %c0_70, %c0_71] : memref<1x1x256xf32, #tpu.memory_space<vmem>>, vector<1x1x256xf32>
    %160 = vector.shape_cast %159 : vector<1x1x256xf32> to vector<1x256xf32>
    %161 = vector.broadcast %160 : vector<1x256xf32> to vector<32x256xf32>
    %162 = arith.addf %158, %161 : vector<32x256xf32>
    %cst_72 = arith.constant 5.000000e-01 : f32
    %163 = vector.broadcast %cst_72 : f32 to vector<32x256xf32>
    %164 = arith.mulf %163, %162 : vector<32x256xf32>
    %cst_73 = arith.constant 0.707106769 : f32
    %165 = vector.broadcast %cst_73 : f32 to vector<32x256xf32>
    %166 = arith.mulf %162, %165 : vector<32x256xf32>
    %167 = math.erf %166 : vector<32x256xf32>
    %cst_74 = arith.constant 1.000000e+00 : f32
    %168 = vector.broadcast %cst_74 : f32 to vector<32x256xf32>
    %169 = arith.addf %168, %167 : vector<32x256xf32>
    %170 = arith.mulf %164, %169 : vector<32x256xf32>
    %171 = arith.truncf %170 : vector<32x256xf32> to vector<32x256xbf16>
    %c0_75 = arith.constant 0 : index
    %c0_76 = arith.constant 0 : index
    %c0_77 = arith.constant 0 : index
    %172 = vector.load %arg12[%c0_75, %c0_76, %c0_77] : memref<1x256x128xbf16, #tpu.memory_space<vmem>>, vector<1x256x128xbf16>
    %173 = vector.shape_cast %172 : vector<1x256x128xbf16> to vector<256x128xbf16>
    %cst_78 = arith.constant dense<0.000000e+00> : vector<32x128xf32>
    %174 = tpu.matmul %171, %173, %cst_78 {dimension_numbers = #tpu.dot_dimension_numbers<[1], [0], [0], [1], [0, 0, 1, 1], [], []>} : vector<32x256xbf16>, vector<256x128xbf16>, vector<32x128xf32> -> vector<32x128xf32>
    %c0_79 = arith.constant 0 : index
    %c0_80 = arith.constant 0 : index
    %c0_81 = arith.constant 0 : index
    %175 = vector.load %arg13[%c0_79, %c0_80, %c0_81] : memref<1x1x128xf32, #tpu.memory_space<vmem>>, vector<1x1x128xf32>
    %176 = vector.shape_cast %175 : vector<1x1x128xf32> to vector<1x128xf32>
    %177 = vector.broadcast %176 : vector<1x128xf32> to vector<32x128xf32>
    %178 = arith.addf %174, %177 : vector<32x128xf32>
    %c0_82 = arith.constant 0 : index
    %c0_83 = arith.constant 0 : index
    %179 = vector.load %arg15[%c0_82, %c0_83] : memref<32x128xf32, #tpu.memory_space<vmem>>, vector<32x128xf32>
    tpu.vector_store %arg15[%c0_82, %c0_83], %178 {strides = array<i32>} : memref<32x128xf32, #tpu.memory_space<vmem>>, vector<32x128xf32>,
    %c1_i32 = arith.constant 1 : i32
    %180 = arith.cmpi eq, %arg0, %c1_i32 : i32
    %181 = arith.extui %180 : i1 to i32
    %c0_i32_84 = arith.constant 0 : i32
    %182 = arith.cmpi ne, %181, %c0_i32_84 : i32
    scf.if %182 {
      %c0_85 = arith.constant 0 : index
      %c0_86 = arith.constant 0 : index
      %183 = vector.load %arg14[%c0_85, %c0_86] : memref<32x128xf32, #tpu.memory_space<vmem>>, vector<32x128xf32>
      tpu.vector_store %arg14[%c0_85, %c0_86], %178 {strides = array<i32>} : memref<32x128xf32, #tpu.memory_space<vmem>>, vector<32x128xf32>,
    } else {
    }
    return
  }
  func.func @transform_0(%arg0: i32) -> (i32, i32) {
    %c0_i32 = arith.constant 0 : i32
    %c0_i32_0 = arith.constant 0 : i32
    %c0_i32_1 = arith.constant 0 : i32
    return %c0_i32, %c0_i32_0 : i32, i32
  }
  func.func @transform_1(%arg0: i32) -> (i32, i32, i32) {
    %c0_i32 = arith.constant 0 : i32
    %c0_i32_0 = arith.constant 0 : i32
    %c0_i32_1 = arith.constant 0 : i32
    return %arg0, %c0_i32, %c0_i32_0 : i32, i32, i32
  }
  func.func @transform_2(%arg0: i32) -> (i32, i32, i32) {
    %c0_i32 = arith.constant 0 : i32
    %c0_i32_0 = arith.constant 0 : i32
    %c0_i32_1 = arith.constant 0 : i32
    return %arg0, %c0_i32, %c0_i32_0 : i32, i32, i32
  }
  func.func @transform_3(%arg0: i32) -> (i32, i32, i32) {
    %c0_i32 = arith.constant 0 : i32
    %c0_i32_0 = arith.constant 0 : i32
    %c0_i32_1 = arith.constant 0 : i32
    return %arg0, %c0_i32, %c0_i32_0 : i32, i32, i32
  }
  func.func @transform_4(%arg0: i32) -> (i32, i32, i32) {
    %c0_i32 = arith.constant 0 : i32
    %c0_i32_0 = arith.constant 0 : i32
    %c0_i32_1 = arith.constant 0 : i32
    return %arg0, %c0_i32, %c0_i32_0 : i32, i32, i32
  }
  func.func @transform_5(%arg0: i32) -> (i32, i32, i32) {
    %c0_i32 = arith.constant 0 : i32
    %c0_i32_0 = arith.constant 0 : i32
    %c0_i32_1 = arith.constant 0 : i32
    return %arg0, %c0_i32, %c0_i32_0 : i32, i32, i32
  }
  func.func @transform_6(%arg0: i32) -> (i32, i32, i32) {
    %c0_i32 = arith.constant 0 : i32
    %c0_i32_0 = arith.constant 0 : i32
    %c0_i32_1 = arith.constant 0 : i32
    return %arg0, %c0_i32, %c0_i32_0 : i32, i32, i32
  }
  func.func @transform_7(%arg0: i32) -> (i32, i32, i32) {
    %c0_i32 = arith.constant 0 : i32
    %c0_i32_0 = arith.constant 0 : i32
    %c0_i32_1 = arith.constant 0 : i32
    return %arg0, %c0_i32, %c0_i32_0 : i32, i32, i32
  }
  func.func @transform_8(%arg0: i32) -> (i32, i32, i32) {
    %c0_i32 = arith.constant 0 : i32
    %c0_i32_0 = arith.constant 0 : i32
    %c0_i32_1 = arith.constant 0 : i32
    return %arg0, %c0_i32, %c0_i32_0 : i32, i32, i32
  }
  func.func @transform_9(%arg0: i32) -> (i32, i32, i32) {
    %c0_i32 = arith.constant 0 : i32
    %c0_i32_0 = arith.constant 0 : i32
    %c0_i32_1 = arith.constant 0 : i32
    return %arg0, %c0_i32, %c0_i32_0 : i32, i32, i32
  }
  func.func @transform_10(%arg0: i32) -> (i32, i32, i32) {
    %c0_i32 = arith.constant 0 : i32
    %c0_i32_0 = arith.constant 0 : i32
    %c0_i32_1 = arith.constant 0 : i32
    return %arg0, %c0_i32, %c0_i32_0 : i32, i32, i32
  }
  func.func @transform_11(%arg0: i32) -> (i32, i32, i32) {
    %c0_i32 = arith.constant 0 : i32
    %c0_i32_0 = arith.constant 0 : i32
    %c0_i32_1 = arith.constant 0 : i32
    return %arg0, %c0_i32, %c0_i32_0 : i32, i32, i32
  }
  func.func @transform_12(%arg0: i32) -> (i32, i32, i32) {
    %c0_i32 = arith.constant 0 : i32
    %c0_i32_0 = arith.constant 0 : i32
    %c0_i32_1 = arith.constant 0 : i32
    return %arg0, %c0_i32, %c0_i32_0 : i32, i32, i32
  }
  func.func @transform_13(%arg0: i32) -> (i32, i32) {
    %c0_i32 = arith.constant 0 : i32
    %c0_i32_0 = arith.constant 0 : i32
    %c0_i32_1 = arith.constant 0 : i32
    return %c0_i32, %c0_i32_0 : i32, i32
  }
}

</mosaic_0001>

<llo_original>
// kernel: transformer_forward.1
$region0: #{transformer_forward.1}
  #allocation0 [shape = 'u32[]', space=smem, size = 0x4, offset = 0x4, fixed_abs, tag = 'smem constant byte address 0x4 - core index']
  #allocation1 [shape = 'u32[144,128]{1,0:T(1,128)}', space=vmem, size = 0x12000, scoped, tag = 'internal scratch']
  #allocation2 [shape = 'f32[32,128]{1,0:T(8,128)}', space=vmem, size = 0x4000, scoped, tag = 'scratch operand']
  #allocation3 [shape = 'f32[2,16,512]{2,1,0:T(8,128)}', space=vmem, size = 0x10000, scoped, tag = 'scratch operand']
  %s0 = inlined_call_operand.hbm [shape: f32[32,128], index: 0, kind: input, shape index: {}]
  %s1 = inlined_call_operand.vmem [shape: f32[2,1,128], index: 1, kind: input, shape index: {}]
  %s2 = inlined_call_operand.vmem [shape: f32[2,1,128], index: 2, kind: input, shape index: {}]
  %s3 = inlined_call_operand.hbm [shape: bf16[2,128,1536], index: 3, kind: input, shape index: {}]
  %s4 = inlined_call_operand.hbm [shape: f32[2,1,1536], index: 4, kind: input, shape index: {}]
  %s5 = inlined_call_operand.hbm [shape: bf16[2,512,128], index: 5, kind: input, shape index: {}]
  %s6 = inlined_call_operand.vmem [shape: f32[2,1,128], index: 6, kind: input, shape index: {}]
  %s7 = inlined_call_operand.vmem [shape: f32[2,1,128], index: 7, kind: input, shape index: {}]
  %s8 = inlined_call_operand.vmem [shape: f32[2,1,128], index: 8, kind: input, shape index: {}]
  %s9 = inlined_call_operand.hbm [shape: bf16[2,128,256], index: 9, kind: input, shape index: {}]
  %s10 = inlined_call_operand.hbm [shape: f32[2,1,256], index: 10, kind: input, shape index: {}]
  %s11 = inlined_call_operand.hbm [shape: bf16[2,256,128], index: 11, kind: input, shape index: {}]
  %s12 = inlined_call_operand.hbm [shape: f32[2,1,128], index: 12, kind: input, shape index: {}]
  %s13 = inlined_call_operand.hbm [shape: f32[32,128], index: 13, kind: output, shape index: {}]
  %s14 = sld [smem:[#allocation0]]
  $region125: #{transformer_forward.1} parent=0
    _
  %s16 = ssub.s32 1, %s14
  %s17 = scalar_select 0, %s16, %s14
  $region1: #{transformer_forward.1} parent=0
    #allocation4 [shape = 'u8[16384]{0}', space=vmem, size = 0x4000, scoped, tag = 'input window, operand 0, single buffered']
    #allocation5 [shape = 's32[2]{0}', space=sflag, size = 0x8, scoped, tag = 'scoped memory for transformer_forward.1']
    #allocation6 [shape = 's32[2]{0}', space=sflag, size = 0x8, scoped, tag = 'scoped memory for transformer_forward.1']
    #allocation7 [shape = 'u8[786432]{0}', space=vmem, size = 0xc0000, scoped, tag = 'input window, operand 3']
    #allocation8 [shape = 's32[2]{0}', space=sflag, size = 0x8, scoped, tag = 'scoped memory for transformer_forward.1']
    #allocation9 [shape = 'u8[12288]{0}', space=vmem, size = 0x3000, scoped, tag = 'input window, operand 4']
    #allocation10 [shape = 'u8[262144]{0}', space=vmem, size = 0x40000, scoped, tag = 'input window, operand 5']
    #allocation11 [shape = 's32[2]{0}', space=sflag, size = 0x8, scoped, tag = 'scoped memory for transformer_forward.1']
    #allocation12 [shape = 'u8[131072]{0}', space=vmem, size = 0x20000, scoped, tag = 'input window, operand 9']
    #allocation13 [shape = 'u8[2048]{0}', space=vmem, size = 0x800, scoped, tag = 'input window, operand 10']
    #allocation14 [shape = 's32[2]{0}', space=sflag, size = 0x8, scoped, tag = 'scoped memory for transformer_forward.1']
    #allocation15 [shape = 'u8[131072]{0}', space=vmem, size = 0x20000, scoped, tag = 'input window, operand 11']
    #allocation16 [shape = 'u8[1024]{0}', space=vmem, size = 0x400, scoped, tag = 'input window, operand 12']
    #allocation17 [shape = 's32[2]{0}', space=sflag, size = 0x8, scoped, tag = 'scoped memory for transformer_forward.1']
    #allocation18 [shape = 'u8[16384]{0}', space=vmem, size = 0x4000, scoped, tag = 'output window, operand 0, single buffered']
    %18 = vsyncpa [#allocation5], 0
    %19 = vsyncpa [#allocation8], 0
    %s20 = scalar_lea.sflag [#allocation8], 1
    %21 = vsyncpa %s20, 0
    %22 = vsyncpa [#allocation11], 0
    %s23 = scalar_lea.sflag [#allocation11], 1
    %24 = vsyncpa %s23, 0
    %25 = vsyncpa [#allocation14], 0
    %s26 = scalar_lea.sflag [#allocation14], 1
    %27 = vsyncpa %s26, 0
    %28 = vsyncpa [#allocation17], 0
    %s29 = scalar_lea.sflag [#allocation17], 1
    %30 = vsyncpa %s29, 0
    %31 = vsyncpa [#allocation6], 0
    loop: start=0, step=1, limit=4
    $region2: #{transformer_forward.1} parent=1 // loop_pre_header
      _
    $region3: #{transformer_forward.1} parent=1 // loop_header
      %s33 = sphi 0, %s37
      %p34 = scmp.ge.s32.totalorder %s33, 4
      %s41 = sphi 0, %s41
      %s43 = sphi 0, %s41
      %s44 = sphi 0, %s43
      %s58 = sphi 0, %s44
      %s64 = sphi 0, %s66
      %s67 = sphi 0, %s64
      %s68 = sphi 0, %s67
      %s84 = sphi 0, %s68
      %s90 = sphi 0, %s92
      %s93 = sphi 0, %s90
      %s94 = sphi 0, %s93
      %s110 = sphi 0, %s94
      %s116 = sphi 0, %s118
      %s119 = sphi 0, %s116
      %s120 = sphi 0, %s119
      %s136 = sphi 0, %s120
      %s142 = sphi 0, %s144
      %s145 = sphi 0, %s142
      %s146 = sphi 0, %s145
      %s162 = sphi 0, %s146
      %s168 = sphi 0, %s170
      %s171 = sphi 0, %s168
      %s172 = sphi 0, %s171
      %s188 = sphi 0, %s172
      %s194 = sphi 0, %s196
      %s197 = sphi 0, %s194
      %s198 = sphi 0, %s197
      %s214 = sphi 0, %s198
      %s220 = sphi 0, %s222
      %s223 = sphi 0, %s220
      %s224 = sphi 0, %s223
      %s240 = sphi 0, %s224
      %s246 = sphi 0, %s248
      %s249 = sphi 0, %s246
      %s250 = sphi 0, %s249
      %s266 = sphi 0, %s250
      %s272 = sphi 0, %s274
      %s275 = sphi 0, %s272
      %s276 = sphi 0, %s275
      %s292 = sphi 0, %s276
      %s298 = sphi 0, %s300
      %s301 = sphi 0, %s298
      %s302 = sphi 0, %s301
      %s318 = sphi 0, %s302
      %s324 = sphi 0, %s326
      %s327 = sphi 0, %s324
      %s328 = sphi 0, %s327
      %s344 = sphi 0, %s328
      %s350 = sphi 0, %s352
      %s353 = sphi 0, %s350
      %s354 = sphi 0, %s353
      %s370 = sphi 0, %s354
      %s374 = sphi 0, %s374
      %s376 = sphi 0, %s374
      %s377 = sphi 0, %s376
      %s391 = sphi 0, %s377
    $region4: #{transformer_forward.1} parent=1 // loop_header_branch
      %36 = sbr.rel (%p34) target = $region8
    $region5: #{transformer_forward.1} parent=1 // loop_body
      %s38 = ssub.s32 %s33, 1
      %s39 = ssub.s32 %s33, 2
      %s40 = sadd.s32 %s33, 1
      %s42 = sadd.s32 %s41, 1
      %p45 = scmp.eq.s32.totalorder %s33, 1
      %p46 = scmp.ne.s32.totalorder %s41, %s43
      %p47 = scmp.eq.s32.totalorder %s33, 0
      %p48 = por %p46, %p47
      %p49 = scmp.ne.s32.totalorder %s41, %s43
      %p50 = scmp.eq.s32.totalorder %s38, 1
      %p51 = por %p49, %p50
      %p52 = scmp.ne.s32.totalorder %s43, %s44
      %p53 = scmp.eq.s32.totalorder %s38, 0
      %p54 = por %p52, %p53
      %p55 = scmp.ne.s32.totalorder %s43, %s44
      %p56 = scmp.eq.s32.totalorder %s39, 1
      %p57 = por %p55, %p56
      %p59 = scmp.ne.s32.totalorder %s44, %s58
      %p60 = scmp.eq.s32.totalorder %s39, 0
      %p61 = por %p59, %p60
      %s62 = ssub.s32 %s33, %s40
      %p63 = scmp.eq.s32.totalorder %s62, 0
      %s65 = sadd.s32 %s64, 1
      %s66 = scalar_select %p63, %s64, %s65
      %p69 = pneg %p63
      %p70 = scmp.eq.s32.totalorder %s33, 1
      %p71 = por %p69, %p70
      %p72 = scmp.ne.s32.totalorder %s64, %s67
      %p73 = scmp.eq.s32.totalorder %s33, 0
      %p74 = por %p72, %p73
      %p75 = scmp.ne.s32.totalorder %s64, %s67
      %p76 = scmp.eq.s32.totalorder %s38, 1
      %p77 = por %p75, %p76
      %p78 = scmp.ne.s32.totalorder %s67, %s68
      %p79 = scmp.eq.s32.totalorder %s38, 0
      %p80 = por %p78, %p79
      %p81 = scmp.ne.s32.totalorder %s67, %s68
      %p82 = scmp.eq.s32.totalorder %s39, 1
      %p83 = por %p81, %p82
      %p85 = scmp.ne.s32.totalorder %s68, %s84
      %p86 = scmp.eq.s32.totalorder %s39, 0
      %p87 = por %p85, %p86
      %s88 = ssub.s32 %s33, %s40
      %p89 = scmp.eq.s32.totalorder %s88, 0
      %s91 = sadd.s32 %s90, 1
      %s92 = scalar_select %p89, %s90, %s91
      %p95 = pneg %p89
      %p96 = scmp.eq.s32.totalorder %s33, 1
      %p97 = por %p95, %p96
      %p98 = scmp.ne.s32.totalorder %s90, %s93
      %p99 = scmp.eq.s32.totalorder %s33, 0
      %p100 = por %p98, %p99
      %p101 = scmp.ne.s32.totalorder %s90, %s93
      %p102 = scmp.eq.s32.totalorder %s38, 1
      %p103 = por %p101, %p102
      %p104 = scmp.ne.s32.totalorder %s93, %s94
      %p105 = scmp.eq.s32.totalorder %s38, 0
      %p106 = por %p104, %p105
      %p107 = scmp.ne.s32.totalorder %s93, %s94
      %p108 = scmp.eq.s32.totalorder %s39, 1
      %p109 = por %p107, %p108
      %p111 = scmp.ne.s32.totalorder %s94, %s110
      %p112 = scmp.eq.s32.totalorder %s39, 0
      %p113 = por %p111, %p112
      %s114 = ssub.s32 %s33, %s40
      %p115 = scmp.eq.s32.totalorder %s114, 0
      %s117 = sadd.s32 %s116, 1
      %s118 = scalar_select %p115, %s116, %s117
      %p121 = pneg %p115
      %p122 = scmp.eq.s32.totalorder %s33, 1
      %p123 = por %p121, %p122
      %p124 = scmp.ne.s32.totalorder %s116, %s119
      %p125 = scmp.eq.s32.totalorder %s33, 0
      %p126 = por %p124, %p125
      %p127 = scmp.ne.s32.totalorder %s116, %s119
      %p128 = scmp.eq.s32.totalorder %s38, 1
      %p129 = por %p127, %p128
      %p130 = scmp.ne.s32.totalorder %s119, %s120
      %p131 = scmp.eq.s32.totalorder %s38, 0
      %p132 = por %p130, %p131
      %p133 = scmp.ne.s32.totalorder %s119, %s120
      %p134 = scmp.eq.s32.totalorder %s39, 1
      %p135 = por %p133, %p134
      %p137 = scmp.ne.s32.totalorder %s120, %s136
      %p138 = scmp.eq.s32.totalorder %s39, 0
      %p139 = por %p137, %p138
      %s140 = ssub.s32 %s33, %s40
      %p141 = scmp.eq.s32.totalorder %s140, 0
      %s143 = sadd.s32 %s142, 1
      %s144 = scalar_select %p141, %s142, %s143
      %p147 = pneg %p141
      %p148 = scmp.eq.s32.totalorder %s33, 1
      %p149 = por %p147, %p148
      %p150 = scmp.ne.s32.totalorder %s142, %s145
      %p151 = scmp.eq.s32.totalorder %s33, 0
      %p152 = por %p150, %p151
      %p153 = scmp.ne.s32.totalorder %s142, %s145
      %p154 = scmp.eq.s32.totalorder %s38, 1
      %p155 = por %p153, %p154
      %p156 = scmp.ne.s32.totalorder %s145, %s146
      %p157 = scmp.eq.s32.totalorder %s38, 0
      %p158 = por %p156, %p157
      %p159 = scmp.ne.s32.totalorder %s145, %s146
      %p160 = scmp.eq.s32.totalorder %s39, 1
      %p161 = por %p159, %p160
      %p163 = scmp.ne.s32.totalorder %s146, %s162
      %p164 = scmp.eq.s32.totalorder %s39, 0
      %p165 = por %p163, %p164
      %s166 = ssub.s32 %s33, %s40
      %p167 = scmp.eq.s32.totalorder %s166, 0
      %s169 = sadd.s32 %s168, 1
      %s170 = scalar_select %p167, %s168, %s169
      %p173 = pneg %p167
      %p174 = scmp.eq.s32.totalorder %s33, 1
      %p175 = por %p173, %p174
      %p176 = scmp.ne.s32.totalorder %s168, %s171
      %p177 = scmp.eq.s32.totalorder %s33, 0
      %p178 = por %p176, %p177
      %p179 = scmp.ne.s32.totalorder %s168, %s171
      %p180 = scmp.eq.s32.totalorder %s38, 1
      %p181 = por %p179, %p180
      %p182 = scmp.ne.s32.totalorder %s171, %s172
      %p183 = scmp.eq.s32.totalorder %s38, 0
      %p184 = por %p182, %p183
      %p185 = scmp.ne.s32.totalorder %s171, %s172
      %p186 = scmp.eq.s32.totalorder %s39, 1
      %p187 = por %p185, %p186
      %p189 = scmp.ne.s32.totalorder %s172, %s188
      %p190 = scmp.eq.s32.totalorder %s39, 0
      %p191 = por %p189, %p190
      %s192 = ssub.s32 %s33, %s40
      %p193 = scmp.eq.s32.totalorder %s192, 0
      %s195 = sadd.s32 %s194, 1
      %s196 = scalar_select %p193, %s194, %s195
      %p199 = pneg %p193
      %p200 = scmp.eq.s32.totalorder %s33, 1
      %p201 = por %p199, %p200
      %p202 = scmp.ne.s32.totalorder %s194, %s197
      %p203 = scmp.eq.s32.totalorder %s33, 0
      %p204 = por %p202, %p203
      %p205 = scmp.ne.s32.totalorder %s194, %s197
      %p206 = scmp.eq.s32.totalorder %s38, 1
      %p207 = por %p205, %p206
      %p208 = scmp.ne.s32.totalorder %s197, %s198
      %p209 = scmp.eq.s32.totalorder %s38, 0
      %p210 = por %p208, %p209
      %p211 = scmp.ne.s32.totalorder %s197, %s198
      %p212 = scmp.eq.s32.totalorder %s39, 1
      %p213 = por %p211, %p212
      %p215 = scmp.ne.s32.totalorder %s198, %s214
      %p216 = scmp.eq.s32.totalorder %s39, 0
      %p217 = por %p215, %p216
      %s218 = ssub.s32 %s33, %s40
      %p219 = scmp.eq.s32.totalorder %s218, 0
      %s221 = sadd.s32 %s220, 1
      %s222 = scalar_select %p219, %s220, %s221
      %p225 = pneg %p219
      %p226 = scmp.eq.s32.totalorder %s33, 1
      %p227 = por %p225, %p226
      %p228 = scmp.ne.s32.totalorder %s220, %s223
      %p229 = scmp.eq.s32.totalorder %s33, 0
      %p230 = por %p228, %p229
      %p231 = scmp.ne.s32.totalorder %s220, %s223
      %p232 = scmp.eq.s32.totalorder %s38, 1
      %p233 = por %p231, %p232
      %p234 = scmp.ne.s32.totalorder %s223, %s224
      %p235 = scmp.eq.s32.totalorder %s38, 0
      %p236 = por %p234, %p235
      %p237 = scmp.ne.s32.totalorder %s223, %s224
      %p238 = scmp.eq.s32.totalorder %s39, 1
      %p239 = por %p237, %p238
      %p241 = scmp.ne.s32.totalorder %s224, %s240
      %p242 = scmp.eq.s32.totalorder %s39, 0
      %p243 = por %p241, %p242
      %s244 = ssub.s32 %s33, %s40
      %p245 = scmp.eq.s32.totalorder %s244, 0
      %s247 = sadd.s32 %s246, 1
      %s248 = scalar_select %p245, %s246, %s247
      %p251 = pneg %p245
      %p252 = scmp.eq.s32.totalorder %s33, 1
      %p253 = por %p251, %p252
      %p254 = scmp.ne.s32.totalorder %s246, %s249
      %p255 = scmp.eq.s32.totalorder %s33, 0
      %p256 = por %p254, %p255
      %p257 = scmp.ne.s32.totalorder %s246, %s249
      %p258 = scmp.eq.s32.totalorder %s38, 1
      %p259 = por %p257, %p258
      %p260 = scmp.ne.s32.totalorder %s249, %s250
      %p261 = scmp.eq.s32.totalorder %s38, 0
      %p262 = por %p260, %p261
      %p263 = scmp.ne.s32.totalorder %s249, %s250
      %p264 = scmp.eq.s32.totalorder %s39, 1
      %p265 = por %p263, %p264
      %p267 = scmp.ne.s32.totalorder %s250, %s266
      %p268 = scmp.eq.s32.totalorder %s39, 0
      %p269 = por %p267, %p268
      %s270 = ssub.s32 %s33, %s40
      %p271 = scmp.eq.s32.totalorder %s270, 0
      %s273 = sadd.s32 %s272, 1
      %s274 = scalar_select %p271, %s272, %s273
      %p277 = pneg %p271
      %p278 = scmp.eq.s32.totalorder %s33, 1
      %p279 = por %p277, %p278
      %p280 = scmp.ne.s32.totalorder %s272, %s275
      %p281 = scmp.eq.s32.totalorder %s33, 0
      %p282 = por %p280, %p281
      %p283 = scmp.ne.s32.totalorder %s272, %s275
      %p284 = scmp.eq.s32.totalorder %s38, 1
      %p285 = por %p283, %p284
      %p286 = scmp.ne.s32.totalorder %s275, %s276
      %p287 = scmp.eq.s32.totalorder %s38, 0
      %p288 = por %p286, %p287
      %p289 = scmp.ne.s32.totalorder %s275, %s276
      %p290 = scmp.eq.s32.totalorder %s39, 1
      %p291 = por %p289, %p290
      %p293 = scmp.ne.s32.totalorder %s276, %s292
      %p294 = scmp.eq.s32.totalorder %s39, 0
      %p295 = por %p293, %p294
      %s296 = ssub.s32 %s33, %s40
      %p297 = scmp.eq.s32.totalorder %s296, 0
      %s299 = sadd.s32 %s298, 1
      %s300 = scalar_select %p297, %s298, %s299
      %p303 = pneg %p297
      %p304 = scmp.eq.s32.totalorder %s33, 1
      %p305 = por %p303, %p304
      %p306 = scmp.ne.s32.totalorder %s298, %s301
      %p307 = scmp.eq.s32.totalorder %s33, 0
      %p308 = por %p306, %p307
      %p309 = scmp.ne.s32.totalorder %s298, %s301
      %p310 = scmp.eq.s32.totalorder %s38, 1
      %p311 = por %p309, %p310
      %p312 = scmp.ne.s32.totalorder %s301, %s302
      %p313 = scmp.eq.s32.totalorder %s38, 0
      %p314 = por %p312, %p313
      %p315 = scmp.ne.s32.totalorder %s301, %s302
      %p316 = scmp.eq.s32.totalorder %s39, 1
      %p317 = por %p315, %p316
      %p319 = scmp.ne.s32.totalorder %s302, %s318
      %p320 = scmp.eq.s32.totalorder %s39, 0
      %p321 = por %p319, %p320
      %s322 = ssub.s32 %s33, %s40
      %p323 = scmp.eq.s32.totalorder %s322, 0
      %s325 = sadd.s32 %s324, 1
      %s326 = scalar_select %p323, %s324, %s325
      %p329 = pneg %p323
      %p330 = scmp.eq.s32.totalorder %s33, 1
      %p331 = por %p329, %p330
      %p332 = scmp.ne.s32.totalorder %s324, %s327
      %p333 = scmp.eq.s32.totalorder %s33, 0
      %p334 = por %p332, %p333
      %p335 = scmp.ne.s32.totalorder %s324, %s327
      %p336 = scmp.eq.s32.totalorder %s38, 1
      %p337 = por %p335, %p336
      %p338 = scmp.ne.s32.totalorder %s327, %s328
      %p339 = scmp.eq.s32.totalorder %s38, 0
      %p340 = por %p338, %p339
      %p341 = scmp.ne.s32.totalorder %s327, %s328
      %p342 = scmp.eq.s32.totalorder %s39, 1
      %p343 = por %p341, %p342
      %p345 = scmp.ne.s32.totalorder %s328, %s344
      %p346 = scmp.eq.s32.totalorder %s39, 0
      %p347 = por %p345, %p346
      %s348 = ssub.s32 %s33, %s40
      %p349 = scmp.eq.s32.totalorder %s348, 0
      %s351 = sadd.s32 %s350, 1
      %s352 = scalar_select %p349, %s350, %s351
      %p355 = pneg %p349
      %p356 = scmp.eq.s32.totalorder %s33, 1
      %p357 = por %p355, %p356
      %p358 = scmp.ne.s32.totalorder %s350, %s353
      %p359 = scmp.eq.s32.totalorder %s33, 0
      %p360 = por %p358, %p359
      %p361 = scmp.ne.s32.totalorder %s350, %s353
      %p362 = scmp.eq.s32.totalorder %s38, 1
      %p363 = por %p361, %p362
      %p364 = scmp.ne.s32.totalorder %s353, %s354
      %p365 = scmp.eq.s32.totalorder %s38, 0
      %p366 = por %p364, %p365
      %p367 = scmp.ne.s32.totalorder %s353, %s354
      %p368 = scmp.eq.s32.totalorder %s39, 1
      %p369 = por %p367, %p368
      %p371 = scmp.ne.s32.totalorder %s354, %s370
      %p372 = scmp.eq.s32.totalorder %s39, 0
      %p373 = por %p371, %p372
      %s375 = sadd.s32 %s374, 1
      %p378 = scmp.eq.s32.totalorder %s33, 1
      %p379 = scmp.ne.s32.totalorder %s374, %s376
      %p380 = scmp.eq.s32.totalorder %s33, 0
      %p381 = por %p379, %p380
      %p382 = scmp.ne.s32.totalorder %s374, %s376
      %p383 = scmp.eq.s32.totalorder %s38, 1
      %p384 = por %p382, %p383
      %p385 = scmp.ne.s32.totalorder %s376, %s377
      %p386 = scmp.eq.s32.totalorder %s38, 0
      %p387 = por %p385, %p386
      %p388 = scmp.ne.s32.totalorder %s376, %s377
      %p389 = scmp.eq.s32.totalorder %s39, 1
      %p390 = por %p388, %p389
      %p392 = scmp.ne.s32.totalorder %s377, %s391
      %p393 = scmp.eq.s32.totalorder %s39, 0
      %p394 = por %p392, %p393
      %p395 = scmp.le.s32.totalorder 1, %s33
      %p396 = scmp.lt.s32.totalorder %s33, 3
      %p397 = pnand %p395, %p396
      %p398 = pneg %p397
      // Predicated region
      $region9: #{transformer_forward.1} parent=5 // pred_check
        _
      $region10: #{transformer_forward.1} parent=5 // pred_check_branch
        %400 = sbr.rel (%p397) target = $region12
      $region11: #{transformer_forward.1} parent=5 // pred_region
        %s401 = ssub.s32 %s33, 1
        // Predicated region
        $region13: #{transformer_forward.1} parent=11 // pred_check
          %p402 = pneg %p54
        $region14: #{transformer_forward.1} parent=11 // pred_check_branch
          %404 = sbr.rel (%p402) target = $region16
        $region15: #{transformer_forward.1} parent=11 // pred_region
          %s406 = ssub.s32 512, 512
          %407 = vsyncadd [#allocation5], %s406
          %s408 = sshll.u32 [#allocation4], 4
          %s409 = int_to_ptr.vmem [resolvable:$true] %s408
          %414 = dma.hbm_to_vmem [thread:$0]  %s0, 512, %s409, [#allocation5], 128, 128, 8
        $region16: #{transformer_forward.1} parent=11 // pred_fallthru
          _
      $region12: #{transformer_forward.1} parent=5 // pred_fallthru
        _
      %p415 = scmp.lt.s32.totalorder %s33, 2
      // Predicated region
      $region17: #{transformer_forward.1} parent=5 // pred_check
        %p416 = pneg %p415
      $region18: #{transformer_forward.1} parent=5 // pred_check_branch
        %418 = sbr.rel (%p416) target = $region20
      $region19: #{transformer_forward.1} parent=5 // pred_region
        // Predicated region
        $region21: #{transformer_forward.1} parent=19 // pred_check
          %p419 = pneg %p74
        $region22: #{transformer_forward.1} parent=19 // pred_check_branch
          %421 = sbr.rel (%p419) target = $region24
        $region23: #{transformer_forward.1} parent=19 // pred_region
          %p422 = scmp.lt.s32.totalorder %s33, 1
          %s423 = scalar_select %p422, %s33, 1
          %s424 = scalar_lea.vmem %s1, %s423
        $region24: #{transformer_forward.1} parent=19 // pred_fallthru
          _
        // Predicated region
        $region25: #{transformer_forward.1} parent=19 // pred_check
          %p425 = pneg %p100
        $region26: #{transformer_forward.1} parent=19 // pred_check_branch
          %427 = sbr.rel (%p425) target = $region28
        $region27: #{transformer_forward.1} parent=19 // pred_region
          %p428 = scmp.lt.s32.totalorder %s33, 1
          %s429 = scalar_select %p428, %s33, 1
          %s430 = scalar_lea.vmem %s2, %s429
        $region28: #{transformer_forward.1} parent=19 // pred_fallthru
          _
        // Predicated region
        $region29: #{transformer_forward.1} parent=19 // pred_check
          %p431 = pneg %p126
        $region30: #{transformer_forward.1} parent=19 // pred_check_branch
          %433 = sbr.rel (%p431) target = $region32
        $region31: #{transformer_forward.1} parent=19 // pred_region
          %s434 = sand.u32 %s33, 1
          %s435 = scalar_lea.sflag [#allocation8], %s434
          %s436 = sand.u32 %s116, 1
          %s437 = smul.addr %s436, 768
          %s438 = scalar_lea.vmem [#allocation7], %s437
          %s440 = ssub.s32 12288, 12288
          %441 = vsyncadd %s435, %s440
          %s442 = smul.addr %s33, 192
          %s443 = smul.addr %s442, 64
          %s444 = scalar_lea.hbm %s3, %s443
          %s445 = sshll.u32 %s438, 4
          %s446 = int_to_ptr.vmem [resolvable:$true] %s445
          %451 = dma.hbm_to_vmem [thread:$0]  %s444, 12288, %s446, %s435, 768, 768, 48
        $region32: #{transformer_forward.1} parent=19 // pred_fallthru
          _
        // Predicated region
        $region33: #{transformer_forward.1} parent=19 // pred_check
          %p452 = pneg %p152
        $region34: #{transformer_forward.1} parent=19 // pred_check_branch
          %454 = sbr.rel (%p452) target = $region36
        $region35: #{transformer_forward.1} parent=19 // pred_region
          %s455 = sand.u32 %s33, 1
          %s456 = scalar_lea.sflag [#allocation8], %s455
          %s457 = sand.u32 %s142, 1
          %s458 = smul.addr %s457, 12
          %s459 = scalar_lea.vmem [#allocation9], %s458
          %s461 = ssub.s32 192, 192
          %462 = vsyncadd %s456, %s461
          %s463 = smul.addr %s33, 12
          %s464 = smul.addr %s463, 16
          %s465 = scalar_lea.hbm %s4, %s464
          %s467 = sshll.u32 %s459, 4
          %s468 = int_to_ptr.vmem [resolvable:$true] %s467
          %470 = dma.hbm_to_vmem [thread:$0]  %s465, 192, %s468, %s456
        $region36: #{transformer_forward.1} parent=19 // pred_fallthru
          _
        // Predicated region
        $region37: #{transformer_forward.1} parent=19 // pred_check
          %p471 = pneg %p178
        $region38: #{transformer_forward.1} parent=19 // pred_check_branch
          %473 = sbr.rel (%p471) target = $region40
        $region39: #{transformer_forward.1} parent=19 // pred_region
          %s474 = sand.u32 %s33, 1
          %s475 = scalar_lea.sflag [#allocation11], %s474
          %s476 = sand.u32 %s168, 1
          %s477 = smul.addr %s476, 256
          %s478 = scalar_lea.vmem [#allocation10], %s477
          %s480 = ssub.s32 4096, 4096
          %481 = vsyncadd %s475, %s480
          %s482 = smul.addr %s33, 64
          %s483 = smul.addr %s482, 64
          %s484 = scalar_lea.hbm %s5, %s483
          %s485 = sshll.u32 %s478, 4
          %s486 = int_to_ptr.vmem [resolvable:$true] %s485
          %491 = dma.hbm_to_vmem [thread:$0]  %s484, 4096, %s486, %s475, 64, 64, 4
        $region40: #{transformer_forward.1} parent=19 // pred_fallthru
          _
        // Predicated region
        $region41: #{transformer_forward.1} parent=19 // pred_check
          %p492 = pneg %p204
        $region42: #{transformer_forward.1} parent=19 // pred_check_branch
          %494 = sbr.rel (%p492) target = $region44
        $region43: #{transformer_forward.1} parent=19 // pred_region
          %p495 = scmp.lt.s32.totalorder %s33, 1
          %s496 = scalar_select %p495, %s33, 1
          %s497 = scalar_lea.vmem %s6, %s496
        $region44: #{transformer_forward.1} parent=19 // pred_fallthru
          _
        // Predicated region
        $region45: #{transformer_forward.1} parent=19 // pred_check
          %p498 = pneg %p230
        $region46: #{transformer_forward.1} parent=19 // pred_check_branch
          %500 = sbr.rel (%p498) target = $region48
        $region47: #{transformer_forward.1} parent=19 // pred_region
          %p501 = scmp.lt.s32.totalorder %s33, 1
          %s502 = scalar_select %p501, %s33, 1
          %s503 = scalar_lea.vmem %s7, %s502
        $region48: #{transformer_forward.1} parent=19 // pred_fallthru
          _
        // Predicated region
        $region49: #{transformer_forward.1} parent=19 // pred_check
          %p504 = pneg %p256
        $region50: #{transformer_forward.1} parent=19 // pred_check_branch
          %506 = sbr.rel (%p504) target = $region52
        $region51: #{transformer_forward.1} parent=19 // pred_region
          %p507 = scmp.lt.s32.totalorder %s33, 1
          %s508 = scalar_select %p507, %s33, 1
          %s509 = scalar_lea.vmem %s8, %s508
        $region52: #{transformer_forward.1} parent=19 // pred_fallthru
          _
        // Predicated region
        $region53: #{transformer_forward.1} parent=19 // pred_check
          %p510 = pneg %p282
        $region54: #{transformer_forward.1} parent=19 // pred_check_branch
          %512 = sbr.rel (%p510) target = $region56
        $region55: #{transformer_forward.1} parent=19 // pred_region
          %s513 = sand.u32 %s33, 1
          %s514 = scalar_lea.sflag [#allocation11], %s513
          %s515 = sand.u32 %s272, 1
          %s516 = smul.addr %s515, 128
          %s517 = scalar_lea.vmem [#allocation12], %s516
          %s519 = ssub.s32 2048, 2048
          %520 = vsyncadd %s514, %s519
          %s521 = smul.addr %s33, 32
          %s522 = smul.addr %s521, 64
          %s523 = scalar_lea.hbm %s9, %s522
          %s524 = sshll.u32 %s517, 4
          %s525 = int_to_ptr.vmem [resolvable:$true] %s524
          %530 = dma.hbm_to_vmem [thread:$0]  %s523, 2048, %s525, %s514, 128, 128, 8
        $region56: #{transformer_forward.1} parent=19 // pred_fallthru
          _
        // Predicated region
        $region57: #{transformer_forward.1} parent=19 // pred_check
          %p531 = pneg %p308
        $region58: #{transformer_forward.1} parent=19 // pred_check_branch
          %533 = sbr.rel (%p531) target = $region60
        $region59: #{transformer_forward.1} parent=19 // pred_region
          %s534 = sand.u32 %s33, 1
          %s535 = scalar_lea.sflag [#allocation14], %s534
          %s536 = sand.u32 %s298, 1
          %s537 = smul.addr %s536, 2
          %s538 = scalar_lea.vmem [#allocation13], %s537
          %s540 = ssub.s32 32, 32
          %541 = vsyncadd %s535, %s540
          %s542 = smul.addr %s33, 2
          %s543 = smul.addr %s542, 16
          %s544 = scalar_lea.hbm %s10, %s543
          %s546 = sshll.u32 %s538, 4
          %s547 = int_to_ptr.vmem [resolvable:$true] %s546
          %549 = dma.hbm_to_vmem [thread:$0]  %s544, 32, %s547, %s535
        $region60: #{transformer_forward.1} parent=19 // pred_fallthru
          _
        // Predicated region
        $region61: #{transformer_forward.1} parent=19 // pred_check
          %p550 = pneg %p334
        $region62: #{transformer_forward.1} parent=19 // pred_check_branch
          %552 = sbr.rel (%p550) target = $region64
        $region63: #{transformer_forward.1} parent=19 // pred_region
          %s553 = sand.u32 %s33, 1
          %s554 = scalar_lea.sflag [#allocation14], %s553
          %s555 = sand.u32 %s324, 1
          %s556 = smul.addr %s555, 128
          %s557 = scalar_lea.vmem [#allocation15], %s556
          %s559 = ssub.s32 2048, 2048
          %560 = vsyncadd %s554, %s559
          %s561 = smul.addr %s33, 32
          %s562 = smul.addr %s561, 64
          %s563 = scalar_lea.hbm %s11, %s562
          %s564 = sshll.u32 %s557, 4
          %s565 = int_to_ptr.vmem [resolvable:$true] %s564
          %570 = dma.hbm_to_vmem [thread:$0]  %s563, 2048, %s565, %s554, 64, 64, 4
        $region64: #{transformer_forward.1} parent=19 // pred_fallthru
          _
        // Predicated region
        $region65: #{transformer_forward.1} parent=19 // pred_check
          %p571 = pneg %p360
        $region66: #{transformer_forward.1} parent=19 // pred_check_branch
          %573 = sbr.rel (%p571) target = $region68
        $region67: #{transformer_forward.1} parent=19 // pred_region
          %s574 = sand.u32 %s350, 1
          %s575 = scalar_lea.sflag [#allocation17], %s574
          %s576 = sand.u32 %s350, 1
          %s577 = scalar_lea.vmem [#allocation16], %s576
          %s579 = ssub.s32 16, 16
          %580 = vsyncadd %s575, %s579
          %s581 = smul.addr %s33, 16
          %s582 = scalar_lea.hbm %s12, %s581
          %s584 = sshll.u32 %s577, 4
          %s585 = int_to_ptr.vmem [resolvable:$true] %s584
          %587 = dma.hbm_to_vmem [thread:$0]  %s582, 16, %s585, %s575
        $region68: #{transformer_forward.1} parent=19 // pred_fallthru
          _
      $region20: #{transformer_forward.1} parent=5 // pred_fallthru
        _
      %p588 = scmp.le.s32.totalorder 1, %s33
      %p589 = scmp.lt.s32.totalorder %s33, 3
      %p590 = pnand %p588, %p589
      %p591 = pneg %p590
      // Predicated region
      $region69: #{transformer_forward.1} parent=5 // pred_check
        _
      $region70: #{transformer_forward.1} parent=5 // pred_check_branch
        %593 = sbr.rel (%p590) target = $region72
      $region71: #{transformer_forward.1} parent=5 // pred_region
        %s594 = ssub.s32 %s33, 1
        // Predicated region
        $region73: #{transformer_forward.1} parent=71 // pred_check
          %p595 = pneg %p54
        $region74: #{transformer_forward.1} parent=71 // pred_check_branch
          %597 = sbr.rel (%p595) target = $region76
        $region75: #{transformer_forward.1} parent=71 // pred_region
          %598 = dma.done [#allocation5], 512
        $region76: #{transformer_forward.1} parent=71 // pred_fallthru
          _
        %s599 = sand.u32 %s38, 1
        %s600 = scalar_lea.sflag [#allocation8], %s599
        %s601 = sand.u32 %s119, 1
        %s602 = smul.addr %s601, 768
        %s603 = scalar_lea.vmem [#allocation7], %s602
        // Predicated region
        $region77: #{transformer_forward.1} parent=71 // pred_check
          %p604 = pneg %p132
        $region78: #{transformer_forward.1} parent=71 // pred_check_branch
          %606 = sbr.rel (%p604) target = $region80
        $region79: #{transformer_forward.1} parent=71 // pred_region
          %607 = dma.done %s600, 12288
        $region80: #{transformer_forward.1} parent=71 // pred_fallthru
          _
        %s608 = sand.u32 %s38, 1
        %s609 = scalar_lea.sflag [#allocation8], %s608
        %s610 = sand.u32 %s145, 1
        %s611 = smul.addr %s610, 12
        %s612 = scalar_lea.vmem [#allocation9], %s611
        // Predicated region
        $region81: #{transformer_forward.1} parent=71 // pred_check
          %p613 = pneg %p158
        $region82: #{transformer_forward.1} parent=71 // pred_check_branch
          %615 = sbr.rel (%p613) target = $region84
        $region83: #{transformer_forward.1} parent=71 // pred_region
          %616 = dma.done %s609, 192
        $region84: #{transformer_forward.1} parent=71 // pred_fallthru
          _
        %s617 = sand.u32 %s38, 1
        %s618 = scalar_lea.sflag [#allocation11], %s617
        %s619 = sand.u32 %s171, 1
        %s620 = smul.addr %s619, 256
        %s621 = scalar_lea.vmem [#allocation10], %s620
        // Predicated region
        $region85: #{transformer_forward.1} parent=71 // pred_check
          %p622 = pneg %p184
        $region86: #{transformer_forward.1} parent=71 // pred_check_branch
          %624 = sbr.rel (%p622) target = $region88
        $region87: #{transformer_forward.1} parent=71 // pred_region
          %625 = dma.done %s618, 4096
        $region88: #{transformer_forward.1} parent=71 // pred_fallthru
          _
        %s626 = sand.u32 %s38, 1
        %s627 = scalar_lea.sflag [#allocation11], %s626
        %s628 = sand.u32 %s275, 1
        %s629 = smul.addr %s628, 128
        %s630 = scalar_lea.vmem [#allocation12], %s629
        // Predicated region
        $region89: #{transformer_forward.1} parent=71 // pred_check
          %p631 = pneg %p288
        $region90: #{transformer_forward.1} parent=71 // pred_check_branch
          %633 = sbr.rel (%p631) target = $region92
        $region91: #{transformer_forward.1} parent=71 // pred_region
          %634 = dma.done %s627, 2048
        $region92: #{transformer_forward.1} parent=71 // pred_fallthru
          _
        %s635 = sand.u32 %s38, 1
        %s636 = scalar_lea.sflag [#allocation14], %s635
        %s637 = sand.u32 %s301, 1
        %s638 = smul.addr %s637, 2
        %s639 = scalar_lea.vmem [#allocation13], %s638
        // Predicated region
        $region93: #{transformer_forward.1} parent=71 // pred_check
          %p640 = pneg %p314
        $region94: #{transformer_forward.1} parent=71 // pred_check_branch
          %642 = sbr.rel (%p640) target = $region96
        $region95: #{transformer_forward.1} parent=71 // pred_region
          %643 = dma.done %s636, 32
        $region96: #{transformer_forward.1} parent=71 // pred_fallthru
          _
        %s644 = sand.u32 %s38, 1
        %s645 = scalar_lea.sflag [#allocation14], %s644
        %s646 = sand.u32 %s327, 1
        %s647 = smul.addr %s646, 128
        %s648 = scalar_lea.vmem [#allocation15], %s647
        // Predicated region
        $region97: #{transformer_forward.1} parent=71 // pred_check
          %p649 = pneg %p340
        $region98: #{transformer_forward.1} parent=71 // pred_check_branch
          %651 = sbr.rel (%p649) target = $region100
        $region99: #{transformer_forward.1} parent=71 // pred_region
          %652 = dma.done %s645, 2048
        $region100: #{transformer_forward.1} parent=71 // pred_fallthru
          _
        %s653 = sand.u32 %s353, 1
        %s654 = scalar_lea.sflag [#allocation17], %s653
        %s655 = sand.u32 %s353, 1
        %s656 = scalar_lea.vmem [#allocation16], %s655
        // Predicated region
        $region101: #{transformer_forward.1} parent=71 // pred_check
          %p657 = pneg %p366
        $region102: #{transformer_forward.1} parent=71 // pred_check_branch
          %659 = sbr.rel (%p657) target = $region104
        $region103: #{transformer_forward.1} parent=71 // pred_region
          %660 = dma.done %s654, 16
        $region104: #{transformer_forward.1} parent=71 // pred_fallthru
          _
        %p661 = pneg %p54
        %p662 = pneg %p51
        %p663 = scmp.lt.s32.totalorder %s38, 1
        %s664 = scalar_select %p663, %s38, 1
        %s665 = scalar_lea.vmem %s1, %s664
        %p666 = pneg %p80
        %p667 = pneg %p77
        %p668 = scmp.lt.s32.totalorder %s38, 1
        %s669 = scalar_select %p668, %s38, 1
        %s670 = scalar_lea.vmem %s2, %s669
        %p671 = pneg %p106
        %p672 = pneg %p103
        %s673 = sand.u32 %s38, 1
        %s674 = scalar_lea.sflag [#allocation8], %s673
        %s675 = sand.u32 %s119, 1
        %s676 = smul.addr %s675, 768
        %s677 = scalar_lea.vmem [#allocation7], %s676
        %p678 = pneg %p132
        %p679 = pneg %p129
        %s680 = sand.u32 %s38, 1
        %s681 = scalar_lea.sflag [#allocation8], %s680
        %s682 = sand.u32 %s145, 1
        %s683 = smul.addr %s682, 12
        %s684 = scalar_lea.vmem [#allocation9], %s683
        %p685 = pneg %p158
        %p686 = pneg %p155
        %s687 = sand.u32 %s38, 1
        %s688 = scalar_lea.sflag [#allocation11], %s687
        %s689 = sand.u32 %s171, 1
        %s690 = smul.addr %s689, 256
        %s691 = scalar_lea.vmem [#allocation10], %s690
        %p692 = pneg %p184
        %p693 = pneg %p181
        %p694 = scmp.lt.s32.totalorder %s38, 1
        %s695 = scalar_select %p694, %s38, 1
        %s696 = scalar_lea.vmem %s6, %s695
        %p697 = pneg %p210
        %p698 = pneg %p207
        %p699 = scmp.lt.s32.totalorder %s38, 1
        %s700 = scalar_select %p699, %s38, 1
        %s701 = scalar_lea.vmem %s7, %s700
        %p702 = pneg %p236
        %p703 = pneg %p233
        %p704 = scmp.lt.s32.totalorder %s38, 1
        %s705 = scalar_select %p704, %s38, 1
        %s706 = scalar_lea.vmem %s8, %s705
        %p707 = pneg %p262
        %p708 = pneg %p259
        %s709 = sand.u32 %s38, 1
        %s710 = scalar_lea.sflag [#allocation11], %s709
        %s711 = sand.u32 %s275, 1
        %s712 = smul.addr %s711, 128
        %s713 = scalar_lea.vmem [#allocation12], %s712
        %p714 = pneg %p288
        %p715 = pneg %p285
        %s716 = sand.u32 %s38, 1
        %s717 = scalar_lea.sflag [#allocation14], %s716
        %s718 = sand.u32 %s301, 1
        %s719 = smul.addr %s718, 2
        %s720 = scalar_lea.vmem [#allocation13], %s719
        %p721 = pneg %p314
        %p722 = pneg %p311
        %s723 = sand.u32 %s38, 1
        %s724 = scalar_lea.sflag [#allocation14], %s723
        %s725 = sand.u32 %s327, 1
        %s726 = smul.addr %s725, 128
        %s727 = scalar_lea.vmem [#allocation15], %s726
        %p728 = pneg %p340
        %p729 = pneg %p337
        %s730 = sand.u32 %s353, 1
        %s731 = scalar_lea.sflag [#allocation17], %s730
        %s732 = sand.u32 %s353, 1
        %s733 = scalar_lea.vmem [#allocation16], %s732
        %p734 = pneg %p366
        %p735 = pneg %p363
        %p736 = pneg %p387
        %p737 = pneg %p384
        %p738 = scmp.lt.s32.totalorder %s38, 1
        %s739 = scalar_select %p738, %s38, 1
        %s740 = scalar_lea.vmem %s1, %s739
        %p741 = scmp.lt.s32.totalorder %s38, 1
        %s742 = scalar_select %p741, %s38, 1
        %s743 = scalar_lea.vmem %s2, %s742
        %p744 = scmp.lt.s32.totalorder %s38, 1
        %s745 = scalar_select %p744, %s38, 1
        %s746 = scalar_lea.vmem %s6, %s745
        %p747 = scmp.lt.s32.totalorder %s38, 1
        %s748 = scalar_select %p747, %s38, 1
        %s749 = scalar_lea.vmem %s7, %s748
        %p750 = scmp.lt.s32.totalorder %s38, 1
        %s751 = scalar_select %p750, %s38, 1
        %s752 = scalar_lea.vmem %s8, %s751
        %p754 = scmp.eq.s32.totalorder %s38, 0
        // Predicated region
        $region105: #{transformer_forward.1} parent=71 // pred_check
          %p755 = pneg %p754
        $region106: #{transformer_forward.1} parent=71 // pred_check_branch
          %757 = sbr.rel (%p755) target = $region108
        $region107: #{transformer_forward.1} parent=71 // pred_region
          %v758 = vld [vmem:[#allocation4] sm:$0xff]
          %v759 = vld [vmem:[#allocation4 + $0x8] sm:$0xff]
          %v760 = vld [vmem:[#allocation4 + $0x10] sm:$0xff]
          %v761 = vld [vmem:[#allocation4 + $0x18] sm:$0xff]
          %762 = vst [vmem:[#allocation2] sm:$0xff] %v758
          %763 = vst [vmem:[#allocation2 + $0x8] sm:$0xff] %v759
          %764 = vst [vmem:[#allocation2 + $0x10] sm:$0xff] %v760
          %765 = vst [vmem:[#allocation2 + $0x18] sm:$0xff] %v761
        $region108: #{transformer_forward.1} parent=71 // pred_fallthru
          _
        %v766 = vld [vmem:[#allocation2] sm:$0xff]
        %v767 = vld [vmem:[#allocation2 + $0x8] sm:$0xff]
        %v768 = vld [vmem:[#allocation2 + $0x10] sm:$0xff]
        %v769 = vld [vmem:[#allocation2 + $0x18] sm:$0xff]
        %v770 = vld [vmem:[%s740] sm:$0x1]
        %v771 = vld [vmem:[%s743] sm:$0x1]
        %772 = vadd.xlane.f32.xlu0 %v766
        %v773 = vpop.xlane.xlu0 %772
        %774 = vadd.xlane.f32.xlu0 %v767
        %v775 = vpop.xlane.xlu0 %774
        %776 = vadd.xlane.f32.xlu0 %v768
        %v777 = vpop.xlane.xlu0 %776
        %778 = vadd.xlane.f32.xlu0 %v769
        %v779 = vpop.xlane.xlu0 %778
        %v780 = vrcp.pop 128.0
        %v781 = vmul.f32 %v773, %v780
        %v782 = vmul.f32 %v775, %v780
        %v783 = vmul.f32 %v777, %v780
        %v784 = vmul.f32 %v779, %v780
        %v785 = vsub.f32 %v766, %v781
        %v786 = vsub.f32 %v767, %v782
        %v787 = vsub.f32 %v768, %v783
        %v788 = vsub.f32 %v769, %v784
        %v789 = vmul.f32 %v785, %v785
        %v790 = vmul.f32 %v786, %v786
        %v791 = vmul.f32 %v787, %v787
        %v792 = vmul.f32 %v788, %v788
        %793 = vadd.xlane.f32.xlu0 %v789
        %v794 = vpop.xlane.xlu0 %793
        %795 = vadd.xlane.f32.xlu0 %v790
        %v796 = vpop.xlane.xlu0 %795
        %797 = vadd.xlane.f32.xlu0 %v791
        %v798 = vpop.xlane.xlu0 %797
        %799 = vadd.xlane.f32.xlu0 %v792
        %v800 = vpop.xlane.xlu0 %799
        %v801 = vmul.f32 %v794, %v780
        %v802 = vmul.f32 %v796, %v780
        %v803 = vmul.f32 %v798, %v780
        %v804 = vmul.f32 %v800, %v780
        %v805 = vadd.f32 %v801, 1e-05
        %v806 = vadd.f32 %v802, 1e-05
        %v807 = vadd.f32 %v803, 1e-05
        %v808 = vadd.f32 %v804, 1e-05
        %v809 = vrsqrt.pop %v805
        %v810 = vrsqrt.pop %v806
        %v811 = vrsqrt.pop %v807
        %v812 = vrsqrt.pop %v808
        %v813 = vmul.f32 %v785, %v809
        %v814 = vmul.f32 %v786, %v810
        %v815 = vmul.f32 %v787, %v811
        %v816 = vmul.f32 %v788, %v812
        %v818 = vlaneseq
        %v819 = vshrl.u32 %v818, 7
        %v820 = vsub.s32 0, %v819
        %v821 = vrot.slane %v770, %v820
        %v823 = vmul.f32 %v813, %v821
        %v824 = vmul.f32 %v814, %v821
        %v825 = vmul.f32 %v815, %v821
        %v826 = vmul.f32 %v816, %v821
        %v828 = vlaneseq
        %v829 = vshrl.u32 %v828, 7
        %v830 = vsub.s32 0, %v829
        %v831 = vrot.slane %v771, %v830
        %v833 = vadd.f32 %v823, %v831
        %v834 = vadd.f32 %v824, %v831
        %v835 = vadd.f32 %v825, %v831
        %v836 = vadd.f32 %v826, %v831
        %v837 = vpack.c.bf16 %v834, %v833
        %v838 = vpack.c.bf16 %v836, %v835
        %v839 = vld [vmem:[%s603] sm:$0xff]
        %v840 = vld [vmem:[%s603 + $0x8] sm:$0xff]
        %v841 = vld [vmem:[%s603 + $0x10] sm:$0xff]
        %v842 = vld [vmem:[%s603 + $0x18] sm:$0xff]
        %v843 = vld [vmem:[%s603 + $0x20] sm:$0xff]
        %v844 = vld [vmem:[%s603 + $0x28] sm:$0xff]
        %v845 = vld [vmem:[%s603 + $0x30] sm:$0xff]
        %v846 = vld [vmem:[%s603 + $0x38] sm:$0xff]
        %v847 = vld [vmem:[%s603 + $0x40] sm:$0xff]
        %v848 = vld [vmem:[%s603 + $0x48] sm:$0xff]
        %v849 = vld [vmem:[%s603 + $0x50] sm:$0xff]
        %v850 = vld [vmem:[%s603 + $0x58] sm:$0xff]
        %v851 = vld [vmem:[%s603 + $0x60] sm:$0xff]
        %v852 = vld [vmem:[%s603 + $0x68] sm:$0xff]
        %v853 = vld [vmem:[%s603 + $0x70] sm:$0xff]
        %v854 = vld [vmem:[%s603 + $0x78] sm:$0xff]
        %v855 = vld [vmem:[%s603 + $0x80] sm:$0xff]
        %v856 = vld [vmem:[%s603 + $0x88] sm:$0xff]
        %v857 = vld [vmem:[%s603 + $0x90] sm:$0xff]
        %v858 = vld [vmem:[%s603 + $0x98] sm:$0xff]
        %v859 = vld [vmem:[%s603 + $0xa0] sm:$0xff]
        %v860 = vld [vmem:[%s603 + $0xa8] sm:$0xff]
        %v861 = vld [vmem:[%s603 + $0xb0] sm:$0xff]
        %v862 = vld [vmem:[%s603 + $0xb8] sm:$0xff]
        %v863 = vld [vmem:[%s603 + $0xc0] sm:$0xff]
        %v864 = vld [vmem:[%s603 + $0xc8] sm:$0xff]
        %v865 = vld [vmem:[%s603 + $0xd0] sm:$0xff]
        %v866 = vld [vmem:[%s603 + $0xd8] sm:$0xff]
        %v867 = vld [vmem:[%s603 + $0xe0] sm:$0xff]
        %v868 = vld [vmem:[%s603 + $0xe8] sm:$0xff]
        %v869 = vld [vmem:[%s603 + $0xf0] sm:$0xff]
        %v870 = vld [vmem:[%s603 + $0xf8] sm:$0xff]
        %v871 = vld [vmem:[%s603 + $0x100] sm:$0xff]
        %v872 = vld [vmem:[%s603 + $0x108] sm:$0xff]
        %v873 = vld [vmem:[%s603 + $0x110] sm:$0xff]
        %v874 = vld [vmem:[%s603 + $0x118] sm:$0xff]
        %v875 = vld [vmem:[%s603 + $0x120] sm:$0xff]
        %v876 = vld [vmem:[%s603 + $0x128] sm:$0xff]
        %v877 = vld [vmem:[%s603 + $0x130] sm:$0xff]
        %v878 = vld [vmem:[%s603 + $0x138] sm:$0xff]
        %v879 = vld [vmem:[%s603 + $0x140] sm:$0xff]
        %v880 = vld [vmem:[%s603 + $0x148] sm:$0xff]
        %v881 = vld [vmem:[%s603 + $0x150] sm:$0xff]
        %v882 = vld [vmem:[%s603 + $0x158] sm:$0xff]
        %v883 = vld [vmem:[%s603 + $0x160] sm:$0xff]
        %v884 = vld [vmem:[%s603 + $0x168] sm:$0xff]
        %v885 = vld [vmem:[%s603 + $0x170] sm:$0xff]
        %v886 = vld [vmem:[%s603 + $0x178] sm:$0xff]
        %v887 = vld [vmem:[%s603 + $0x180] sm:$0xff]
        %v888 = vld [vmem:[%s603 + $0x188] sm:$0xff]
        %v889 = vld [vmem:[%s603 + $0x190] sm:$0xff]
        %v890 = vld [vmem:[%s603 + $0x198] sm:$0xff]
        %v891 = vld [vmem:[%s603 + $0x1a0] sm:$0xff]
        %v892 = vld [vmem:[%s603 + $0x1a8] sm:$0xff]
        %v893 = vld [vmem:[%s603 + $0x1b0] sm:$0xff]
        %v894 = vld [vmem:[%s603 + $0x1b8] sm:$0xff]
        %v895 = vld [vmem:[%s603 + $0x1c0] sm:$0xff]
        %v896 = vld [vmem:[%s603 + $0x1c8] sm:$0xff]
        %v897 = vld [vmem:[%s603 + $0x1d0] sm:$0xff]
        %v898 = vld [vmem:[%s603 + $0x1d8] sm:$0xff]
        %v899 = vld [vmem:[%s603 + $0x1e0] sm:$0xff]
        %v900 = vld [vmem:[%s603 + $0x1e8] sm:$0xff]
        %v901 = vld [vmem:[%s603 + $0x1f0] sm:$0xff]
        %v902 = vld [vmem:[%s603 + $0x1f8] sm:$0xff]
        %v903 = vld [vmem:[%s603 + $0x200] sm:$0xff]
        %v904 = vld [vmem:[%s603 + $0x208] sm:$0xff]
        %v905 = vld [vmem:[%s603 + $0x210] sm:$0xff]
        %v906 = vld [vmem:[%s603 + $0x218] sm:$0xff]
        %v907 = vld [vmem:[%s603 + $0x220] sm:$0xff]
        %v908 = vld [vmem:[%s603 + $0x228] sm:$0xff]
        %v909 = vld [vmem:[%s603 + $0x230] sm:$0xff]
        %v910 = vld [vmem:[%s603 + $0x238] sm:$0xff]
        %v911 = vld [vmem:[%s603 + $0x240] sm:$0xff]
        %v912 = vld [vmem:[%s603 + $0x248] sm:$0xff]
        %v913 = vld [vmem:[%s603 + $0x250] sm:$0xff]
        %v914 = vld [vmem:[%s603 + $0x258] sm:$0xff]
        %v915 = vld [vmem:[%s603 + $0x260] sm:$0xff]
        %v916 = vld [vmem:[%s603 + $0x268] sm:$0xff]
        %v917 = vld [vmem:[%s603 + $0x270] sm:$0xff]
        %v918 = vld [vmem:[%s603 + $0x278] sm:$0xff]
        %v919 = vld [vmem:[%s603 + $0x280] sm:$0xff]
        %v920 = vld [vmem:[%s603 + $0x288] sm:$0xff]
        %v921 = vld [vmem:[%s603 + $0x290] sm:$0xff]
        %v922 = vld [vmem:[%s603 + $0x298] sm:$0xff]
        %v923 = vld [vmem:[%s603 + $0x2a0] sm:$0xff]
        %v924 = vld [vmem:[%s603 + $0x2a8] sm:$0xff]
        %v925 = vld [vmem:[%s603 + $0x2b0] sm:$0xff]
        %v926 = vld [vmem:[%s603 + $0x2b8] sm:$0xff]
        %v927 = vld [vmem:[%s603 + $0x2c0] sm:$0xff]
        %v928 = vld [vmem:[%s603 + $0x2c8] sm:$0xff]
        %v929 = vld [vmem:[%s603 + $0x2d0] sm:$0xff]
        %v930 = vld [vmem:[%s603 + $0x2d8] sm:$0xff]
        %v931 = vld [vmem:[%s603 + $0x2e0] sm:$0xff]
        %v932 = vld [vmem:[%s603 + $0x2e8] sm:$0xff]
        %v933 = vld [vmem:[%s603 + $0x2f0] sm:$0xff]
        %v934 = vld [vmem:[%s603 + $0x2f8] sm:$0xff]
        %v935 = vld [vmem:[%s612] sm:$0xff]
        %v936 = vld [vmem:[%s612 + $0x8] sm:$0xf]
        %v939 = vlaneseq
        %v940 = vshrl.u32 %v939, 7
        %v941 = vsub.s32 0, %v940
        %v942 = vrot.slane %v935, %v941
        %v943 = vlaneseq
        %v944 = vshrl.u32 %v943, 7
        %v945 = vsub.s32 1, %v944
        %v946 = vrot.slane %v935, %v945
        %v947 = vlaneseq
        %v948 = vshrl.u32 %v947, 7
        %v949 = vsub.s32 2, %v948
        %v950 = vrot.slane %v935, %v949
        %v951 = vlaneseq
        %v952 = vshrl.u32 %v951, 7
        %v953 = vsub.s32 3, %v952
        %v954 = vrot.slane %v935, %v953
        %v955 = vlaneseq
        %v956 = vshrl.u32 %v955, 7
        %v957 = vsub.s32 4, %v956
        %v958 = vrot.slane %v935, %v957
        %v959 = vlaneseq
        %v960 = vshrl.u32 %v959, 7
        %v961 = vsub.s32 5, %v960
        %v962 = vrot.slane %v935, %v961
        %v963 = vlaneseq
        %v964 = vshrl.u32 %v963, 7
        %v965 = vsub.s32 6, %v964
        %v966 = vrot.slane %v935, %v965
        %v967 = vlaneseq
        %v968 = vshrl.u32 %v967, 7
        %v969 = vsub.s32 7, %v968
        %v970 = vrot.slane %v935, %v969
        %v971 = vlaneseq
        %v972 = vshrl.u32 %v971, 7
        %v973 = vsub.s32 0, %v972
        %v974 = vrot.slane %v936, %v973
        %v975 = vlaneseq
        %v976 = vshrl.u32 %v975, 7
        %v977 = vsub.s32 1, %v976
        %v978 = vrot.slane %v936, %v977
        %v979 = vlaneseq
        %v980 = vshrl.u32 %v979, 7
        %v981 = vsub.s32 2, %v980
        %v982 = vrot.slane %v936, %v981
        %v983 = vlaneseq
        %v984 = vshrl.u32 %v983, 7
        %v985 = vsub.s32 3, %v984
        %v986 = vrot.slane %v936, %v985
        %v1095 = vunpack.c.l.b16 %v839
        %v1096 = vunpack.c.h.b16 %v839
        %v1097 = vunpack.c.l.b16 %v840
        %v1098 = vunpack.c.h.b16 %v840
        %v1099 = vunpack.c.l.b16 %v841
        %v1100 = vunpack.c.h.b16 %v841
        %v1101 = vunpack.c.l.b16 %v842
        %v1102 = vunpack.c.h.b16 %v842
        %v1103 = vunpack.c.l.b16 %v843
        %v1104 = vunpack.c.h.b16 %v843
        %v1105 = vunpack.c.l.b16 %v844
        %v1106 = vunpack.c.h.b16 %v844
        %v1107 = vunpack.c.l.b16 %v845
        %v1108 = vunpack.c.h.b16 %v845
        %v1109 = vunpack.c.l.b16 %v846
        %v1110 = vunpack.c.h.b16 %v846
        %v1111 = vunpack.c.l.b16 %v847
        %v1112 = vunpack.c.h.b16 %v847
        %v1113 = vunpack.c.l.b16 %v848
        %v1114 = vunpack.c.h.b16 %v848
        %v1115 = vunpack.c.l.b16 %v849
        %v1116 = vunpack.c.h.b16 %v849
        %v1117 = vunpack.c.l.b16 %v850
        %v1118 = vunpack.c.h.b16 %v850
        %v1119 = vunpack.c.l.b16 %v851
        %v1120 = vunpack.c.h.b16 %v851
        %v1121 = vunpack.c.l.b16 %v852
        %v1122 = vunpack.c.h.b16 %v852
        %v1123 = vunpack.c.l.b16 %v853
        %v1124 = vunpack.c.h.b16 %v853
        %v1125 = vunpack.c.l.b16 %v854
        %v1126 = vunpack.c.h.b16 %v854
        %v1127 = vunpack.c.l.b16 %v855
        %v1128 = vunpack.c.h.b16 %v855
        %v1129 = vunpack.c.l.b16 %v856
        %v1130 = vunpack.c.h.b16 %v856
        %v1131 = vunpack.c.l.b16 %v857
        %v1132 = vunpack.c.h.b16 %v857
        %v1133 = vunpack.c.l.b16 %v858
        %v1134 = vunpack.c.h.b16 %v858
        %v1135 = vunpack.c.l.b16 %v859
        %v1136 = vunpack.c.h.b16 %v859
        %v1137 = vunpack.c.l.b16 %v860
        %v1138 = vunpack.c.h.b16 %v860
        %v1139 = vunpack.c.l.b16 %v861
        %v1140 = vunpack.c.h.b16 %v861
        %v1141 = vunpack.c.l.b16 %v862
        %v1142 = vunpack.c.h.b16 %v862
        %v1143 = vunpack.c.l.b16 %v863
        %v1144 = vunpack.c.h.b16 %v863
        %v1145 = vunpack.c.l.b16 %v864
        %v1146 = vunpack.c.h.b16 %v864
        %v1147 = vunpack.c.l.b16 %v865
        %v1148 = vunpack.c.h.b16 %v865
        %v1149 = vunpack.c.l.b16 %v866
        %v1150 = vunpack.c.h.b16 %v866
        %v1151 = vunpack.c.l.b16 %v867
        %v1152 = vunpack.c.h.b16 %v867
        %v1153 = vunpack.c.l.b16 %v868
        %v1154 = vunpack.c.h.b16 %v868
        %v1155 = vunpack.c.l.b16 %v869
        %v1156 = vunpack.c.h.b16 %v869
        %v1157 = vunpack.c.l.b16 %v870
        %v1158 = vunpack.c.h.b16 %v870
        %v1159 = vunpack.c.l.b16 %v871
        %v1160 = vunpack.c.h.b16 %v871
        %v1161 = vunpack.c.l.b16 %v872
        %v1162 = vunpack.c.h.b16 %v872
        %v1163 = vunpack.c.l.b16 %v873
        %v1164 = vunpack.c.h.b16 %v873
        %v1165 = vunpack.c.l.b16 %v874
        %v1166 = vunpack.c.h.b16 %v874
        %v1167 = vunpack.c.l.b16 %v875
        %v1168 = vunpack.c.h.b16 %v875
        %v1169 = vunpack.c.l.b16 %v876
        %v1170 = vunpack.c.h.b16 %v876
        %v1171 = vunpack.c.l.b16 %v877
        %v1172 = vunpack.c.h.b16 %v877
        %v1173 = vunpack.c.l.b16 %v878
        %v1174 = vunpack.c.h.b16 %v878
        %v1175 = vunpack.c.l.b16 %v879
        %v1176 = vunpack.c.h.b16 %v879
        %v1177 = vunpack.c.l.b16 %v880
        %v1178 = vunpack.c.h.b16 %v880
        %v1179 = vunpack.c.l.b16 %v881
        %v1180 = vunpack.c.h.b16 %v881
        %v1181 = vunpack.c.l.b16 %v882
        %v1182 = vunpack.c.h.b16 %v882
        %v1183 = vunpack.c.l.b16 %v883
        %v1184 = vunpack.c.h.b16 %v883
        %v1185 = vunpack.c.l.b16 %v884
        %v1186 = vunpack.c.h.b16 %v884
        %v1187 = vunpack.c.l.b16 %v885
        %v1188 = vunpack.c.h.b16 %v885
        %v1189 = vunpack.c.l.b16 %v886
        %v1190 = vunpack.c.h.b16 %v886
        %v1191 = vunpack.c.l.b16 %v887
        %v1192 = vunpack.c.h.b16 %v887
        %v1193 = vunpack.c.l.b16 %v888
        %v1194 = vunpack.c.h.b16 %v888
        %v1195 = vunpack.c.l.b16 %v889
        %v1196 = vunpack.c.h.b16 %v889
        %v1197 = vunpack.c.l.b16 %v890
        %v1198 = vunpack.c.h.b16 %v890
        %v1199 = vunpack.c.l.b16 %v891
        %v1200 = vunpack.c.h.b16 %v891
        %v1201 = vunpack.c.l.b16 %v892
        %v1202 = vunpack.c.h.b16 %v892
        %v1203 = vunpack.c.l.b16 %v893
        %v1204 = vunpack.c.h.b16 %v893
        %v1205 = vunpack.c.l.b16 %v894
        %v1206 = vunpack.c.h.b16 %v894
        %v1207 = vunpack.c.l.b16 %v895
        %v1208 = vunpack.c.h.b16 %v895
        %v1209 = vunpack.c.l.b16 %v896
        %v1210 = vunpack.c.h.b16 %v896
        %v1211 = vunpack.c.l.b16 %v897
        %v1212 = vunpack.c.h.b16 %v897
        %v1213 = vunpack.c.l.b16 %v898
        %v1214 = vunpack.c.h.b16 %v898
        %v1215 = vunpack.c.l.b16 %v899
        %v1216 = vunpack.c.h.b16 %v899
        %v1217 = vunpack.c.l.b16 %v900
        %v1218 = vunpack.c.h.b16 %v900
        %v1219 = vunpack.c.l.b16 %v901
        %v1220 = vunpack.c.h.b16 %v901
        %v1221 = vunpack.c.l.b16 %v902
        %v1222 = vunpack.c.h.b16 %v902
        %v1223 = vunpack.c.l.b16 %v903
        %v1224 = vunpack.c.h.b16 %v903
        %v1225 = vunpack.c.l.b16 %v904
        %v1226 = vunpack.c.h.b16 %v904
        %v1227 = vunpack.c.l.b16 %v905
        %v1228 = vunpack.c.h.b16 %v905
        %v1229 = vunpack.c.l.b16 %v906
        %v1230 = vunpack.c.h.b16 %v906
        %v1231 = vunpack.c.l.b16 %v907
        %v1232 = vunpack.c.h.b16 %v907
        %v1233 = vunpack.c.l.b16 %v908
        %v1234 = vunpack.c.h.b16 %v908
        %v1235 = vunpack.c.l.b16 %v909
        %v1236 = vunpack.c.h.b16 %v909
        %v1237 = vunpack.c.l.b16 %v910
        %v1238 = vunpack.c.h.b16 %v910
        %v1239 = vunpack.c.l.b16 %v911
        %v1240 = vunpack.c.h.b16 %v911
        %v1241 = vunpack.c.l.b16 %v912
        %v1242 = vunpack.c.h.b16 %v912
        %v1243 = vunpack.c.l.b16 %v913
        %v1244 = vunpack.c.h.b16 %v913
        %v1245 = vunpack.c.l.b16 %v914
        %v1246 = vunpack.c.h.b16 %v914
        %v1247 = vunpack.c.l.b16 %v915
        %v1248 = vunpack.c.h.b16 %v915
        %v1249 = vunpack.c.l.b16 %v916
        %v1250 = vunpack.c.h.b16 %v916
        %v1251 = vunpack.c.l.b16 %v917
        %v1252 = vunpack.c.h.b16 %v917
        %v1253 = vunpack.c.l.b16 %v918
        %v1254 = vunpack.c.h.b16 %v918
        %v1255 = vunpack.c.l.b16 %v919
        %v1256 = vunpack.c.h.b16 %v919
        %v1257 = vunpack.c.l.b16 %v920
        %v1258 = vunpack.c.h.b16 %v920
        %v1259 = vunpack.c.l.b16 %v921
        %v1260 = vunpack.c.h.b16 %v921
        %v1261 = vunpack.c.l.b16 %v922
        %v1262 = vunpack.c.h.b16 %v922
        %v1263 = vunpack.c.l.b16 %v923
        %v1264 = vunpack.c.h.b16 %v923
        %v1265 = vunpack.c.l.b16 %v924
        %v1266 = vunpack.c.h.b16 %v924
        %v1267 = vunpack.c.l.b16 %v925
        %v1268 = vunpack.c.h.b16 %v925
        %v1269 = vunpack.c.l.b16 %v926
        %v1270 = vunpack.c.h.b16 %v926
        %v1271 = vunpack.c.l.b16 %v927
        %v1272 = vunpack.c.h.b16 %v927
        %v1273 = vunpack.c.l.b16 %v928
        %v1274 = vunpack.c.h.b16 %v928
        %v1275 = vunpack.c.l.b16 %v929
        %v1276 = vunpack.c.h.b16 %v929
        %v1277 = vunpack.c.l.b16 %v930
        %v1278 = vunpack.c.h.b16 %v930
        %v1279 = vunpack.c.l.b16 %v931
        %v1280 = vunpack.c.h.b16 %v931
        %v1281 = vunpack.c.l.b16 %v932
        %v1282 = vunpack.c.h.b16 %v932
        %v1283 = vunpack.c.l.b16 %v933
        %v1284 = vunpack.c.h.b16 %v933
        %v1285 = vunpack.c.l.b16 %v934
        %v1286 = vunpack.c.h.b16 %v934
        %v1287 = vpack.c.b16 %v1107, %v1095
        %v1288 = vpack.c.b16 %v1108, %v1096
        %v1289 = vpack.c.b16 %v1109, %v1097
        %v1290 = vpack.c.b16 %v1110, %v1098
        %v1291 = vpack.c.b16 %v1111, %v1099
        %v1292 = vpack.c.b16 %v1112, %v1100
        %v1293 = vpack.c.b16 %v1113, %v1101
        %v1294 = vpack.c.b16 %v1114, %v1102
        %v1295 = vpack.c.b16 %v1115, %v1103
        %v1296 = vpack.c.b16 %v1116, %v1104
        %v1297 = vpack.c.b16 %v1117, %v1105
        %v1298 = vpack.c.b16 %v1118, %v1106
        %v1299 = vpack.c.b16 %v1131, %v1119
        %v1300 = vpack.c.b16 %v1132, %v1120
        %v1301 = vpack.c.b16 %v1133, %v1121
        %v1302 = vpack.c.b16 %v1134, %v1122
        %v1303 = vpack.c.b16 %v1135, %v1123
        %v1304 = vpack.c.b16 %v1136, %v1124
        %v1305 = vpack.c.b16 %v1137, %v1125
        %v1306 = vpack.c.b16 %v1138, %v1126
        %v1307 = vpack.c.b16 %v1139, %v1127
        %v1308 = vpack.c.b16 %v1140, %v1128
        %v1309 = vpack.c.b16 %v1141, %v1129
        %v1310 = vpack.c.b16 %v1142, %v1130
        %v1311 = vpack.c.b16 %v1155, %v1143
        %v1312 = vpack.c.b16 %v1156, %v1144
        %v1313 = vpack.c.b16 %v1157, %v1145
        %v1314 = vpack.c.b16 %v1158, %v1146
        %v1315 = vpack.c.b16 %v1159, %v1147
        %v1316 = vpack.c.b16 %v1160, %v1148
        %v1317 = vpack.c.b16 %v1161, %v1149
        %v1318 = vpack.c.b16 %v1162, %v1150
        %v1319 = vpack.c.b16 %v1163, %v1151
        %v1320 = vpack.c.b16 %v1164, %v1152
        %v1321 = vpack.c.b16 %v1165, %v1153
        %v1322 = vpack.c.b16 %v1166, %v1154
        %v1323 = vpack.c.b16 %v1179, %v1167
        %v1324 = vpack.c.b16 %v1180, %v1168
        %v1325 = vpack.c.b16 %v1181, %v1169
        %v1326 = vpack.c.b16 %v1182, %v1170
        %v1327 = vpack.c.b16 %v1183, %v1171
        %v1328 = vpack.c.b16 %v1184, %v1172
        %v1329 = vpack.c.b16 %v1185, %v1173
        %v1330 = vpack.c.b16 %v1186, %v1174
        %v1331 = vpack.c.b16 %v1187, %v1175
        %v1332 = vpack.c.b16 %v1188, %v1176
        %v1333 = vpack.c.b16 %v1189, %v1177
        %v1334 = vpack.c.b16 %v1190, %v1178
        %v1335 = vpack.c.b16 %v1203, %v1191
        %v1336 = vpack.c.b16 %v1204, %v1192
        %v1337 = vpack.c.b16 %v1205, %v1193
        %v1338 = vpack.c.b16 %v1206, %v1194
        %v1339 = vpack.c.b16 %v1207, %v1195
        %v1340 = vpack.c.b16 %v1208, %v1196
        %v1341 = vpack.c.b16 %v1209, %v1197
        %v1342 = vpack.c.b16 %v1210, %v1198
        %v1343 = vpack.c.b16 %v1211, %v1199
        %v1344 = vpack.c.b16 %v1212, %v1200
        %v1345 = vpack.c.b16 %v1213, %v1201
        %v1346 = vpack.c.b16 %v1214, %v1202
        %v1347 = vpack.c.b16 %v1227, %v1215
        %v1348 = vpack.c.b16 %v1228, %v1216
        %v1349 = vpack.c.b16 %v1229, %v1217
        %v1350 = vpack.c.b16 %v1230, %v1218
        %v1351 = vpack.c.b16 %v1231, %v1219
        %v1352 = vpack.c.b16 %v1232, %v1220
        %v1353 = vpack.c.b16 %v1233, %v1221
        %v1354 = vpack.c.b16 %v1234, %v1222
        %v1355 = vpack.c.b16 %v1235, %v1223
        %v1356 = vpack.c.b16 %v1236, %v1224
        %v1357 = vpack.c.b16 %v1237, %v1225
        %v1358 = vpack.c.b16 %v1238, %v1226
        %v1359 = vpack.c.b16 %v1251, %v1239
        %v1360 = vpack.c.b16 %v1252, %v1240
        %v1361 = vpack.c.b16 %v1253, %v1241
        %v1362 = vpack.c.b16 %v1254, %v1242
        %v1363 = vpack.c.b16 %v1255, %v1243
        %v1364 = vpack.c.b16 %v1256, %v1244
        %v1365 = vpack.c.b16 %v1257, %v1245
        %v1366 = vpack.c.b16 %v1258, %v1246
        %v1367 = vpack.c.b16 %v1259, %v1247
        %v1368 = vpack.c.b16 %v1260, %v1248
        %v1369 = vpack.c.b16 %v1261, %v1249
        %v1370 = vpack.c.b16 %v1262, %v1250
        %v1371 = vpack.c.b16 %v1275, %v1263
        %v1372 = vpack.c.b16 %v1276, %v1264
        %v1373 = vpack.c.b16 %v1277, %v1265
        %v1374 = vpack.c.b16 %v1278, %v1266
        %v1375 = vpack.c.b16 %v1279, %v1267
        %v1376 = vpack.c.b16 %v1280, %v1268
        %v1377 = vpack.c.b16 %v1281, %v1269
        %v1378 = vpack.c.b16 %v1282, %v1270
        %v1379 = vpack.c.b16 %v1283, %v1271
        %v1380 = vpack.c.b16 %v1284, %v1272
        %v1381 = vpack.c.b16 %v1285, %v1273
        %v1382 = vpack.c.b16 %v1286, %v1274
        %1479 = vmatprep.subr.bf16.mxu0 %v1372
        %1480 = vmatpush1.bf16.msra.mxu0 %v1371
        %1481 = vmatprep.subr.bf16.mxu0 %v1360
        %1482 = vmatpush1.bf16.msra.mxu0 %v1359
        %1483 = vmatprep.subr.bf16.mxu0 %v1348
        %1484 = vmatpush1.bf16.msra.mxu0 %v1347
        %1485 = vmatprep.subr.bf16.mxu0 %v1336
        %1486 = vmatpush1.bf16.msra.mxu0 %v1335
        %1487 = vmatprep.subr.bf16.mxu0 %v1324
        %1488 = vmatpush1.bf16.msra.mxu0 %v1323
        %1489 = vmatprep.subr.bf16.mxu0 %v1312
        %1490 = vmatpush1.bf16.msra.mxu0 %v1311
        %1491 = vmatprep.subr.bf16.mxu0 %v1300
        %1492 = vmatpush1.bf16.msra.mxu0 %v1299
        %1493 = vmatprep.subr.bf16.mxu0 %v1288
        %1494 = vmatpush1.bf16.msra.mxu0 %v1287
        %1495 = vmatprep.subr.bf16.mxu0 0
        %1496 = vmatpush2.bf16.msra.mxu0 0
        %1497 = vmatprep.subr.bf16.mxu0 0
        %1498 = vmatpush2.bf16.msra.mxu0 0
        %1499 = vmatprep.subr.bf16.mxu0 0
        %1500 = vmatpush2.bf16.msra.mxu0 0
        %1501 = vmatprep.subr.bf16.mxu0 0
        %1502 = vmatpush2.bf16.msra.mxu0 0
        %1503 = vmatprep.subr.bf16.mxu0 0
        %1504 = vmatpush2.bf16.msra.mxu0 0
        %1505 = vmatprep.subr.bf16.mxu0 0
        %1506 = vmatpush2.bf16.msra.mxu0 0
        %1507 = vmatprep.subr.bf16.mxu0 0
        %1508 = vmatpush2.bf16.msra.mxu0 0
        %1509 = vmatprep.subr.bf16.mxu0 0
        %1510 = vmatpush2.bf16.msra.mxu0 0
        %1511 = vmatprep.mubr.bf16.mxu0 0
        %1512 = vmatmul.mubr.bf16.gmra.mxu0 %v837
        %v1513 = vpop.f32.mrf.mxu0
        %v1514 = vadd.f32 %v942, %v1513
        %v1515 = vpop.f32.mrf.mxu0
        %v1516 = vadd.f32 %v946, %v1515
        %v1517 = vpop.f32.mrf.mxu0
        %v1518 = vadd.f32 %v942, %v1517
        %v1519 = vpop.f32.mrf.mxu0
        %v1520 = vadd.f32 %v946, %v1519
        %1521 = vmatprep.mubr.bf16.mxu0 0
        %1522 = vmatmul.mubr.bf16.gmra.mxu0 %v838
        %v1523 = vpop.f32.mrf.mxu0
        %v1524 = vadd.f32 %v942, %v1523
        %v1525 = vpop.f32.mrf.mxu0
        %v1526 = vadd.f32 %v946, %v1525
        %v1527 = vpop.f32.mrf.mxu0
        %v1528 = vadd.f32 %v942, %v1527
        %v1529 = vpop.f32.mrf.mxu0
        %v1530 = vadd.f32 %v946, %v1529
        %1531 = vdwg.mxu0
        %1532 = vmatprep.subr.bf16.mxu0 %v1374
        %1533 = vmatpush1.bf16.msra.mxu0 %v1373
        %1534 = vmatprep.subr.bf16.mxu0 %v1362
        %1535 = vmatpush1.bf16.msra.mxu0 %v1361
        %1536 = vmatprep.subr.bf16.mxu0 %v1350
        %1537 = vmatpush1.bf16.msra.mxu0 %v1349
        %1538 = vmatprep.subr.bf16.mxu0 %v1338
        %1539 = vmatpush1.bf16.msra.mxu0 %v1337
        %1540 = vmatprep.subr.bf16.mxu0 %v1326
        %1541 = vmatpush1.bf16.msra.mxu0 %v1325
        %1542 = vmatprep.subr.bf16.mxu0 %v1314
        %1543 = vmatpush1.bf16.msra.mxu0 %v1313
        %1544 = vmatprep.subr.bf16.mxu0 %v1302
        %1545 = vmatpush1.bf16.msra.mxu0 %v1301
        %1546 = vmatprep.subr.bf16.mxu0 %v1290
        %1547 = vmatpush1.bf16.msra.mxu0 %v1289
        %1548 = vmatprep.subr.bf16.mxu0 0
        %1549 = vmatpush2.bf16.msra.mxu0 0
        %1550 = vmatprep.subr.bf16.mxu0 0
        %1551 = vmatpush2.bf16.msra.mxu0 0
        %1552 = vmatprep.subr.bf16.mxu0 0
        %1553 = vmatpush2.bf16.msra.mxu0 0
        %1554 = vmatprep.subr.bf16.mxu0 0
        %1555 = vmatpush2.bf16.msra.mxu0 0
        %1556 = vmatprep.subr.bf16.mxu0 0
        %1557 = vmatpush2.bf16.msra.mxu0 0
        %1558 = vmatprep.subr.bf16.mxu0 0
        %1559 = vmatpush2.bf16.msra.mxu0 0
        %1560 = vmatprep.subr.bf16.mxu0 0
        %1561 = vmatpush2.bf16.msra.mxu0 0
        %1562 = vmatprep.subr.bf16.mxu0 0
        %1563 = vmatpush2.bf16.msra.mxu0 0
        %1564 = vmatprep.mubr.bf16.mxu0 0
        %1565 = vmatmul.mubr.bf16.gmra.mxu0 %v837
        %v1566 = vpop.f32.mrf.mxu0
        %v1567 = vadd.f32 %v950, %v1566
        %v1568 = vpop.f32.mrf.mxu0
        %v1569 = vadd.f32 %v954, %v1568
        %v1570 = vpop.f32.mrf.mxu0
        %v1571 = vadd.f32 %v950, %v1570
        %v1572 = vpop.f32.mrf.mxu0
        %v1573 = vadd.f32 %v954, %v1572
        %1574 = vmatprep.mubr.bf16.mxu0 0
        %1575 = vmatmul.mubr.bf16.gmra.mxu0 %v838
        %v1576 = vpop.f32.mrf.mxu0
        %v1577 = vadd.f32 %v950, %v1576
        %v1578 = vpop.f32.mrf.mxu0
        %v1579 = vadd.f32 %v954, %v1578
        %v1580 = vpop.f32.mrf.mxu0
        %v1581 = vadd.f32 %v950, %v1580
        %v1582 = vpop.f32.mrf.mxu0
        %v1583 = vadd.f32 %v954, %v1582
        %1584 = vdwg.mxu0
        %1585 = vmatprep.subr.bf16.mxu0 %v1376
        %1586 = vmatpush1.bf16.msra.mxu0 %v1375
        %1587 = vmatprep.subr.bf16.mxu0 %v1364
        %1588 = vmatpush1.bf16.msra.mxu0 %v1363
        %1589 = vmatprep.subr.bf16.mxu0 %v1352
        %1590 = vmatpush1.bf16.msra.mxu0 %v1351
        %1591 = vmatprep.subr.bf16.mxu0 %v1340
        %1592 = vmatpush1.bf16.msra.mxu0 %v1339
        %1593 = vmatprep.subr.bf16.mxu0 %v1328
        %1594 = vmatpush1.bf16.msra.mxu0 %v1327
        %1595 = vmatprep.subr.bf16.mxu0 %v1316
        %1596 = vmatpush1.bf16.msra.mxu0 %v1315
        %1597 = vmatprep.subr.bf16.mxu0 %v1304
        %1598 = vmatpush1.bf16.msra.mxu0 %v1303
        %1599 = vmatprep.subr.bf16.mxu0 %v1292
        %1600 = vmatpush1.bf16.msra.mxu0 %v1291
        %1601 = vmatprep.subr.bf16.mxu0 0
        %1602 = vmatpush2.bf16.msra.mxu0 0
        %1603 = vmatprep.subr.bf16.mxu0 0
        %1604 = vmatpush2.bf16.msra.mxu0 0
        %1605 = vmatprep.subr.bf16.mxu0 0
        %1606 = vmatpush2.bf16.msra.mxu0 0
        %1607 = vmatprep.subr.bf16.mxu0 0
        %1608 = vmatpush2.bf16.msra.mxu0 0
        %1609 = vmatprep.subr.bf16.mxu0 0
        %1610 = vmatpush2.bf16.msra.mxu0 0
        %1611 = vmatprep.subr.bf16.mxu0 0
        %1612 = vmatpush2.bf16.msra.mxu0 0
        %1613 = vmatprep.subr.bf16.mxu0 0
        %1614 = vmatpush2.bf16.msra.mxu0 0
        %1615 = vmatprep.subr.bf16.mxu0 0
        %1616 = vmatpush2.bf16.msra.mxu0 0
        %1617 = vmatprep.mubr.bf16.mxu0 0
        %1618 = vmatmul.mubr.bf16.gmra.mxu0 %v837
        %v1619 = vpop.f32.mrf.mxu0
        %v1620 = vadd.f32 %v958, %v1619
        %v1621 = vpop.f32.mrf.mxu0
        %v1622 = vadd.f32 %v962, %v1621
        %v1623 = vpop.f32.mrf.mxu0
        %v1624 = vadd.f32 %v958, %v1623
        %v1625 = vpop.f32.mrf.mxu0
        %v1626 = vadd.f32 %v962, %v1625
        %1627 = vmatprep.mubr.bf16.mxu0 0
        %1628 = vmatmul.mubr.bf16.gmra.mxu0 %v838
        %v1629 = vpop.f32.mrf.mxu0
        %v1630 = vadd.f32 %v958, %v1629
        %v1631 = vpop.f32.mrf.mxu0
        %v1632 = vadd.f32 %v962, %v1631
        %v1633 = vpop.f32.mrf.mxu0
        %v1634 = vadd.f32 %v958, %v1633
        %v1635 = vpop.f32.mrf.mxu0
        %v1636 = vadd.f32 %v962, %v1635
        %1637 = vdwg.mxu0
        %1638 = vmatprep.subr.bf16.mxu0 %v1378
        %1639 = vmatpush1.bf16.msra.mxu0 %v1377
        %1640 = vmatprep.subr.bf16.mxu0 %v1366
        %1641 = vmatpush1.bf16.msra.mxu0 %v1365
        %1642 = vmatprep.subr.bf16.mxu0 %v1354
        %1643 = vmatpush1.bf16.msra.mxu0 %v1353
        %1644 = vmatprep.subr.bf16.mxu0 %v1342
        %1645 = vmatpush1.bf16.msra.mxu0 %v1341
        %1646 = vmatprep.subr.bf16.mxu0 %v1330
        %1647 = vmatpush1.bf16.msra.mxu0 %v1329
        %1648 = vmatprep.subr.bf16.mxu0 %v1318
        %1649 = vmatpush1.bf16.msra.mxu0 %v1317
        %1650 = vmatprep.subr.bf16.mxu0 %v1306
        %1651 = vmatpush1.bf16.msra.mxu0 %v1305
        %1652 = vmatprep.subr.bf16.mxu0 %v1294
        %1653 = vmatpush1.bf16.msra.mxu0 %v1293
        %1654 = vmatprep.subr.bf16.mxu0 0
        %1655 = vmatpush2.bf16.msra.mxu0 0
        %1656 = vmatprep.subr.bf16.mxu0 0
        %1657 = vmatpush2.bf16.msra.mxu0 0
        %1658 = vmatprep.subr.bf16.mxu0 0
        %1659 = vmatpush2.bf16.msra.mxu0 0
        %1660 = vmatprep.subr.bf16.mxu0 0
        %1661 = vmatpush2.bf16.msra.mxu0 0
        %1662 = vmatprep.subr.bf16.mxu0 0
        %1663 = vmatpush2.bf16.msra.mxu0 0
        %1664 = vmatprep.subr.bf16.mxu0 0
        %1665 = vmatpush2.bf16.msra.mxu0 0
        %1666 = vmatprep.subr.bf16.mxu0 0
        %1667 = vmatpush2.bf16.msra.mxu0 0
        %1668 = vmatprep.subr.bf16.mxu0 0
        %1669 = vmatpush2.bf16.msra.mxu0 0
        %1670 = vmatprep.mubr.bf16.mxu0 0
        %1671 = vmatmul.mubr.bf16.gmra.mxu0 %v837
        %v1672 = vpop.f32.mrf.mxu0
        %v1673 = vadd.f32 %v966, %v1672
        %v1674 = vpop.f32.mrf.mxu0
        %v1675 = vadd.f32 %v970, %v1674
        %v1676 = vpop.f32.mrf.mxu0
        %v1677 = vadd.f32 %v966, %v1676
        %v1678 = vpop.f32.mrf.mxu0
        %v1679 = vadd.f32 %v970, %v1678
        %1680 = vmatprep.mubr.bf16.mxu0 0
        %1681 = vmatmul.mubr.bf16.gmra.mxu0 %v838
        %v1682 = vpop.f32.mrf.mxu0
        %v1683 = vadd.f32 %v966, %v1682
        %v1684 = vpop.f32.mrf.mxu0
        %v1685 = vadd.f32 %v970, %v1684
        %v1686 = vpop.f32.mrf.mxu0
        %v1687 = vadd.f32 %v966, %v1686
        %v1688 = vpop.f32.mrf.mxu0
        %v1689 = vadd.f32 %v970, %v1688
        %1690 = vdwg.mxu0
        %1691 = vmatprep.subr.bf16.mxu0 %v1380
        %1692 = vmatpush1.bf16.msra.mxu0 %v1379
        %1693 = vmatprep.subr.bf16.mxu0 %v1368
        %1694 = vmatpush1.bf16.msra.mxu0 %v1367
        %1695 = vmatprep.subr.bf16.mxu0 %v1356
        %1696 = vmatpush1.bf16.msra.mxu0 %v1355
        %1697 = vmatprep.subr.bf16.mxu0 %v1344
        %1698 = vmatpush1.bf16.msra.mxu0 %v1343
        %1699 = vmatprep.subr.bf16.mxu0 %v1332
        %1700 = vmatpush1.bf16.msra.mxu0 %v1331
        %1701 = vmatprep.subr.bf16.mxu0 %v1320
        %1702 = vmatpush1.bf16.msra.mxu0 %v1319
        %1703 = vmatprep.subr.bf16.mxu0 %v1308
        %1704 = vmatpush1.bf16.msra.mxu0 %v1307
        %1705 = vmatprep.subr.bf16.mxu0 %v1296
        %1706 = vmatpush1.bf16.msra.mxu0 %v1295
        %1707 = vmatprep.subr.bf16.mxu0 0
        %1708 = vmatpush2.bf16.msra.mxu0 0
        %1709 = vmatprep.subr.bf16.mxu0 0
        %1710 = vmatpush2.bf16.msra.mxu0 0
        %1711 = vmatprep.subr.bf16.mxu0 0
        %1712 = vmatpush2.bf16.msra.mxu0 0
        %1713 = vmatprep.subr.bf16.mxu0 0
        %1714 = vmatpush2.bf16.msra.mxu0 0
        %1715 = vmatprep.subr.bf16.mxu0 0
        %1716 = vmatpush2.bf16.msra.mxu0 0
        %1717 = vmatprep.subr.bf16.mxu0 0
        %1718 = vmatpush2.bf16.msra.mxu0 0
        %1719 = vmatprep.subr.bf16.mxu0 0
        %1720 = vmatpush2.bf16.msra.mxu0 0
        %1721 = vmatprep.subr.bf16.mxu0 0
        %1722 = vmatpush2.bf16.msra.mxu0 0
        %1723 = vmatprep.mubr.bf16.mxu0 0
        %1724 = vmatmul.mubr.bf16.gmra.mxu0 %v837
        %v1725 = vpop.f32.mrf.mxu0
        %v1726 = vadd.f32 %v974, %v1725
        %v1727 = vpop.f32.mrf.mxu0
        %v1728 = vadd.f32 %v978, %v1727
        %v1729 = vpop.f32.mrf.mxu0
        %v1730 = vadd.f32 %v974, %v1729
        %v1731 = vpop.f32.mrf.mxu0
        %v1732 = vadd.f32 %v978, %v1731
        %1733 = vmatprep.mubr.bf16.mxu0 0
        %1734 = vmatmul.mubr.bf16.gmra.mxu0 %v838
        %v1735 = vpop.f32.mrf.mxu0
        %v1736 = vadd.f32 %v974, %v1735
        %v1737 = vpop.f32.mrf.mxu0
        %v1738 = vadd.f32 %v978, %v1737
        %v1739 = vpop.f32.mrf.mxu0
        %v1740 = vadd.f32 %v974, %v1739
        %v1741 = vpop.f32.mrf.mxu0
        %v1742 = vadd.f32 %v978, %v1741
        %1743 = vdwg.mxu0
        %1744 = vmatprep.subr.bf16.mxu0 %v1382
        %1745 = vmatpush1.bf16.msra.mxu0 %v1381
        %1746 = vmatprep.subr.bf16.mxu0 %v1370
        %1747 = vmatpush1.bf16.msra.mxu0 %v1369
        %1748 = vmatprep.subr.bf16.mxu0 %v1358
        %1749 = vmatpush1.bf16.msra.mxu0 %v1357
        %1750 = vmatprep.subr.bf16.mxu0 %v1346
        %1751 = vmatpush1.bf16.msra.mxu0 %v1345
        %1752 = vmatprep.subr.bf16.mxu0 %v1334
        %1753 = vmatpush1.bf16.msra.mxu0 %v1333
        %1754 = vmatprep.subr.bf16.mxu0 %v1322
        %1755 = vmatpush1.bf16.msra.mxu0 %v1321
        %1756 = vmatprep.subr.bf16.mxu0 %v1310
        %1757 = vmatpush1.bf16.msra.mxu0 %v1309
        %1758 = vmatprep.subr.bf16.mxu0 %v1298
        %1759 = vmatpush1.bf16.msra.mxu0 %v1297
        %1760 = vmatprep.subr.bf16.mxu0 0
        %1761 = vmatpush2.bf16.msra.mxu0 0
        %1762 = vmatprep.subr.bf16.mxu0 0
        %1763 = vmatpush2.bf16.msra.mxu0 0
        %1764 = vmatprep.subr.bf16.mxu0 0
        %1765 = vmatpush2.bf16.msra.mxu0 0
        %1766 = vmatprep.subr.bf16.mxu0 0
        %1767 = vmatpush2.bf16.msra.mxu0 0
        %1768 = vmatprep.subr.bf16.mxu0 0
        %1769 = vmatpush2.bf16.msra.mxu0 0
        %1770 = vmatprep.subr.bf16.mxu0 0
        %1771 = vmatpush2.bf16.msra.mxu0 0
        %1772 = vmatprep.subr.bf16.mxu0 0
        %1773 = vmatpush2.bf16.msra.mxu0 0
        %1774 = vmatprep.subr.bf16.mxu0 0
        %1775 = vmatpush2.bf16.msra.mxu0 0
        %1776 = vmatprep.mubr.bf16.mxu0 0
        %1777 = vmatmul.mubr.bf16.gmra.mxu0 %v837
        %v1778 = vpop.f32.mrf.mxu0
        %v1779 = vadd.f32 %v982, %v1778
        %v1780 = vpop.f32.mrf.mxu0
        %v1781 = vadd.f32 %v986, %v1780
        %v1782 = vpop.f32.mrf.mxu0
        %v1783 = vadd.f32 %v982, %v1782
        %v1784 = vpop.f32.mrf.mxu0
        %v1785 = vadd.f32 %v986, %v1784
        %1786 = vmatprep.mubr.bf16.mxu0 0
        %1787 = vmatmul.mubr.bf16.gmra.mxu0 %v838
        %v1788 = vpop.f32.mrf.mxu0
        %v1789 = vadd.f32 %v982, %v1788
        %v1790 = vpop.f32.mrf.mxu0
        %v1791 = vadd.f32 %v986, %v1790
        %v1792 = vpop.f32.mrf.mxu0
        %v1793 = vadd.f32 %v982, %v1792
        %v1794 = vpop.f32.mrf.mxu0
        %v1795 = vadd.f32 %v986, %v1794
        %1796 = vdwg.mxu0
        %v1797 = vpack.c.bf16 %v1518, %v1514
        %v1798 = vpack.c.bf16 %v1528, %v1524
        %v1799 = vpack.c.bf16 %v1624, %v1620
        %v1800 = vpack.c.bf16 %v1634, %v1630
        %v1801 = vpack.c.bf16 %v1730, %v1726
        %v1802 = vpack.c.bf16 %v1740, %v1736
        %1803 = vmatprep.subr.bf16.mxu0 0
        %1804 = vmatpush1.bf16.xpose.msra.mxu0 0
        %1805 = vmatprep.subr.bf16.mxu0 0
        %1806 = vmatpush1.bf16.xpose.msra.mxu0 0
        %1807 = vmatprep.subr.bf16.mxu0 0
        %1808 = vmatpush1.bf16.xpose.msra.mxu0 0
        %1809 = vmatprep.subr.bf16.mxu0 0
        %1810 = vmatpush1.bf16.xpose.msra.mxu0 0
        %1811 = vmatprep.subr.bf16.mxu0 0
        %1812 = vmatpush1.bf16.xpose.msra.mxu0 0
        %1813 = vmatprep.subr.bf16.mxu0 0
        %1814 = vmatpush1.bf16.xpose.msra.mxu0 0
        %1815 = vmatprep.subr.bf16.mxu0 0
        %1816 = vmatpush1.bf16.xpose.msra.mxu0 0
        %1817 = vmatprep.subr.bf16.mxu0 0
        %1818 = vmatpush1.bf16.xpose.msra.mxu0 %v1799
        %1819 = vmatprep.subr.bf16.mxu0 0
        %1820 = vmatpush2.bf16.xpose.msra.mxu0 0
        %1821 = vmatprep.subr.bf16.mxu0 0
        %1822 = vmatpush2.bf16.xpose.msra.mxu0 0
        %1823 = vmatprep.subr.bf16.mxu0 0
        %1824 = vmatpush2.bf16.xpose.msra.mxu0 0
        %1825 = vmatprep.subr.bf16.mxu0 0
        %1826 = vmatpush2.bf16.xpose.msra.mxu0 0
        %1827 = vmatprep.subr.bf16.mxu0 0
        %1828 = vmatpush2.bf16.xpose.msra.mxu0 0
        %1829 = vmatprep.subr.bf16.mxu0 0
        %1830 = vmatpush2.bf16.xpose.msra.mxu0 0
        %1831 = vmatprep.subr.bf16.mxu0 0
        %1832 = vmatpush2.bf16.xpose.msra.mxu0 0
        %1833 = vmatprep.subr.bf16.mxu0 0
        %1834 = vmatpush2.bf16.xpose.msra.mxu0 0
        %1835 = vmatprep.mubr.bf16.mxu0 0
        %1836 = vmatmul.mubr.bf16.gmra.mxu0 %v1797
        %v1837 = vpop.f32.mrf.mxu0
        %v1838 = vadd.f32 0.0, %v1837
        %v1839 = vpop.f32.mrf.mxu0
        %v1840 = vpop.f32.mrf.mxu0
        %v1841 = vadd.f32 0.0, %v1840
        %v1842 = vpop.f32.mrf.mxu0
        %1843 = vdwg.mxu0
        %1844 = vmatprep.subr.bf16.mxu0 0
        %1845 = vmatpush1.bf16.xpose.msra.mxu0 0
        %1846 = vmatprep.subr.bf16.mxu0 0
        %1847 = vmatpush1.bf16.xpose.msra.mxu0 0
        %1848 = vmatprep.subr.bf16.mxu0 0
        %1849 = vmatpush1.bf16.xpose.msra.mxu0 0
        %1850 = vmatprep.subr.bf16.mxu0 0
        %1851 = vmatpush1.bf16.xpose.msra.mxu0 0
        %1852 = vmatprep.subr.bf16.mxu0 0
        %1853 = vmatpush1.bf16.xpose.msra.mxu0 0
        %1854 = vmatprep.subr.bf16.mxu0 0
        %1855 = vmatpush1.bf16.xpose.msra.mxu0 0
        %1856 = vmatprep.subr.bf16.mxu0 0
        %1857 = vmatpush1.bf16.xpose.msra.mxu0 0
        %1858 = vmatprep.subr.bf16.mxu0 0
        %1859 = vmatpush1.bf16.xpose.msra.mxu0 %v1800
        %1860 = vmatprep.subr.bf16.mxu0 0
        %1861 = vmatpush2.bf16.xpose.msra.mxu0 0
        %1862 = vmatprep.subr.bf16.mxu0 0
        %1863 = vmatpush2.bf16.xpose.msra.mxu0 0
        %1864 = vmatprep.subr.bf16.mxu0 0
        %1865 = vmatpush2.bf16.xpose.msra.mxu0 0
        %1866 = vmatprep.subr.bf16.mxu0 0
        %1867 = vmatpush2.bf16.xpose.msra.mxu0 0
        %1868 = vmatprep.subr.bf16.mxu0 0
        %1869 = vmatpush2.bf16.xpose.msra.mxu0 0
        %1870 = vmatprep.subr.bf16.mxu0 0
        %1871 = vmatpush2.bf16.xpose.msra.mxu0 0
        %1872 = vmatprep.subr.bf16.mxu0 0
        %1873 = vmatpush2.bf16.xpose.msra.mxu0 0
        %1874 = vmatprep.subr.bf16.mxu0 0
        %1875 = vmatpush2.bf16.xpose.msra.mxu0 0
        %1876 = vmatprep.mubr.bf16.mxu0 0
        %1877 = vmatmul.mubr.bf16.gmra.mxu0 %v1798
        %v1878 = vpop.f32.mrf.mxu0
        %v1879 = vadd.f32 0.0, %v1878
        %v1880 = vpop.f32.mrf.mxu0
        %v1881 = vpop.f32.mrf.mxu0
        %v1882 = vadd.f32 0.0, %v1881
        %v1883 = vpop.f32.mrf.mxu0
        %1884 = vdwg.mxu0
        %vm1885 = vcmask 130048
        %v1886 = vsel %vm1885, %v1838, -inf
        %1887 = vmax.xlane.f32.xlu0 %v1886
        %v1888 = vpop.xlane.xlu0 %1887
        %v1889 = vsel %vm1885, %v1841, -inf
        %1890 = vmax.xlane.f32.xlu0 %v1889
        %v1891 = vpop.xlane.xlu0 %1890
        %v1892 = vsel %vm1885, %v1879, -inf
        %1893 = vmax.xlane.f32.xlu0 %v1892
        %v1894 = vpop.xlane.xlu0 %1893
        %v1895 = vsel %vm1885, %v1882, -inf
        %1896 = vmax.xlane.f32.xlu0 %v1895
        %v1897 = vpop.xlane.xlu0 %1896
        %v1898 = vsub.f32 %v1838, %v1888
        %v1899 = vsub.f32 %v1841, %v1891
        %v1900 = vsub.f32 %v1879, %v1894
        %v1901 = vsub.f32 %v1882, %v1897
        %v1902 = vmul.f32 %v1898, 1.442695
        %v1903 = vpow.pop %v1902
        %v1904 = vmul.f32 %v1899, 1.442695
        %v1905 = vpow.pop %v1904
        %v1906 = vmul.f32 %v1900, 1.442695
        %v1907 = vpow.pop %v1906
        %v1908 = vmul.f32 %v1901, 1.442695
        %v1909 = vpow.pop %v1908
        %v1910 = vsel %vm1885, %v1903, 0.0
        %1911 = vadd.xlane.f32.xlu0 %v1910
        %v1912 = vpop.xlane.xlu0 %1911
        %v1913 = vsel %vm1885, %v1905, 0.0
        %1914 = vadd.xlane.f32.xlu0 %v1913
        %v1915 = vpop.xlane.xlu0 %1914
        %v1916 = vsel %vm1885, %v1907, 0.0
        %1917 = vadd.xlane.f32.xlu0 %v1916
        %v1918 = vpop.xlane.xlu0 %1917
        %v1919 = vsel %vm1885, %v1909, 0.0
        %1920 = vadd.xlane.f32.xlu0 %v1919
        %v1921 = vpop.xlane.xlu0 %1920
        %v1922 = vrcp.pop %v1912
        %v1923 = vrcp.pop %v1915
        %v1924 = vrcp.pop %v1918
        %v1925 = vrcp.pop %v1921
        %v1926 = vmul.f32 %v1903, %v1922
        %v1927 = vmul.f32 %v1905, %v1923
        %v1928 = vmul.f32 %v1907, %v1924
        %v1929 = vmul.f32 %v1909, %v1925
        %v1930 = vpack.c.bf16 %v1927, %v1926
        %v1931 = vpack.c.bf16 %v1929, %v1928
        %v1933 = vsel %vm1885, %v1930, 0
        %1935 = vmatprep.subr.bf16.mxu0 0
        %1936 = vmatpush1.bf16.msra.mxu0 0
        %1937 = vmatprep.subr.bf16.mxu0 0
        %1938 = vmatpush1.bf16.msra.mxu0 0
        %1939 = vmatprep.subr.bf16.mxu0 0
        %1940 = vmatpush1.bf16.msra.mxu0 0
        %1941 = vmatprep.subr.bf16.mxu0 0
        %1942 = vmatpush1.bf16.msra.mxu0 0
        %1943 = vmatprep.subr.bf16.mxu0 0
        %1944 = vmatpush1.bf16.msra.mxu0 0
        %1945 = vmatprep.subr.bf16.mxu0 0
        %1946 = vmatpush1.bf16.msra.mxu0 0
        %1947 = vmatprep.subr.bf16.mxu0 0
        %1948 = vmatpush1.bf16.msra.mxu0 0
        %1949 = vmatprep.subr.bf16.mxu0 0
        %1950 = vmatpush1.bf16.msra.mxu0 %v1801
        %1951 = vmatprep.subr.bf16.mxu0 0
        %1952 = vmatpush2.bf16.msra.mxu0 0
        %1953 = vmatprep.subr.bf16.mxu0 0
        %1954 = vmatpush2.bf16.msra.mxu0 0
        %1955 = vmatprep.subr.bf16.mxu0 0
        %1956 = vmatpush2.bf16.msra.mxu0 0
        %1957 = vmatprep.subr.bf16.mxu0 0
        %1958 = vmatpush2.bf16.msra.mxu0 0
        %1959 = vmatprep.subr.bf16.mxu0 0
        %1960 = vmatpush2.bf16.msra.mxu0 0
        %1961 = vmatprep.subr.bf16.mxu0 0
        %1962 = vmatpush2.bf16.msra.mxu0 0
        %1963 = vmatprep.subr.bf16.mxu0 0
        %1964 = vmatpush2.bf16.msra.mxu0 0
        %1965 = vmatprep.subr.bf16.mxu0 0
        %1966 = vmatpush2.bf16.msra.mxu0 0
        %1967 = vmatprep.mubr.bf16.mxu0 0
        %1968 = vmatmul.mubr.bf16.gmra.mxu0 %v1933
        %v1969 = vpop.f32.mrf.mxu0
        %v1970 = vadd.f32 0.0, %v1969
        %v1971 = vpop.f32.mrf.mxu0
        %v1972 = vpop.f32.mrf.mxu0
        %v1973 = vadd.f32 0.0, %v1972
        %v1974 = vpop.f32.mrf.mxu0
        %1975 = vdwg.mxu0
        %v1977 = vsel %vm1885, %v1931, 0
        %1979 = vmatprep.subr.bf16.mxu0 0
        %1980 = vmatpush1.bf16.msra.mxu0 0
        %1981 = vmatprep.subr.bf16.mxu0 0
        %1982 = vmatpush1.bf16.msra.mxu0 0
        %1983 = vmatprep.subr.bf16.mxu0 0
        %1984 = vmatpush1.bf16.msra.mxu0 0
        %1985 = vmatprep.subr.bf16.mxu0 0
        %1986 = vmatpush1.bf16.msra.mxu0 0
        %1987 = vmatprep.subr.bf16.mxu0 0
        %1988 = vmatpush1.bf16.msra.mxu0 0
        %1989 = vmatprep.subr.bf16.mxu0 0
        %1990 = vmatpush1.bf16.msra.mxu0 0
        %1991 = vmatprep.subr.bf16.mxu0 0
        %1992 = vmatpush1.bf16.msra.mxu0 0
        %1993 = vmatprep.subr.bf16.mxu0 0
        %1994 = vmatpush1.bf16.msra.mxu0 %v1802
        %1995 = vmatprep.subr.bf16.mxu0 0
        %1996 = vmatpush2.bf16.msra.mxu0 0
        %1997 = vmatprep.subr.bf16.mxu0 0
        %1998 = vmatpush2.bf16.msra.mxu0 0
        %1999 = vmatprep.subr.bf16.mxu0 0
        %2000 = vmatpush2.bf16.msra.mxu0 0
        %2001 = vmatprep.subr.bf16.mxu0 0
        %2002 = vmatpush2.bf16.msra.mxu0 0
        %2003 = vmatprep.subr.bf16.mxu0 0
        %2004 = vmatpush2.bf16.msra.mxu0 0
        %2005 = vmatprep.subr.bf16.mxu0 0
        %2006 = vmatpush2.bf16.msra.mxu0 0
        %2007 = vmatprep.subr.bf16.mxu0 0
        %2008 = vmatpush2.bf16.msra.mxu0 0
        %2009 = vmatprep.subr.bf16.mxu0 0
        %2010 = vmatpush2.bf16.msra.mxu0 0
        %2011 = vmatprep.mubr.bf16.mxu0 0
        %2012 = vmatmul.mubr.bf16.gmra.mxu0 %v1977
        %v2013 = vpop.f32.mrf.mxu0
        %v2014 = vadd.f32 0.0, %v2013
        %v2015 = vpop.f32.mrf.mxu0
        %v2016 = vpop.f32.mrf.mxu0
        %v2017 = vadd.f32 0.0, %v2016
        %v2018 = vpop.f32.mrf.mxu0
        %2019 = vdwg.mxu0
        %2020 = vst [vmem:[#allocation3] sm:$0xff] %v1970
        %2021 = vst [vmem:[#allocation3 + $0x20] sm:$0xff] %v1973
        %2022 = vst [vmem:[#allocation3 + $0x40] sm:$0xff] %v2014
        %2023 = vst [vmem:[#allocation3 + $0x60] sm:$0xff] %v2017
        %v2024 = vpack.c.bf16 %v1520, %v1516
        %v2025 = vpack.c.bf16 %v1530, %v1526
        %v2026 = vpack.c.bf16 %v1626, %v1622
        %v2027 = vpack.c.bf16 %v1636, %v1632
        %v2028 = vpack.c.bf16 %v1732, %v1728
        %v2029 = vpack.c.bf16 %v1742, %v1738
        %2030 = vmatprep.subr.bf16.mxu0 0
        %2031 = vmatpush1.bf16.xpose.msra.mxu0 0
        %2032 = vmatprep.subr.bf16.mxu0 0
        %2033 = vmatpush1.bf16.xpose.msra.mxu0 0
        %2034 = vmatprep.subr.bf16.mxu0 0
        %2035 = vmatpush1.bf16.xpose.msra.mxu0 0
        %2036 = vmatprep.subr.bf16.mxu0 0
        %2037 = vmatpush1.bf16.xpose.msra.mxu0 0
        %2038 = vmatprep.subr.bf16.mxu0 0
        %2039 = vmatpush1.bf16.xpose.msra.mxu0 0
        %2040 = vmatprep.subr.bf16.mxu0 0
        %2041 = vmatpush1.bf16.xpose.msra.mxu0 0
        %2042 = vmatprep.subr.bf16.mxu0 0
        %2043 = vmatpush1.bf16.xpose.msra.mxu0 0
        %2044 = vmatprep.subr.bf16.mxu0 0
        %2045 = vmatpush1.bf16.xpose.msra.mxu0 %v2026
        %2046 = vmatprep.subr.bf16.mxu0 0
        %2047 = vmatpush2.bf16.xpose.msra.mxu0 0
        %2048 = vmatprep.subr.bf16.mxu0 0
        %2049 = vmatpush2.bf16.xpose.msra.mxu0 0
        %2050 = vmatprep.subr.bf16.mxu0 0
        %2051 = vmatpush2.bf16.xpose.msra.mxu0 0
        %2052 = vmatprep.subr.bf16.mxu0 0
        %2053 = vmatpush2.bf16.xpose.msra.mxu0 0
        %2054 = vmatprep.subr.bf16.mxu0 0
        %2055 = vmatpush2.bf16.xpose.msra.mxu0 0
        %2056 = vmatprep.subr.bf16.mxu0 0
        %2057 = vmatpush2.bf16.xpose.msra.mxu0 0
        %2058 = vmatprep.subr.bf16.mxu0 0
        %2059 = vmatpush2.bf16.xpose.msra.mxu0 0
        %2060 = vmatprep.subr.bf16.mxu0 0
        %2061 = vmatpush2.bf16.xpose.msra.mxu0 0
        %2062 = vmatprep.mubr.bf16.mxu0 0
        %2063 = vmatmul.mubr.bf16.gmra.mxu0 %v2024
        %v2064 = vpop.f32.mrf.mxu0
        %v2065 = vadd.f32 0.0, %v2064
        %v2066 = vpop.f32.mrf.mxu0
        %v2067 = vpop.f32.mrf.mxu0
        %v2068 = vadd.f32 0.0, %v2067
        %v2069 = vpop.f32.mrf.mxu0
        %2070 = vdwg.mxu0
        %2071 = vmatprep.subr.bf16.mxu0 0
        %2072 = vmatpush1.bf16.xpose.msra.mxu0 0
        %2073 = vmatprep.subr.bf16.mxu0 0
        %2074 = vmatpush1.bf16.xpose.msra.mxu0 0
        %2075 = vmatprep.subr.bf16.mxu0 0
        %2076 = vmatpush1.bf16.xpose.msra.mxu0 0
        %2077 = vmatprep.subr.bf16.mxu0 0
        %2078 = vmatpush1.bf16.xpose.msra.mxu0 0
        %2079 = vmatprep.subr.bf16.mxu0 0
        %2080 = vmatpush1.bf16.xpose.msra.mxu0 0
        %2081 = vmatprep.subr.bf16.mxu0 0
        %2082 = vmatpush1.bf16.xpose.msra.mxu0 0
        %2083 = vmatprep.subr.bf16.mxu0 0
        %2084 = vmatpush1.bf16.xpose.msra.mxu0 0
        %2085 = vmatprep.subr.bf16.mxu0 0
        %2086 = vmatpush1.bf16.xpose.msra.mxu0 %v2027
        %2087 = vmatprep.subr.bf16.mxu0 0
        %2088 = vmatpush2.bf16.xpose.msra.mxu0 0
        %2089 = vmatprep.subr.bf16.mxu0 0
        %2090 = vmatpush2.bf16.xpose.msra.mxu0 0
        %2091 = vmatprep.subr.bf16.mxu0 0
        %2092 = vmatpush2.bf16.xpose.msra.mxu0 0
        %2093 = vmatprep.subr.bf16.mxu0 0
        %2094 = vmatpush2.bf16.xpose.msra.mxu0 0
        %2095 = vmatprep.subr.bf16.mxu0 0
        %2096 = vmatpush2.bf16.xpose.msra.mxu0 0
        %2097 = vmatprep.subr.bf16.mxu0 0
        %2098 = vmatpush2.bf16.xpose.msra.mxu0 0
        %2099 = vmatprep.subr.bf16.mxu0 0
        %2100 = vmatpush2.bf16.xpose.msra.mxu0 0
        %2101 = vmatprep.subr.bf16.mxu0 0
        %2102 = vmatpush2.bf16.xpose.msra.mxu0 0
        %2103 = vmatprep.mubr.bf16.mxu0 0
        %2104 = vmatmul.mubr.bf16.gmra.mxu0 %v2025
        %v2105 = vpop.f32.mrf.mxu0
        %v2106 = vadd.f32 0.0, %v2105
        %v2107 = vpop.f32.mrf.mxu0
        %v2108 = vpop.f32.mrf.mxu0
        %v2109 = vadd.f32 0.0, %v2108
        %v2110 = vpop.f32.mrf.mxu0
        %2111 = vdwg.mxu0
        %v2112 = vsel %vm1885, %v2065, -inf
        %2113 = vmax.xlane.f32.xlu0 %v2112
        %v2114 = vpop.xlane.xlu0 %2113
        %v2115 = vsel %vm1885, %v2068, -inf
        %2116 = vmax.xlane.f32.xlu0 %v2115
        %v2117 = vpop.xlane.xlu0 %2116
        %v2118 = vsel %vm1885, %v2106, -inf
        %2119 = vmax.xlane.f32.xlu0 %v2118
        %v2120 = vpop.xlane.xlu0 %2119
        %v2121 = vsel %vm1885, %v2109, -inf
        %2122 = vmax.xlane.f32.xlu0 %v2121
        %v2123 = vpop.xlane.xlu0 %2122
        %v2124 = vsub.f32 %v2065, %v2114
        %v2125 = vsub.f32 %v2068, %v2117
        %v2126 = vsub.f32 %v2106, %v2120
        %v2127 = vsub.f32 %v2109, %v2123
        %v2128 = vmul.f32 %v2124, 1.442695
        %v2129 = vpow.pop %v2128
        %v2130 = vmul.f32 %v2125, 1.442695
        %v2131 = vpow.pop %v2130
        %v2132 = vmul.f32 %v2126, 1.442695
        %v2133 = vpow.pop %v2132
        %v2134 = vmul.f32 %v2127, 1.442695
        %v2135 = vpow.pop %v2134
        %v2136 = vsel %vm1885, %v2129, 0.0
        %2137 = vadd.xlane.f32.xlu0 %v2136
        %v2138 = vpop.xlane.xlu0 %2137
        %v2139 = vsel %vm1885, %v2131, 0.0
        %2140 = vadd.xlane.f32.xlu0 %v2139
        %v2141 = vpop.xlane.xlu0 %2140
        %v2142 = vsel %vm1885, %v2133, 0.0
        %2143 = vadd.xlane.f32.xlu0 %v2142
        %v2144 = vpop.xlane.xlu0 %2143
        %v2145 = vsel %vm1885, %v2135, 0.0
        %2146 = vadd.xlane.f32.xlu0 %v2145
        %v2147 = vpop.xlane.xlu0 %2146
        %v2148 = vrcp.pop %v2138
        %v2149 = vrcp.pop %v2141
        %v2150 = vrcp.pop %v2144
        %v2151 = vrcp.pop %v2147
        %v2152 = vmul.f32 %v2129, %v2148
        %v2153 = vmul.f32 %v2131, %v2149
        %v2154 = vmul.f32 %v2133, %v2150
        %v2155 = vmul.f32 %v2135, %v2151
        %v2156 = vpack.c.bf16 %v2153, %v2152
        %v2157 = vpack.c.bf16 %v2155, %v2154
        %v2159 = vsel %vm1885, %v2156, 0
        %2161 = vmatprep.subr.bf16.mxu0 0
        %2162 = vmatpush1.bf16.msra.mxu0 0
        %2163 = vmatprep.subr.bf16.mxu0 0
        %2164 = vmatpush1.bf16.msra.mxu0 0
        %2165 = vmatprep.subr.bf16.mxu0 0
        %2166 = vmatpush1.bf16.msra.mxu0 0
        %2167 = vmatprep.subr.bf16.mxu0 0
        %2168 = vmatpush1.bf16.msra.mxu0 0
        %2169 = vmatprep.subr.bf16.mxu0 0
        %2170 = vmatpush1.bf16.msra.mxu0 0
        %2171 = vmatprep.subr.bf16.mxu0 0
        %2172 = vmatpush1.bf16.msra.mxu0 0
        %2173 = vmatprep.subr.bf16.mxu0 0
        %2174 = vmatpush1.bf16.msra.mxu0 0
        %2175 = vmatprep.subr.bf16.mxu0 0
        %2176 = vmatpush1.bf16.msra.mxu0 %v2028
        %2177 = vmatprep.subr.bf16.mxu0 0
        %2178 = vmatpush2.bf16.msra.mxu0 0
        %2179 = vmatprep.subr.bf16.mxu0 0
        %2180 = vmatpush2.bf16.msra.mxu0 0
        %2181 = vmatprep.subr.bf16.mxu0 0
        %2182 = vmatpush2.bf16.msra.mxu0 0
        %2183 = vmatprep.subr.bf16.mxu0 0
        %2184 = vmatpush2.bf16.msra.mxu0 0
        %2185 = vmatprep.subr.bf16.mxu0 0
        %2186 = vmatpush2.bf16.msra.mxu0 0
        %2187 = vmatprep.subr.bf16.mxu0 0
        %2188 = vmatpush2.bf16.msra.mxu0 0
        %2189 = vmatprep.subr.bf16.mxu0 0
        %2190 = vmatpush2.bf16.msra.mxu0 0
        %2191 = vmatprep.subr.bf16.mxu0 0
        %2192 = vmatpush2.bf16.msra.mxu0 0
        %2193 = vmatprep.mubr.bf16.mxu0 0
        %2194 = vmatmul.mubr.bf16.gmra.mxu0 %v2159
        %v2195 = vpop.f32.mrf.mxu0
        %v2196 = vadd.f32 0.0, %v2195
        %v2197 = vpop.f32.mrf.mxu0
        %v2198 = vpop.f32.mrf.mxu0
        %v2199 = vadd.f32 0.0, %v2198
        %v2200 = vpop.f32.mrf.mxu0
        %2201 = vdwg.mxu0
        %v2203 = vsel %vm1885, %v2157, 0
        %2205 = vmatprep.subr.bf16.mxu0 0
        %2206 = vmatpush1.bf16.msra.mxu0 0
        %2207 = vmatprep.subr.bf16.mxu0 0
        %2208 = vmatpush1.bf16.msra.mxu0 0
        %2209 = vmatprep.subr.bf16.mxu0 0
        %2210 = vmatpush1.bf16.msra.mxu0 0
        %2211 = vmatprep.subr.bf16.mxu0 0
        %2212 = vmatpush1.bf16.msra.mxu0 0
        %2213 = vmatprep.subr.bf16.mxu0 0
        %2214 = vmatpush1.bf16.msra.mxu0 0
        %2215 = vmatprep.subr.bf16.mxu0 0
        %2216 = vmatpush1.bf16.msra.mxu0 0
        %2217 = vmatprep.subr.bf16.mxu0 0
        %2218 = vmatpush1.bf16.msra.mxu0 0
        %2219 = vmatprep.subr.bf16.mxu0 0
        %2220 = vmatpush1.bf16.msra.mxu0 %v2029
        %2221 = vmatprep.subr.bf16.mxu0 0
        %2222 = vmatpush2.bf16.msra.mxu0 0
        %2223 = vmatprep.subr.bf16.mxu0 0
        %2224 = vmatpush2.bf16.msra.mxu0 0
        %2225 = vmatprep.subr.bf16.mxu0 0
        %2226 = vmatpush2.bf16.msra.mxu0 0
        %2227 = vmatprep.subr.bf16.mxu0 0
        %2228 = vmatpush2.bf16.msra.mxu0 0
        %2229 = vmatprep.subr.bf16.mxu0 0
        %2230 = vmatpush2.bf16.msra.mxu0 0
        %2231 = vmatprep.subr.bf16.mxu0 0
        %2232 = vmatpush2.bf16.msra.mxu0 0
        %2233 = vmatprep.subr.bf16.mxu0 0
        %2234 = vmatpush2.bf16.msra.mxu0 0
        %2235 = vmatprep.subr.bf16.mxu0 0
        %2236 = vmatpush2.bf16.msra.mxu0 0
        %2237 = vmatprep.mubr.bf16.mxu0 0
        %2238 = vmatmul.mubr.bf16.gmra.mxu0 %v2203
        %v2239 = vpop.f32.mrf.mxu0
        %v2240 = vadd.f32 0.0, %v2239
        %v2241 = vpop.f32.mrf.mxu0
        %v2242 = vpop.f32.mrf.mxu0
        %v2243 = vadd.f32 0.0, %v2242
        %v2244 = vpop.f32.mrf.mxu0
        %2245 = vdwg.mxu0
        %2246 = vst [vmem:[#allocation3 + $0x8] sm:$0xff] %v2196
        %2247 = vst [vmem:[#allocation3 + $0x28] sm:$0xff] %v2199
        %2248 = vst [vmem:[#allocation3 + $0x48] sm:$0xff] %v2240
        %2249 = vst [vmem:[#allocation3 + $0x68] sm:$0xff] %v2243
        %v2250 = vpack.c.bf16 %v1571, %v1567
        %v2251 = vpack.c.bf16 %v1581, %v1577
        %v2252 = vpack.c.bf16 %v1677, %v1673
        %v2253 = vpack.c.bf16 %v1687, %v1683
        %v2254 = vpack.c.bf16 %v1783, %v1779
        %v2255 = vpack.c.bf16 %v1793, %v1789
        %2256 = vmatprep.subr.bf16.mxu0 0
        %2257 = vmatpush1.bf16.xpose.msra.mxu0 0
        %2258 = vmatprep.subr.bf16.mxu0 0
        %2259 = vmatpush1.bf16.xpose.msra.mxu0 0
        %2260 = vmatprep.subr.bf16.mxu0 0
        %2261 = vmatpush1.bf16.xpose.msra.mxu0 0
        %2262 = vmatprep.subr.bf16.mxu0 0
        %2263 = vmatpush1.bf16.xpose.msra.mxu0 0
        %2264 = vmatprep.subr.bf16.mxu0 0
        %2265 = vmatpush1.bf16.xpose.msra.mxu0 0
        %2266 = vmatprep.subr.bf16.mxu0 0
        %2267 = vmatpush1.bf16.xpose.msra.mxu0 0
        %2268 = vmatprep.subr.bf16.mxu0 0
        %2269 = vmatpush1.bf16.xpose.msra.mxu0 0
        %2270 = vmatprep.subr.bf16.mxu0 0
        %2271 = vmatpush1.bf16.xpose.msra.mxu0 %v2252
        %2272 = vmatprep.subr.bf16.mxu0 0
        %2273 = vmatpush2.bf16.xpose.msra.mxu0 0
        %2274 = vmatprep.subr.bf16.mxu0 0
        %2275 = vmatpush2.bf16.xpose.msra.mxu0 0
        %2276 = vmatprep.subr.bf16.mxu0 0
        %2277 = vmatpush2.bf16.xpose.msra.mxu0 0
        %2278 = vmatprep.subr.bf16.mxu0 0
        %2279 = vmatpush2.bf16.xpose.msra.mxu0 0
        %2280 = vmatprep.subr.bf16.mxu0 0
        %2281 = vmatpush2.bf16.xpose.msra.mxu0 0
        %2282 = vmatprep.subr.bf16.mxu0 0
        %2283 = vmatpush2.bf16.xpose.msra.mxu0 0
        %2284 = vmatprep.subr.bf16.mxu0 0
        %2285 = vmatpush2.bf16.xpose.msra.mxu0 0
        %2286 = vmatprep.subr.bf16.mxu0 0
        %2287 = vmatpush2.bf16.xpose.msra.mxu0 0
        %2288 = vmatprep.mubr.bf16.mxu0 0
        %2289 = vmatmul.mubr.bf16.gmra.mxu0 %v2250
        %v2290 = vpop.f32.mrf.mxu0
        %v2291 = vadd.f32 0.0, %v2290
        %v2292 = vpop.f32.mrf.mxu0
        %v2293 = vpop.f32.mrf.mxu0
        %v2294 = vadd.f32 0.0, %v2293
        %v2295 = vpop.f32.mrf.mxu0
        %2296 = vdwg.mxu0
        %2297 = vmatprep.subr.bf16.mxu0 0
        %2298 = vmatpush1.bf16.xpose.msra.mxu0 0
        %2299 = vmatprep.subr.bf16.mxu0 0
        %2300 = vmatpush1.bf16.xpose.msra.mxu0 0
        %2301 = vmatprep.subr.bf16.mxu0 0
        %2302 = vmatpush1.bf16.xpose.msra.mxu0 0
        %2303 = vmatprep.subr.bf16.mxu0 0
        %2304 = vmatpush1.bf16.xpose.msra.mxu0 0
        %2305 = vmatprep.subr.bf16.mxu0 0
        %2306 = vmatpush1.bf16.xpose.msra.mxu0 0
        %2307 = vmatprep.subr.bf16.mxu0 0
        %2308 = vmatpush1.bf16.xpose.msra.mxu0 0
        %2309 = vmatprep.subr.bf16.mxu0 0
        %2310 = vmatpush1.bf16.xpose.msra.mxu0 0
        %2311 = vmatprep.subr.bf16.mxu0 0
        %2312 = vmatpush1.bf16.xpose.msra.mxu0 %v2253
        %2313 = vmatprep.subr.bf16.mxu0 0
        %2314 = vmatpush2.bf16.xpose.msra.mxu0 0
        %2315 = vmatprep.subr.bf16.mxu0 0
        %2316 = vmatpush2.bf16.xpose.msra.mxu0 0
        %2317 = vmatprep.subr.bf16.mxu0 0
        %2318 = vmatpush2.bf16.xpose.msra.mxu0 0
        %2319 = vmatprep.subr.bf16.mxu0 0
        %2320 = vmatpush2.bf16.xpose.msra.mxu0 0
        %2321 = vmatprep.subr.bf16.mxu0 0
        %2322 = vmatpush2.bf16.xpose.msra.mxu0 0
        %2323 = vmatprep.subr.bf16.mxu0 0
        %2324 = vmatpush2.bf16.xpose.msra.mxu0 0
        %2325 = vmatprep.subr.bf16.mxu0 0
        %2326 = vmatpush2.bf16.xpose.msra.mxu0 0
        %2327 = vmatprep.subr.bf16.mxu0 0
        %2328 = vmatpush2.bf16.xpose.msra.mxu0 0
        %2329 = vmatprep.mubr.bf16.mxu0 0
        %2330 = vmatmul.mubr.bf16.gmra.mxu0 %v2251
        %v2331 = vpop.f32.mrf.mxu0
        %v2332 = vadd.f32 0.0, %v2331
        %v2333 = vpop.f32.mrf.mxu0
        %v2334 = vpop.f32.mrf.mxu0
        %v2335 = vadd.f32 0.0, %v2334
        %v2336 = vpop.f32.mrf.mxu0
        %2337 = vdwg.mxu0
        %v2338 = vsel %vm1885, %v2291, -inf
        %2339 = vmax.xlane.f32.xlu0 %v2338
        %v2340 = vpop.xlane.xlu0 %2339
        %v2341 = vsel %vm1885, %v2294, -inf
        %2342 = vmax.xlane.f32.xlu0 %v2341
        %v2343 = vpop.xlane.xlu0 %2342
        %v2344 = vsel %vm1885, %v2332, -inf
        %2345 = vmax.xlane.f32.xlu0 %v2344
        %v2346 = vpop.xlane.xlu0 %2345
        %v2347 = vsel %vm1885, %v2335, -inf
        %2348 = vmax.xlane.f32.xlu0 %v2347
        %v2349 = vpop.xlane.xlu0 %2348
        %v2350 = vsub.f32 %v2291, %v2340
        %v2351 = vsub.f32 %v2294, %v2343
        %v2352 = vsub.f32 %v2332, %v2346
        %v2353 = vsub.f32 %v2335, %v2349
        %v2354 = vmul.f32 %v2350, 1.442695
        %v2355 = vpow.pop %v2354
        %v2356 = vmul.f32 %v2351, 1.442695
        %v2357 = vpow.pop %v2356
        %v2358 = vmul.f32 %v2352, 1.442695
        %v2359 = vpow.pop %v2358
        %v2360 = vmul.f32 %v2353, 1.442695
        %v2361 = vpow.pop %v2360
        %v2362 = vsel %vm1885, %v2355, 0.0
        %2363 = vadd.xlane.f32.xlu0 %v2362
        %v2364 = vpop.xlane.xlu0 %2363
        %v2365 = vsel %vm1885, %v2357, 0.0
        %2366 = vadd.xlane.f32.xlu0 %v2365
        %v2367 = vpop.xlane.xlu0 %2366
        %v2368 = vsel %vm1885, %v2359, 0.0
        %2369 = vadd.xlane.f32.xlu0 %v2368
        %v2370 = vpop.xlane.xlu0 %2369
        %v2371 = vsel %vm1885, %v2361, 0.0
        %2372 = vadd.xlane.f32.xlu0 %v2371
        %v2373 = vpop.xlane.xlu0 %2372
        %v2374 = vrcp.pop %v2364
        %v2375 = vrcp.pop %v2367
        %v2376 = vrcp.pop %v2370
        %v2377 = vrcp.pop %v2373
        %v2378 = vmul.f32 %v2355, %v2374
        %v2379 = vmul.f32 %v2357, %v2375
        %v2380 = vmul.f32 %v2359, %v2376
        %v2381 = vmul.f32 %v2361, %v2377
        %v2382 = vpack.c.bf16 %v2379, %v2378
        %v2383 = vpack.c.bf16 %v2381, %v2380
        %v2385 = vsel %vm1885, %v2382, 0
        %2387 = vmatprep.subr.bf16.mxu0 0
        %2388 = vmatpush1.bf16.msra.mxu0 0
        %2389 = vmatprep.subr.bf16.mxu0 0
        %2390 = vmatpush1.bf16.msra.mxu0 0
        %2391 = vmatprep.subr.bf16.mxu0 0
        %2392 = vmatpush1.bf16.msra.mxu0 0
        %2393 = vmatprep.subr.bf16.mxu0 0
        %2394 = vmatpush1.bf16.msra.mxu0 0
        %2395 = vmatprep.subr.bf16.mxu0 0
        %2396 = vmatpush1.bf16.msra.mxu0 0
        %2397 = vmatprep.subr.bf16.mxu0 0
        %2398 = vmatpush1.bf16.msra.mxu0 0
        %2399 = vmatprep.subr.bf16.mxu0 0
        %2400 = vmatpush1.bf16.msra.mxu0 0
        %2401 = vmatprep.subr.bf16.mxu0 0
        %2402 = vmatpush1.bf16.msra.mxu0 %v2254
        %2403 = vmatprep.subr.bf16.mxu0 0
        %2404 = vmatpush2.bf16.msra.mxu0 0
        %2405 = vmatprep.subr.bf16.mxu0 0
        %2406 = vmatpush2.bf16.msra.mxu0 0
        %2407 = vmatprep.subr.bf16.mxu0 0
        %2408 = vmatpush2.bf16.msra.mxu0 0
        %2409 = vmatprep.subr.bf16.mxu0 0
        %2410 = vmatpush2.bf16.msra.mxu0 0
        %2411 = vmatprep.subr.bf16.mxu0 0
        %2412 = vmatpush2.bf16.msra.mxu0 0
        %2413 = vmatprep.subr.bf16.mxu0 0
        %2414 = vmatpush2.bf16.msra.mxu0 0
        %2415 = vmatprep.subr.bf16.mxu0 0
        %2416 = vmatpush2.bf16.msra.mxu0 0
        %2417 = vmatprep.subr.bf16.mxu0 0
        %2418 = vmatpush2.bf16.msra.mxu0 0
        %2419 = vmatprep.mubr.bf16.mxu0 0
        %2420 = vmatmul.mubr.bf16.gmra.mxu0 %v2385
        %v2421 = vpop.f32.mrf.mxu0
        %v2422 = vadd.f32 0.0, %v2421
        %v2423 = vpop.f32.mrf.mxu0
        %v2424 = vpop.f32.mrf.mxu0
        %v2425 = vadd.f32 0.0, %v2424
        %v2426 = vpop.f32.mrf.mxu0
        %2427 = vdwg.mxu0
        %v2429 = vsel %vm1885, %v2383, 0
        %2431 = vmatprep.subr.bf16.mxu0 0
        %2432 = vmatpush1.bf16.msra.mxu0 0
        %2433 = vmatprep.subr.bf16.mxu0 0
        %2434 = vmatpush1.bf16.msra.mxu0 0
        %2435 = vmatprep.subr.bf16.mxu0 0
        %2436 = vmatpush1.bf16.msra.mxu0 0
        %2437 = vmatprep.subr.bf16.mxu0 0
        %2438 = vmatpush1.bf16.msra.mxu0 0
        %2439 = vmatprep.subr.bf16.mxu0 0
        %2440 = vmatpush1.bf16.msra.mxu0 0
        %2441 = vmatprep.subr.bf16.mxu0 0
        %2442 = vmatpush1.bf16.msra.mxu0 0
        %2443 = vmatprep.subr.bf16.mxu0 0
        %2444 = vmatpush1.bf16.msra.mxu0 0
        %2445 = vmatprep.subr.bf16.mxu0 0
        %2446 = vmatpush1.bf16.msra.mxu0 %v2255
        %2447 = vmatprep.subr.bf16.mxu0 0
        %2448 = vmatpush2.bf16.msra.mxu0 0
        %2449 = vmatprep.subr.bf16.mxu0 0
        %2450 = vmatpush2.bf16.msra.mxu0 0
        %2451 = vmatprep.subr.bf16.mxu0 0
        %2452 = vmatpush2.bf16.msra.mxu0 0
        %2453 = vmatprep.subr.bf16.mxu0 0
        %2454 = vmatpush2.bf16.msra.mxu0 0
        %2455 = vmatprep.subr.bf16.mxu0 0
        %2456 = vmatpush2.bf16.msra.mxu0 0
        %2457 = vmatprep.subr.bf16.mxu0 0
        %2458 = vmatpush2.bf16.msra.mxu0 0
        %2459 = vmatprep.subr.bf16.mxu0 0
        %2460 = vmatpush2.bf16.msra.mxu0 0
        %2461 = vmatprep.subr.bf16.mxu0 0
        %2462 = vmatpush2.bf16.msra.mxu0 0
        %2463 = vmatprep.mubr.bf16.mxu0 0
        %2464 = vmatmul.mubr.bf16.gmra.mxu0 %v2429
        %v2465 = vpop.f32.mrf.mxu0
        %v2466 = vadd.f32 0.0, %v2465
        %v2467 = vpop.f32.mrf.mxu0
        %v2468 = vpop.f32.mrf.mxu0
        %v2469 = vadd.f32 0.0, %v2468
        %v2470 = vpop.f32.mrf.mxu0
        %2471 = vdwg.mxu0
        %2472 = vst [vmem:[#allocation3 + $0x10] sm:$0xff] %v2422
        %2473 = vst [vmem:[#allocation3 + $0x30] sm:$0xff] %v2425
        %2474 = vst [vmem:[#allocation3 + $0x50] sm:$0xff] %v2466
        %2475 = vst [vmem:[#allocation3 + $0x70] sm:$0xff] %v2469
        %v2476 = vpack.c.bf16 %v1573, %v1569
        %v2477 = vpack.c.bf16 %v1583, %v1579
        %v2478 = vpack.c.bf16 %v1679, %v1675
        %v2479 = vpack.c.bf16 %v1689, %v1685
        %v2480 = vpack.c.bf16 %v1785, %v1781
        %v2481 = vpack.c.bf16 %v1795, %v1791
        %2482 = vmatprep.subr.bf16.mxu0 0
        %2483 = vmatpush1.bf16.xpose.msra.mxu0 0
        %2484 = vmatprep.subr.bf16.mxu0 0
        %2485 = vmatpush1.bf16.xpose.msra.mxu0 0
        %2486 = vmatprep.subr.bf16.mxu0 0
        %2487 = vmatpush1.bf16.xpose.msra.mxu0 0
        %2488 = vmatprep.subr.bf16.mxu0 0
        %2489 = vmatpush1.bf16.xpose.msra.mxu0 0
        %2490 = vmatprep.subr.bf16.mxu0 0
        %2491 = vmatpush1.bf16.xpose.msra.mxu0 0
        %2492 = vmatprep.subr.bf16.mxu0 0
        %2493 = vmatpush1.bf16.xpose.msra.mxu0 0
        %2494 = vmatprep.subr.bf16.mxu0 0
        %2495 = vmatpush1.bf16.xpose.msra.mxu0 0
        %2496 = vmatprep.subr.bf16.mxu0 0
        %2497 = vmatpush1.bf16.xpose.msra.mxu0 %v2478
        %2498 = vmatprep.subr.bf16.mxu0 0
        %2499 = vmatpush2.bf16.xpose.msra.mxu0 0
        %2500 = vmatprep.subr.bf16.mxu0 0
        %2501 = vmatpush2.bf16.xpose.msra.mxu0 0
        %2502 = vmatprep.subr.bf16.mxu0 0
        %2503 = vmatpush2.bf16.xpose.msra.mxu0 0
        %2504 = vmatprep.subr.bf16.mxu0 0
        %2505 = vmatpush2.bf16.xpose.msra.mxu0 0
        %2506 = vmatprep.subr.bf16.mxu0 0
        %2507 = vmatpush2.bf16.xpose.msra.mxu0 0
        %2508 = vmatprep.subr.bf16.mxu0 0
        %2509 = vmatpush2.bf16.xpose.msra.mxu0 0
        %2510 = vmatprep.subr.bf16.mxu0 0
        %2511 = vmatpush2.bf16.xpose.msra.mxu0 0
        %2512 = vmatprep.subr.bf16.mxu0 0
        %2513 = vmatpush2.bf16.xpose.msra.mxu0 0
        %2514 = vmatprep.mubr.bf16.mxu0 0
        %2515 = vmatmul.mubr.bf16.gmra.mxu0 %v2476
        %v2516 = vpop.f32.mrf.mxu0
        %v2517 = vadd.f32 0.0, %v2516
        %v2518 = vpop.f32.mrf.mxu0
        %v2519 = vpop.f32.mrf.mxu0
        %v2520 = vadd.f32 0.0, %v2519
        %v2521 = vpop.f32.mrf.mxu0
        %2522 = vdwg.mxu0
        %2523 = vmatprep.subr.bf16.mxu0 0
        %2524 = vmatpush1.bf16.xpose.msra.mxu0 0
        %2525 = vmatprep.subr.bf16.mxu0 0
        %2526 = vmatpush1.bf16.xpose.msra.mxu0 0
        %2527 = vmatprep.subr.bf16.mxu0 0
        %2528 = vmatpush1.bf16.xpose.msra.mxu0 0
        %2529 = vmatprep.subr.bf16.mxu0 0
        %2530 = vmatpush1.bf16.xpose.msra.mxu0 0
        %2531 = vmatprep.subr.bf16.mxu0 0
        %2532 = vmatpush1.bf16.xpose.msra.mxu0 0
        %2533 = vmatprep.subr.bf16.mxu0 0
        %2534 = vmatpush1.bf16.xpose.msra.mxu0 0
        %2535 = vmatprep.subr.bf16.mxu0 0
        %2536 = vmatpush1.bf16.xpose.msra.mxu0 0
        %2537 = vmatprep.subr.bf16.mxu0 0
        %2538 = vmatpush1.bf16.xpose.msra.mxu0 %v2479
        %2539 = vmatprep.subr.bf16.mxu0 0
        %2540 = vmatpush2.bf16.xpose.msra.mxu0 0
        %2541 = vmatprep.subr.bf16.mxu0 0
        %2542 = vmatpush2.bf16.xpose.msra.mxu0 0
        %2543 = vmatprep.subr.bf16.mxu0 0
        %2544 = vmatpush2.bf16.xpose.msra.mxu0 0
        %2545 = vmatprep.subr.bf16.mxu0 0
        %2546 = vmatpush2.bf16.xpose.msra.mxu0 0
        %2547 = vmatprep.subr.bf16.mxu0 0
        %2548 = vmatpush2.bf16.xpose.msra.mxu0 0
        %2549 = vmatprep.subr.bf16.mxu0 0
        %2550 = vmatpush2.bf16.xpose.msra.mxu0 0
        %2551 = vmatprep.subr.bf16.mxu0 0
        %2552 = vmatpush2.bf16.xpose.msra.mxu0 0
        %2553 = vmatprep.subr.bf16.mxu0 0
        %2554 = vmatpush2.bf16.xpose.msra.mxu0 0
        %2555 = vmatprep.mubr.bf16.mxu0 0
        %2556 = vmatmul.mubr.bf16.gmra.mxu0 %v2477
        %v2557 = vpop.f32.mrf.mxu0
        %v2558 = vadd.f32 0.0, %v2557
        %v2559 = vpop.f32.mrf.mxu0
        %v2560 = vpop.f32.mrf.mxu0
        %v2561 = vadd.f32 0.0, %v2560
        %v2562 = vpop.f32.mrf.mxu0
        %2563 = vdwg.mxu0
        %v2564 = vsel %vm1885, %v2517, -inf
        %2565 = vmax.xlane.f32.xlu0 %v2564
        %v2566 = vpop.xlane.xlu0 %2565
        %v2567 = vsel %vm1885, %v2520, -inf
        %2568 = vmax.xlane.f32.xlu0 %v2567
        %v2569 = vpop.xlane.xlu0 %2568
        %v2570 = vsel %vm1885, %v2558, -inf
        %2571 = vmax.xlane.f32.xlu0 %v2570
        %v2572 = vpop.xlane.xlu0 %2571
        %v2573 = vsel %vm1885, %v2561, -inf
        %2574 = vmax.xlane.f32.xlu0 %v2573
        %v2575 = vpop.xlane.xlu0 %2574
        %v2576 = vsub.f32 %v2517, %v2566
        %v2577 = vsub.f32 %v2520, %v2569
        %v2578 = vsub.f32 %v2558, %v2572
        %v2579 = vsub.f32 %v2561, %v2575
        %v2580 = vmul.f32 %v2576, 1.442695
        %v2581 = vpow.pop %v2580
        %v2582 = vmul.f32 %v2577, 1.442695
        %v2583 = vpow.pop %v2582
        %v2584 = vmul.f32 %v2578, 1.442695
        %v2585 = vpow.pop %v2584
        %v2586 = vmul.f32 %v2579, 1.442695
        %v2587 = vpow.pop %v2586
        %v2588 = vsel %vm1885, %v2581, 0.0
        %2589 = vadd.xlane.f32.xlu0 %v2588
        %v2590 = vpop.xlane.xlu0 %2589
        %v2591 = vsel %vm1885, %v2583, 0.0
        %2592 = vadd.xlane.f32.xlu0 %v2591
        %v2593 = vpop.xlane.xlu0 %2592
        %v2594 = vsel %vm1885, %v2585, 0.0
        %2595 = vadd.xlane.f32.xlu0 %v2594
        %v2596 = vpop.xlane.xlu0 %2595
        %v2597 = vsel %vm1885, %v2587, 0.0
        %2598 = vadd.xlane.f32.xlu0 %v2597
        %v2599 = vpop.xlane.xlu0 %2598
        %v2600 = vrcp.pop %v2590
        %v2601 = vrcp.pop %v2593
        %v2602 = vrcp.pop %v2596
        %v2603 = vrcp.pop %v2599
        %v2604 = vmul.f32 %v2581, %v2600
        %v2605 = vmul.f32 %v2583, %v2601
        %v2606 = vmul.f32 %v2585, %v2602
        %v2607 = vmul.f32 %v2587, %v2603
        %v2608 = vpack.c.bf16 %v2605, %v2604
        %v2609 = vpack.c.bf16 %v2607, %v2606
        %v2611 = vsel %vm1885, %v2608, 0
        %2613 = vmatprep.subr.bf16.mxu0 0
        %2614 = vmatpush1.bf16.msra.mxu0 0
        %2615 = vmatprep.subr.bf16.mxu0 0
        %2616 = vmatpush1.bf16.msra.mxu0 0
        %2617 = vmatprep.subr.bf16.mxu0 0
        %2618 = vmatpush1.bf16.msra.mxu0 0
        %2619 = vmatprep.subr.bf16.mxu0 0
        %2620 = vmatpush1.bf16.msra.mxu0 0
        %2621 = vmatprep.subr.bf16.mxu0 0
        %2622 = vmatpush1.bf16.msra.mxu0 0
        %2623 = vmatprep.subr.bf16.mxu0 0
        %2624 = vmatpush1.bf16.msra.mxu0 0
        %2625 = vmatprep.subr.bf16.mxu0 0
        %2626 = vmatpush1.bf16.msra.mxu0 0
        %2627 = vmatprep.subr.bf16.mxu0 0
        %2628 = vmatpush1.bf16.msra.mxu0 %v2480
        %2629 = vmatprep.subr.bf16.mxu0 0
        %2630 = vmatpush2.bf16.msra.mxu0 0
        %2631 = vmatprep.subr.bf16.mxu0 0
        %2632 = vmatpush2.bf16.msra.mxu0 0
        %2633 = vmatprep.subr.bf16.mxu0 0
        %2634 = vmatpush2.bf16.msra.mxu0 0
        %2635 = vmatprep.subr.bf16.mxu0 0
        %2636 = vmatpush2.bf16.msra.mxu0 0
        %2637 = vmatprep.subr.bf16.mxu0 0
        %2638 = vmatpush2.bf16.msra.mxu0 0
        %2639 = vmatprep.subr.bf16.mxu0 0
        %2640 = vmatpush2.bf16.msra.mxu0 0
        %2641 = vmatprep.subr.bf16.mxu0 0
        %2642 = vmatpush2.bf16.msra.mxu0 0
        %2643 = vmatprep.subr.bf16.mxu0 0
        %2644 = vmatpush2.bf16.msra.mxu0 0
        %2645 = vmatprep.mubr.bf16.mxu0 0
        %2646 = vmatmul.mubr.bf16.gmra.mxu0 %v2611
        %v2647 = vpop.f32.mrf.mxu0
        %v2648 = vadd.f32 0.0, %v2647
        %v2649 = vpop.f32.mrf.mxu0
        %v2650 = vpop.f32.mrf.mxu0
        %v2651 = vadd.f32 0.0, %v2650
        %v2652 = vpop.f32.mrf.mxu0
        %2653 = vdwg.mxu0
        %v2655 = vsel %vm1885, %v2609, 0
        %2657 = vmatprep.subr.bf16.mxu0 0
        %2658 = vmatpush1.bf16.msra.mxu0 0
        %2659 = vmatprep.subr.bf16.mxu0 0
        %2660 = vmatpush1.bf16.msra.mxu0 0
        %2661 = vmatprep.subr.bf16.mxu0 0
        %2662 = vmatpush1.bf16.msra.mxu0 0
        %2663 = vmatprep.subr.bf16.mxu0 0
        %2664 = vmatpush1.bf16.msra.mxu0 0
        %2665 = vmatprep.subr.bf16.mxu0 0
        %2666 = vmatpush1.bf16.msra.mxu0 0
        %2667 = vmatprep.subr.bf16.mxu0 0
        %2668 = vmatpush1.bf16.msra.mxu0 0
        %2669 = vmatprep.subr.bf16.mxu0 0
        %2670 = vmatpush1.bf16.msra.mxu0 0
        %2671 = vmatprep.subr.bf16.mxu0 0
        %2672 = vmatpush1.bf16.msra.mxu0 %v2481
        %2673 = vmatprep.subr.bf16.mxu0 0
        %2674 = vmatpush2.bf16.msra.mxu0 0
        %2675 = vmatprep.subr.bf16.mxu0 0
        %2676 = vmatpush2.bf16.msra.mxu0 0
        %2677 = vmatprep.subr.bf16.mxu0 0
        %2678 = vmatpush2.bf16.msra.mxu0 0
        %2679 = vmatprep.subr.bf16.mxu0 0
        %2680 = vmatpush2.bf16.msra.mxu0 0
        %2681 = vmatprep.subr.bf16.mxu0 0
        %2682 = vmatpush2.bf16.msra.mxu0 0
        %2683 = vmatprep.subr.bf16.mxu0 0
        %2684 = vmatpush2.bf16.msra.mxu0 0
        %2685 = vmatprep.subr.bf16.mxu0 0
        %2686 = vmatpush2.bf16.msra.mxu0 0
        %2687 = vmatprep.subr.bf16.mxu0 0
        %2688 = vmatpush2.bf16.msra.mxu0 0
        %2689 = vmatprep.mubr.bf16.mxu0 0
        %2690 = vmatmul.mubr.bf16.gmra.mxu0 %v2655
        %v2691 = vpop.f32.mrf.mxu0
        %v2692 = vadd.f32 0.0, %v2691
        %v2693 = vpop.f32.mrf.mxu0
        %v2694 = vpop.f32.mrf.mxu0
        %v2695 = vadd.f32 0.0, %v2694
        %v2696 = vpop.f32.mrf.mxu0
        %2697 = vdwg.mxu0
        %2698 = vst [vmem:[#allocation3 + $0x18] sm:$0xff] %v2648
        %2699 = vst [vmem:[#allocation3 + $0x38] sm:$0xff] %v2651
        %2700 = vst [vmem:[#allocation3 + $0x58] sm:$0xff] %v2692
        %2701 = vst [vmem:[#allocation3 + $0x78] sm:$0xff] %v2695
        %v2702 = vld [vmem:[#allocation3] sm:$0xff]
        %v2703 = vld [vmem:[#allocation3 + $0x8] sm:$0xff]
        %v2704 = vld [vmem:[#allocation3 + $0x10] sm:$0xff]
        %v2705 = vld [vmem:[#allocation3 + $0x18] sm:$0xff]
        %v2706 = vld [vmem:[#allocation3 + $0x20] sm:$0xff]
        %v2707 = vld [vmem:[#allocation3 + $0x28] sm:$0xff]
        %v2708 = vld [vmem:[#allocation3 + $0x30] sm:$0xff]
        %v2709 = vld [vmem:[#allocation3 + $0x38] sm:$0xff]
        %v2710 = vld [vmem:[#allocation3 + $0x40] sm:$0xff]
        %v2711 = vld [vmem:[#allocation3 + $0x48] sm:$0xff]
        %v2712 = vld [vmem:[#allocation3 + $0x50] sm:$0xff]
        %v2713 = vld [vmem:[#allocation3 + $0x58] sm:$0xff]
        %v2714 = vld [vmem:[#allocation3 + $0x60] sm:$0xff]
        %v2715 = vld [vmem:[#allocation3 + $0x68] sm:$0xff]
        %v2716 = vld [vmem:[#allocation3 + $0x70] sm:$0xff]
        %v2717 = vld [vmem:[#allocation3 + $0x78] sm:$0xff]
        %v2718 = vpack.c.bf16 %v2706, %v2702
        %v2719 = vpack.c.bf16 %v2707, %v2703
        %v2720 = vpack.c.bf16 %v2708, %v2704
        %v2721 = vpack.c.bf16 %v2709, %v2705
        %v2722 = vpack.c.bf16 %v2714, %v2710
        %v2723 = vpack.c.bf16 %v2715, %v2711
        %v2724 = vpack.c.bf16 %v2716, %v2712
        %v2725 = vpack.c.bf16 %v2717, %v2713
        %v2726 = vld [vmem:[%s621] sm:$0xf]
        %v2727 = vld [vmem:[%s621 + $0x4] sm:$0xf]
        %v2728 = vld [vmem:[%s621 + $0x8] sm:$0xf]
        %v2729 = vld [vmem:[%s621 + $0xc] sm:$0xf]
        %v2730 = vld [vmem:[%s621 + $0x10] sm:$0xf]
        %v2731 = vld [vmem:[%s621 + $0x14] sm:$0xf]
        %v2732 = vld [vmem:[%s621 + $0x18] sm:$0xf]
        %v2733 = vld [vmem:[%s621 + $0x1c] sm:$0xf]
        %v2734 = vld [vmem:[%s621 + $0x20] sm:$0xf]
        %v2735 = vld [vmem:[%s621 + $0x24] sm:$0xf]
        %v2736 = vld [vmem:[%s621 + $0x28] sm:$0xf]
        %v2737 = vld [vmem:[%s621 + $0x2c] sm:$0xf]
        %v2738 = vld [vmem:[%s621 + $0x30] sm:$0xf]
        %v2739 = vld [vmem:[%s621 + $0x34] sm:$0xf]
        %v2740 = vld [vmem:[%s621 + $0x38] sm:$0xf]
        %v2741 = vld [vmem:[%s621 + $0x3c] sm:$0xf]
        %v2742 = vld [vmem:[%s621 + $0x40] sm:$0xf]
        %v2743 = vld [vmem:[%s621 + $0x44] sm:$0xf]
        %v2744 = vld [vmem:[%s621 + $0x48] sm:$0xf]
        %v2745 = vld [vmem:[%s621 + $0x4c] sm:$0xf]
        %v2746 = vld [vmem:[%s621 + $0x50] sm:$0xf]
        %v2747 = vld [vmem:[%s621 + $0x54] sm:$0xf]
        %v2748 = vld [vmem:[%s621 + $0x58] sm:$0xf]
        %v2749 = vld [vmem:[%s621 + $0x5c] sm:$0xf]
        %v2750 = vld [vmem:[%s621 + $0x60] sm:$0xf]
        %v2751 = vld [vmem:[%s621 + $0x64] sm:$0xf]
        %v2752 = vld [vmem:[%s621 + $0x68] sm:$0xf]
        %v2753 = vld [vmem:[%s621 + $0x6c] sm:$0xf]
        %v2754 = vld [vmem:[%s621 + $0x70] sm:$0xf]
        %v2755 = vld [vmem:[%s621 + $0x74] sm:$0xf]
        %v2756 = vld [vmem:[%s621 + $0x78] sm:$0xf]
        %v2757 = vld [vmem:[%s621 + $0x7c] sm:$0xf]
        %v2758 = vld [vmem:[%s621 + $0x80] sm:$0xf]
        %v2759 = vld [vmem:[%s621 + $0x84] sm:$0xf]
        %v2760 = vld [vmem:[%s621 + $0x88] sm:$0xf]
        %v2761 = vld [vmem:[%s621 + $0x8c] sm:$0xf]
        %v2762 = vld [vmem:[%s621 + $0x90] sm:$0xf]
        %v2763 = vld [vmem:[%s621 + $0x94] sm:$0xf]
        %v2764 = vld [vmem:[%s621 + $0x98] sm:$0xf]
        %v2765 = vld [vmem:[%s621 + $0x9c] sm:$0xf]
        %v2766 = vld [vmem:[%s621 + $0xa0] sm:$0xf]
        %v2767 = vld [vmem:[%s621 + $0xa4] sm:$0xf]
        %v2768 = vld [vmem:[%s621 + $0xa8] sm:$0xf]
        %v2769 = vld [vmem:[%s621 + $0xac] sm:$0xf]
        %v2770 = vld [vmem:[%s621 + $0xb0] sm:$0xf]
        %v2771 = vld [vmem:[%s621 + $0xb4] sm:$0xf]
        %v2772 = vld [vmem:[%s621 + $0xb8] sm:$0xf]
        %v2773 = vld [vmem:[%s621 + $0xbc] sm:$0xf]
        %v2774 = vld [vmem:[%s621 + $0xc0] sm:$0xf]
        %v2775 = vld [vmem:[%s621 + $0xc4] sm:$0xf]
        %v2776 = vld [vmem:[%s621 + $0xc8] sm:$0xf]
        %v2777 = vld [vmem:[%s621 + $0xcc] sm:$0xf]
        %v2778 = vld [vmem:[%s621 + $0xd0] sm:$0xf]
        %v2779 = vld [vmem:[%s621 + $0xd4] sm:$0xf]
        %v2780 = vld [vmem:[%s621 + $0xd8] sm:$0xf]
        %v2781 = vld [vmem:[%s621 + $0xdc] sm:$0xf]
        %v2782 = vld [vmem:[%s621 + $0xe0] sm:$0xf]
        %v2783 = vld [vmem:[%s621 + $0xe4] sm:$0xf]
        %v2784 = vld [vmem:[%s621 + $0xe8] sm:$0xf]
        %v2785 = vld [vmem:[%s621 + $0xec] sm:$0xf]
        %v2786 = vld [vmem:[%s621 + $0xf0] sm:$0xf]
        %v2787 = vld [vmem:[%s621 + $0xf4] sm:$0xf]
        %v2788 = vld [vmem:[%s621 + $0xf8] sm:$0xf]
        %v2789 = vld [vmem:[%s621 + $0xfc] sm:$0xf]
        %v2790 = vld [vmem:[%s746] sm:$0x1]
        %v2792 = vlaneseq
        %v2793 = vshrl.u32 %v2792, 7
        %v2794 = vsub.s32 0, %v2793
        %v2795 = vrot.slane %v2790, %v2794
        %v2861 = vunpack.c.l.b16 %v2726
        %v2862 = vunpack.c.l.b16 %v2727
        %v2863 = vunpack.c.l.b16 %v2728
        %v2864 = vunpack.c.l.b16 %v2729
        %v2865 = vunpack.c.l.b16 %v2730
        %v2866 = vunpack.c.l.b16 %v2731
        %v2867 = vunpack.c.l.b16 %v2732
        %v2868 = vunpack.c.l.b16 %v2733
        %v2869 = vunpack.c.l.b16 %v2734
        %v2870 = vunpack.c.l.b16 %v2735
        %v2871 = vunpack.c.l.b16 %v2736
        %v2872 = vunpack.c.l.b16 %v2737
        %v2873 = vunpack.c.l.b16 %v2738
        %v2874 = vunpack.c.l.b16 %v2739
        %v2875 = vunpack.c.l.b16 %v2740
        %v2876 = vunpack.c.l.b16 %v2741
        %v2877 = vunpack.c.l.b16 %v2742
        %v2878 = vunpack.c.l.b16 %v2743
        %v2879 = vunpack.c.l.b16 %v2744
        %v2880 = vunpack.c.l.b16 %v2745
        %v2881 = vunpack.c.l.b16 %v2746
        %v2882 = vunpack.c.l.b16 %v2747
        %v2883 = vunpack.c.l.b16 %v2748
        %v2884 = vunpack.c.l.b16 %v2749
        %v2885 = vunpack.c.l.b16 %v2750
        %v2886 = vunpack.c.l.b16 %v2751
        %v2887 = vunpack.c.l.b16 %v2752
        %v2888 = vunpack.c.l.b16 %v2753
        %v2889 = vunpack.c.l.b16 %v2754
        %v2890 = vunpack.c.l.b16 %v2755
        %v2891 = vunpack.c.l.b16 %v2756
        %v2892 = vunpack.c.l.b16 %v2757
        %v2893 = vunpack.c.l.b16 %v2758
        %v2894 = vunpack.c.l.b16 %v2759
        %v2895 = vunpack.c.l.b16 %v2760
        %v2896 = vunpack.c.l.b16 %v2761
        %v2897 = vunpack.c.l.b16 %v2762
        %v2898 = vunpack.c.l.b16 %v2763
        %v2899 = vunpack.c.l.b16 %v2764
        %v2900 = vunpack.c.l.b16 %v2765
        %v2901 = vunpack.c.l.b16 %v2766
        %v2902 = vunpack.c.l.b16 %v2767
        %v2903 = vunpack.c.l.b16 %v2768
        %v2904 = vunpack.c.l.b16 %v2769
        %v2905 = vunpack.c.l.b16 %v2770
        %v2906 = vunpack.c.l.b16 %v2771
        %v2907 = vunpack.c.l.b16 %v2772
        %v2908 = vunpack.c.l.b16 %v2773
        %v2909 = vunpack.c.l.b16 %v2774
        %v2910 = vunpack.c.l.b16 %v2775
        %v2911 = vunpack.c.l.b16 %v2776
        %v2912 = vunpack.c.l.b16 %v2777
        %v2913 = vunpack.c.l.b16 %v2778
        %v2914 = vunpack.c.l.b16 %v2779
        %v2915 = vunpack.c.l.b16 %v2780
        %v2916 = vunpack.c.l.b16 %v2781
        %v2917 = vunpack.c.l.b16 %v2782
        %v2918 = vunpack.c.l.b16 %v2783
        %v2919 = vunpack.c.l.b16 %v2784
        %v2920 = vunpack.c.l.b16 %v2785
        %v2921 = vunpack.c.l.b16 %v2786
        %v2922 = vunpack.c.l.b16 %v2787
        %v2923 = vunpack.c.l.b16 %v2788
        %v2924 = vunpack.c.l.b16 %v2789
        %v2925 = vpack.c.b16 %v2862, %v2861
        %v2926 = vpack.c.b16 %v2864, %v2863
        %v2927 = vpack.c.b16 %v2866, %v2865
        %v2928 = vpack.c.b16 %v2868, %v2867
        %v2929 = vpack.c.b16 %v2870, %v2869
        %v2930 = vpack.c.b16 %v2872, %v2871
        %v2931 = vpack.c.b16 %v2874, %v2873
        %v2932 = vpack.c.b16 %v2876, %v2875
        %v2933 = vpack.c.b16 %v2878, %v2877
        %v2934 = vpack.c.b16 %v2880, %v2879
        %v2935 = vpack.c.b16 %v2882, %v2881
        %v2936 = vpack.c.b16 %v2884, %v2883
        %v2937 = vpack.c.b16 %v2886, %v2885
        %v2938 = vpack.c.b16 %v2888, %v2887
        %v2939 = vpack.c.b16 %v2890, %v2889
        %v2940 = vpack.c.b16 %v2892, %v2891
        %v2941 = vpack.c.b16 %v2894, %v2893
        %v2942 = vpack.c.b16 %v2896, %v2895
        %v2943 = vpack.c.b16 %v2898, %v2897
        %v2944 = vpack.c.b16 %v2900, %v2899
        %v2945 = vpack.c.b16 %v2902, %v2901
        %v2946 = vpack.c.b16 %v2904, %v2903
        %v2947 = vpack.c.b16 %v2906, %v2905
        %v2948 = vpack.c.b16 %v2908, %v2907
        %v2949 = vpack.c.b16 %v2910, %v2909
        %v2950 = vpack.c.b16 %v2912, %v2911
        %v2951 = vpack.c.b16 %v2914, %v2913
        %v2952 = vpack.c.b16 %v2916, %v2915
        %v2953 = vpack.c.b16 %v2918, %v2917
        %v2954 = vpack.c.b16 %v2920, %v2919
        %v2955 = vpack.c.b16 %v2922, %v2921
        %v2956 = vpack.c.b16 %v2924, %v2923
        %2989 = vmatprep.subr.bf16.mxu0 0
        %2990 = vmatpush1.bf16.msra.mxu0 %v2932
        %2991 = vmatprep.subr.bf16.mxu0 0
        %2992 = vmatpush1.bf16.msra.mxu0 %v2931
        %2993 = vmatprep.subr.bf16.mxu0 0
        %2994 = vmatpush1.bf16.msra.mxu0 %v2930
        %2995 = vmatprep.subr.bf16.mxu0 0
        %2996 = vmatpush1.bf16.msra.mxu0 %v2929
        %2997 = vmatprep.subr.bf16.mxu0 0
        %2998 = vmatpush1.bf16.msra.mxu0 %v2928
        %2999 = vmatprep.subr.bf16.mxu0 0
        %3000 = vmatpush1.bf16.msra.mxu0 %v2927
        %3001 = vmatprep.subr.bf16.mxu0 0
        %3002 = vmatpush1.bf16.msra.mxu0 %v2926
        %3003 = vmatprep.subr.bf16.mxu0 0
        %3004 = vmatpush1.bf16.msra.mxu0 %v2925
        %3005 = vmatprep.subr.bf16.mxu0 0
        %3006 = vmatpush2.bf16.msra.mxu0 %v2940
        %3007 = vmatprep.subr.bf16.mxu0 0
        %3008 = vmatpush2.bf16.msra.mxu0 %v2939
        %3009 = vmatprep.subr.bf16.mxu0 0
        %3010 = vmatpush2.bf16.msra.mxu0 %v2938
        %3011 = vmatprep.subr.bf16.mxu0 0
        %3012 = vmatpush2.bf16.msra.mxu0 %v2937
        %3013 = vmatprep.subr.bf16.mxu0 0
        %3014 = vmatpush2.bf16.msra.mxu0 %v2936
        %3015 = vmatprep.subr.bf16.mxu0 0
        %3016 = vmatpush2.bf16.msra.mxu0 %v2935
        %3017 = vmatprep.subr.bf16.mxu0 0
        %3018 = vmatpush2.bf16.msra.mxu0 %v2934
        %3019 = vmatprep.subr.bf16.mxu0 0
        %3020 = vmatpush2.bf16.msra.mxu0 %v2933
        %3021 = vmatprep.mubr.bf16.mxu0 %v2719
        %3022 = vmatmul.mubr.bf16.gmra.mxu0 %v2718
        %v3023 = vpop.f32.mrf.mxu0
        %v3024 = vadd.f32 %v2795, %v3023
        %v3025 = vpop.f32.mrf.mxu0
        %v3026 = vpop.f32.mrf.mxu0
        %v3027 = vadd.f32 %v2795, %v3026
        %v3028 = vpop.f32.mrf.mxu0
        %3029 = vmatprep.mubr.bf16.mxu0 %v2723
        %3030 = vmatmul.mubr.bf16.gmra.mxu0 %v2722
        %v3031 = vpop.f32.mrf.mxu0
        %v3032 = vadd.f32 %v2795, %v3031
        %v3033 = vpop.f32.mrf.mxu0
        %v3034 = vpop.f32.mrf.mxu0
        %v3035 = vadd.f32 %v2795, %v3034
        %v3036 = vpop.f32.mrf.mxu0
        %3037 = vdwg.mxu0
        %3038 = vmatprep.subr.bf16.mxu0 0
        %3039 = vmatpush1.bf16.msra.mxu0 %v2948
        %3040 = vmatprep.subr.bf16.mxu0 0
        %3041 = vmatpush1.bf16.msra.mxu0 %v2947
        %3042 = vmatprep.subr.bf16.mxu0 0
        %3043 = vmatpush1.bf16.msra.mxu0 %v2946
        %3044 = vmatprep.subr.bf16.mxu0 0
        %3045 = vmatpush1.bf16.msra.mxu0 %v2945
        %3046 = vmatprep.subr.bf16.mxu0 0
        %3047 = vmatpush1.bf16.msra.mxu0 %v2944
        %3048 = vmatprep.subr.bf16.mxu0 0
        %3049 = vmatpush1.bf16.msra.mxu0 %v2943
        %3050 = vmatprep.subr.bf16.mxu0 0
        %3051 = vmatpush1.bf16.msra.mxu0 %v2942
        %3052 = vmatprep.subr.bf16.mxu0 0
        %3053 = vmatpush1.bf16.msra.mxu0 %v2941
        %3054 = vmatprep.subr.bf16.mxu0 0
        %3055 = vmatpush2.bf16.msra.mxu0 %v2956
        %3056 = vmatprep.subr.bf16.mxu0 0
        %3057 = vmatpush2.bf16.msra.mxu0 %v2955
        %3058 = vmatprep.subr.bf16.mxu0 0
        %3059 = vmatpush2.bf16.msra.mxu0 %v2954
        %3060 = vmatprep.subr.bf16.mxu0 0
        %3061 = vmatpush2.bf16.msra.mxu0 %v2953
        %3062 = vmatprep.subr.bf16.mxu0 0
        %3063 = vmatpush2.bf16.msra.mxu0 %v2952
        %3064 = vmatprep.subr.bf16.mxu0 0
        %3065 = vmatpush2.bf16.msra.mxu0 %v2951
        %3066 = vmatprep.subr.bf16.mxu0 0
        %3067 = vmatpush2.bf16.msra.mxu0 %v2950
        %3068 = vmatprep.subr.bf16.mxu0 0
        %3069 = vmatpush2.bf16.msra.mxu0 %v2949
        %3070 = vmatprep.mubr.bf16.mxu0 %v2721
        %3071 = vmatmul.mubr.bf16.gmra.mxu0 %v2720
        %v3072 = vpop.f32.mrf.mxu0
        %v3073 = vadd.f32 %v3024, %v3072
        %v3074 = vpop.f32.mrf.mxu0
        %v3075 = vpop.f32.mrf.mxu0
        %v3076 = vadd.f32 %v3027, %v3075
        %v3077 = vpop.f32.mrf.mxu0
        %3078 = vmatprep.mubr.bf16.mxu0 %v2725
        %3079 = vmatmul.mubr.bf16.gmra.mxu0 %v2724
        %v3080 = vpop.f32.mrf.mxu0
        %v3081 = vadd.f32 %v3032, %v3080
        %v3082 = vpop.f32.mrf.mxu0
        %v3083 = vpop.f32.mrf.mxu0
        %v3084 = vadd.f32 %v3035, %v3083
        %v3085 = vpop.f32.mrf.mxu0
        %3086 = vdwg.mxu0
        %v3087 = vld [vmem:[%s749] sm:$0x1]
        %v3088 = vld [vmem:[%s752] sm:$0x1]
        %3089 = vadd.xlane.f32.xlu0 %v3073
        %v3090 = vpop.xlane.xlu0 %3089
        %3091 = vadd.xlane.f32.xlu0 %v3076
        %v3092 = vpop.xlane.xlu0 %3091
        %3093 = vadd.xlane.f32.xlu0 %v3081
        %v3094 = vpop.xlane.xlu0 %3093
        %3095 = vadd.xlane.f32.xlu0 %v3084
        %v3096 = vpop.xlane.xlu0 %3095
        %v3097 = vmul.f32 %v3090, %v780
        %v3098 = vmul.f32 %v3092, %v780
        %v3099 = vmul.f32 %v3094, %v780
        %v3100 = vmul.f32 %v3096, %v780
        %v3101 = vsub.f32 %v3073, %v3097
        %v3102 = vsub.f32 %v3076, %v3098
        %v3103 = vsub.f32 %v3081, %v3099
        %v3104 = vsub.f32 %v3084, %v3100
        %v3105 = vmul.f32 %v3101, %v3101
        %v3106 = vmul.f32 %v3102, %v3102
        %v3107 = vmul.f32 %v3103, %v3103
        %v3108 = vmul.f32 %v3104, %v3104
        %3109 = vadd.xlane.f32.xlu0 %v3105
        %v3110 = vpop.xlane.xlu0 %3109
        %3111 = vadd.xlane.f32.xlu0 %v3106
        %v3112 = vpop.xlane.xlu0 %3111
        %3113 = vadd.xlane.f32.xlu0 %v3107
        %v3114 = vpop.xlane.xlu0 %3113
        %3115 = vadd.xlane.f32.xlu0 %v3108
        %v3116 = vpop.xlane.xlu0 %3115
        %v3117 = vmul.f32 %v3110, %v780
        %v3118 = vmul.f32 %v3112, %v780
        %v3119 = vmul.f32 %v3114, %v780
        %v3120 = vmul.f32 %v3116, %v780
        %v3121 = vadd.f32 %v3117, 1e-05
        %v3122 = vadd.f32 %v3118, 1e-05
        %v3123 = vadd.f32 %v3119, 1e-05
        %v3124 = vadd.f32 %v3120, 1e-05
        %v3125 = vrsqrt.pop %v3121
        %v3126 = vrsqrt.pop %v3122
        %v3127 = vrsqrt.pop %v3123
        %v3128 = vrsqrt.pop %v3124
        %v3129 = vmul.f32 %v3101, %v3125
        %v3130 = vmul.f32 %v3102, %v3126
        %v3131 = vmul.f32 %v3103, %v3127
        %v3132 = vmul.f32 %v3104, %v3128
        %v3134 = vlaneseq
        %v3135 = vshrl.u32 %v3134, 7
        %v3136 = vsub.s32 0, %v3135
        %v3137 = vrot.slane %v3087, %v3136
        %v3139 = vmul.f32 %v3129, %v3137
        %v3140 = vmul.f32 %v3130, %v3137
        %v3141 = vmul.f32 %v3131, %v3137
        %v3142 = vmul.f32 %v3132, %v3137
        %v3144 = vlaneseq
        %v3145 = vshrl.u32 %v3144, 7
        %v3146 = vsub.s32 0, %v3145
        %v3147 = vrot.slane %v3088, %v3146
        %v3149 = vadd.f32 %v3139, %v3147
        %v3150 = vadd.f32 %v3140, %v3147
        %v3151 = vadd.f32 %v3141, %v3147
        %v3152 = vadd.f32 %v3142, %v3147
        %v3153 = vpack.c.bf16 %v3150, %v3149
        %v3154 = vpack.c.bf16 %v3152, %v3151
        %v3155 = vld [vmem:[%s630] sm:$0xff]
        %v3156 = vld [vmem:[%s630 + $0x8] sm:$0xff]
        %v3157 = vld [vmem:[%s630 + $0x10] sm:$0xff]
        %v3158 = vld [vmem:[%s630 + $0x18] sm:$0xff]
        %v3159 = vld [vmem:[%s630 + $0x20] sm:$0xff]
        %v3160 = vld [vmem:[%s630 + $0x28] sm:$0xff]
        %v3161 = vld [vmem:[%s630 + $0x30] sm:$0xff]
        %v3162 = vld [vmem:[%s630 + $0x38] sm:$0xff]
        %v3163 = vld [vmem:[%s630 + $0x40] sm:$0xff]
        %v3164 = vld [vmem:[%s630 + $0x48] sm:$0xff]
        %v3165 = vld [vmem:[%s630 + $0x50] sm:$0xff]
        %v3166 = vld [vmem:[%s630 + $0x58] sm:$0xff]
        %v3167 = vld [vmem:[%s630 + $0x60] sm:$0xff]
        %v3168 = vld [vmem:[%s630 + $0x68] sm:$0xff]
        %v3169 = vld [vmem:[%s630 + $0x70] sm:$0xff]
        %v3170 = vld [vmem:[%s630 + $0x78] sm:$0xff]
        %v3171 = vld [vmem:[%s639] sm:$0x3]
        %v3173 = vlaneseq
        %v3174 = vshrl.u32 %v3173, 7
        %v3175 = vsub.s32 0, %v3174
        %v3176 = vrot.slane %v3171, %v3175
        %v3177 = vlaneseq
        %v3178 = vshrl.u32 %v3177, 7
        %v3179 = vsub.s32 1, %v3178
        %v3180 = vrot.slane %v3171, %v3179
        %v3199 = vunpack.c.l.b16 %v3155
        %v3200 = vunpack.c.h.b16 %v3155
        %v3201 = vunpack.c.l.b16 %v3156
        %v3202 = vunpack.c.h.b16 %v3156
        %v3203 = vunpack.c.l.b16 %v3157
        %v3204 = vunpack.c.h.b16 %v3157
        %v3205 = vunpack.c.l.b16 %v3158
        %v3206 = vunpack.c.h.b16 %v3158
        %v3207 = vunpack.c.l.b16 %v3159
        %v3208 = vunpack.c.h.b16 %v3159
        %v3209 = vunpack.c.l.b16 %v3160
        %v3210 = vunpack.c.h.b16 %v3160
        %v3211 = vunpack.c.l.b16 %v3161
        %v3212 = vunpack.c.h.b16 %v3161
        %v3213 = vunpack.c.l.b16 %v3162
        %v3214 = vunpack.c.h.b16 %v3162
        %v3215 = vunpack.c.l.b16 %v3163
        %v3216 = vunpack.c.h.b16 %v3163
        %v3217 = vunpack.c.l.b16 %v3164
        %v3218 = vunpack.c.h.b16 %v3164
        %v3219 = vunpack.c.l.b16 %v3165
        %v3220 = vunpack.c.h.b16 %v3165
        %v3221 = vunpack.c.l.b16 %v3166
        %v3222 = vunpack.c.h.b16 %v3166
        %v3223 = vunpack.c.l.b16 %v3167
        %v3224 = vunpack.c.h.b16 %v3167
        %v3225 = vunpack.c.l.b16 %v3168
        %v3226 = vunpack.c.h.b16 %v3168
        %v3227 = vunpack.c.l.b16 %v3169
        %v3228 = vunpack.c.h.b16 %v3169
        %v3229 = vunpack.c.l.b16 %v3170
        %v3230 = vunpack.c.h.b16 %v3170
        %v3231 = vpack.c.b16 %v3201, %v3199
        %v3232 = vpack.c.b16 %v3202, %v3200
        %v3233 = vpack.c.b16 %v3205, %v3203
        %v3234 = vpack.c.b16 %v3206, %v3204
        %v3235 = vpack.c.b16 %v3209, %v3207
        %v3236 = vpack.c.b16 %v3210, %v3208
        %v3237 = vpack.c.b16 %v3213, %v3211
        %v3238 = vpack.c.b16 %v3214, %v3212
        %v3239 = vpack.c.b16 %v3217, %v3215
        %v3240 = vpack.c.b16 %v3218, %v3216
        %v3241 = vpack.c.b16 %v3221, %v3219
        %v3242 = vpack.c.b16 %v3222, %v3220
        %v3243 = vpack.c.b16 %v3225, %v3223
        %v3244 = vpack.c.b16 %v3226, %v3224
        %v3245 = vpack.c.b16 %v3229, %v3227
        %v3246 = vpack.c.b16 %v3230, %v3228
        %3263 = vmatprep.subr.bf16.mxu0 %v3246
        %3264 = vmatpush1.bf16.msra.mxu0 %v3245
        %3265 = vmatprep.subr.bf16.mxu0 %v3244
        %3266 = vmatpush1.bf16.msra.mxu0 %v3243
        %3267 = vmatprep.subr.bf16.mxu0 %v3242
        %3268 = vmatpush1.bf16.msra.mxu0 %v3241
        %3269 = vmatprep.subr.bf16.mxu0 %v3240
        %3270 = vmatpush1.bf16.msra.mxu0 %v3239
        %3271 = vmatprep.subr.bf16.mxu0 %v3238
        %3272 = vmatpush1.bf16.msra.mxu0 %v3237
        %3273 = vmatprep.subr.bf16.mxu0 %v3236
        %3274 = vmatpush1.bf16.msra.mxu0 %v3235
        %3275 = vmatprep.subr.bf16.mxu0 %v3234
        %3276 = vmatpush1.bf16.msra.mxu0 %v3233
        %3277 = vmatprep.subr.bf16.mxu0 %v3232
        %3278 = vmatpush1.bf16.msra.mxu0 %v3231
        %3279 = vmatprep.subr.bf16.mxu0 0
        %3280 = vmatpush2.bf16.msra.mxu0 0
        %3281 = vmatprep.subr.bf16.mxu0 0
        %3282 = vmatpush2.bf16.msra.mxu0 0
        %3283 = vmatprep.subr.bf16.mxu0 0
        %3284 = vmatpush2.bf16.msra.mxu0 0
        %3285 = vmatprep.subr.bf16.mxu0 0
        %3286 = vmatpush2.bf16.msra.mxu0 0
        %3287 = vmatprep.subr.bf16.mxu0 0
        %3288 = vmatpush2.bf16.msra.mxu0 0
        %3289 = vmatprep.subr.bf16.mxu0 0
        %3290 = vmatpush2.bf16.msra.mxu0 0
        %3291 = vmatprep.subr.bf16.mxu0 0
        %3292 = vmatpush2.bf16.msra.mxu0 0
        %3293 = vmatprep.subr.bf16.mxu0 0
        %3294 = vmatpush2.bf16.msra.mxu0 0
        %3295 = vmatprep.mubr.bf16.mxu0 0
        %3296 = vmatmul.mubr.bf16.gmra.mxu0 %v3153
        %v3297 = vpop.f32.mrf.mxu0
        %v3298 = vadd.f32 %v3176, %v3297
        %v3299 = vpop.f32.mrf.mxu0
        %v3300 = vadd.f32 %v3180, %v3299
        %v3301 = vpop.f32.mrf.mxu0
        %v3302 = vadd.f32 %v3176, %v3301
        %v3303 = vpop.f32.mrf.mxu0
        %v3304 = vadd.f32 %v3180, %v3303
        %3305 = vmatprep.mubr.bf16.mxu0 0
        %3306 = vmatmul.mubr.bf16.gmra.mxu0 %v3154
        %v3307 = vpop.f32.mrf.mxu0
        %v3308 = vadd.f32 %v3176, %v3307
        %v3309 = vpop.f32.mrf.mxu0
        %v3310 = vadd.f32 %v3180, %v3309
        %v3311 = vpop.f32.mrf.mxu0
        %v3312 = vadd.f32 %v3176, %v3311
        %v3313 = vpop.f32.mrf.mxu0
        %v3314 = vadd.f32 %v3180, %v3313
        %3315 = vdwg.mxu0
        %v3316 = vmul.f32 %v3298, 0.5
        %v3317 = vmul.f32 %v3300, 0.5
        %v3318 = vmul.f32 %v3302, 0.5
        %v3319 = vmul.f32 %v3304, 0.5
        %v3320 = vmul.f32 %v3308, 0.5
        %v3321 = vmul.f32 %v3310, 0.5
        %v3322 = vmul.f32 %v3312, 0.5
        %v3323 = vmul.f32 %v3314, 0.5
        %v3324 = vmul.f32 %v3298, 0.70710677
        %v3325 = vmul.f32 %v3300, 0.70710677
        %v3326 = vmul.f32 %v3302, 0.70710677
        %v3327 = vmul.f32 %v3304, 0.70710677
        %v3328 = vmul.f32 %v3308, 0.70710677
        %v3329 = vmul.f32 %v3310, 0.70710677
        %v3330 = vmul.f32 %v3312, 0.70710677
        %v3331 = vmul.f32 %v3314, 0.70710677
        %v3332 = verf.f32.pop %v3324
        %v3333 = verf.f32.pop %v3325
        %v3334 = verf.f32.pop %v3326
        %v3335 = verf.f32.pop %v3327
        %v3336 = verf.f32.pop %v3328
        %v3337 = verf.f32.pop %v3329
        %v3338 = verf.f32.pop %v3330
        %v3339 = verf.f32.pop %v3331
        %v3340 = vadd.f32 %v3332, 1.0
        %v3341 = vadd.f32 %v3333, 1.0
        %v3342 = vadd.f32 %v3334, 1.0
        %v3343 = vadd.f32 %v3335, 1.0
        %v3344 = vadd.f32 %v3336, 1.0
        %v3345 = vadd.f32 %v3337, 1.0
        %v3346 = vadd.f32 %v3338, 1.0
        %v3347 = vadd.f32 %v3339, 1.0
        %v3348 = vmul.f32 %v3316, %v3340
        %v3349 = vmul.f32 %v3317, %v3341
        %v3350 = vmul.f32 %v3318, %v3342
        %v3351 = vmul.f32 %v3319, %v3343
        %v3352 = vmul.f32 %v3320, %v3344
        %v3353 = vmul.f32 %v3321, %v3345
        %v3354 = vmul.f32 %v3322, %v3346
        %v3355 = vmul.f32 %v3323, %v3347
        %v3356 = vpack.c.bf16 %v3350, %v3348
        %v3357 = vpack.c.bf16 %v3351, %v3349
        %v3358 = vpack.c.bf16 %v3354, %v3352
        %v3359 = vpack.c.bf16 %v3355, %v3353
        %v3360 = vld [vmem:[%s648] sm:$0xf]
        %v3361 = vld [vmem:[%s648 + $0x4] sm:$0xf]
        %v3362 = vld [vmem:[%s648 + $0x8] sm:$0xf]
        %v3363 = vld [vmem:[%s648 + $0xc] sm:$0xf]
        %v3364 = vld [vmem:[%s648 + $0x10] sm:$0xf]
        %v3365 = vld [vmem:[%s648 + $0x14] sm:$0xf]
        %v3366 = vld [vmem:[%s648 + $0x18] sm:$0xf]
        %v3367 = vld [vmem:[%s648 + $0x1c] sm:$0xf]
        %v3368 = vld [vmem:[%s648 + $0x20] sm:$0xf]
        %v3369 = vld [vmem:[%s648 + $0x24] sm:$0xf]
        %v3370 = vld [vmem:[%s648 + $0x28] sm:$0xf]
        %v3371 = vld [vmem:[%s648 + $0x2c] sm:$0xf]
        %v3372 = vld [vmem:[%s648 + $0x30] sm:$0xf]
        %v3373 = vld [vmem:[%s648 + $0x34] sm:$0xf]
        %v3374 = vld [vmem:[%s648 + $0x38] sm:$0xf]
        %v3375 = vld [vmem:[%s648 + $0x3c] sm:$0xf]
        %v3376 = vld [vmem:[%s648 + $0x40] sm:$0xf]
        %v3377 = vld [vmem:[%s648 + $0x44] sm:$0xf]
        %v3378 = vld [vmem:[%s648 + $0x48] sm:$0xf]
        %v3379 = vld [vmem:[%s648 + $0x4c] sm:$0xf]
        %v3380 = vld [vmem:[%s648 + $0x50] sm:$0xf]
        %v3381 = vld [vmem:[%s648 + $0x54] sm:$0xf]
        %v3382 = vld [vmem:[%s648 + $0x58] sm:$0xf]
        %v3383 = vld [vmem:[%s648 + $0x5c] sm:$0xf]
        %v3384 = vld [vmem:[%s648 + $0x60] sm:$0xf]
        %v3385 = vld [vmem:[%s648 + $0x64] sm:$0xf]
        %v3386 = vld [vmem:[%s648 + $0x68] sm:$0xf]
        %v3387 = vld [vmem:[%s648 + $0x6c] sm:$0xf]
        %v3388 = vld [vmem:[%s648 + $0x70] sm:$0xf]
        %v3389 = vld [vmem:[%s648 + $0x74] sm:$0xf]
        %v3390 = vld [vmem:[%s648 + $0x78] sm:$0xf]
        %v3391 = vld [vmem:[%s648 + $0x7c] sm:$0xf]
        %v3392 = vld [vmem:[%s656] sm:$0x1]
        %v3394 = vlaneseq
        %v3395 = vshrl.u32 %v3394, 7
        %v3396 = vsub.s32 0, %v3395
        %v3397 = vrot.slane %v3392, %v3396
        %v3431 = vunpack.c.l.b16 %v3360
        %v3432 = vunpack.c.l.b16 %v3361
        %v3433 = vunpack.c.l.b16 %v3362
        %v3434 = vunpack.c.l.b16 %v3363
        %v3435 = vunpack.c.l.b16 %v3364
        %v3436 = vunpack.c.l.b16 %v3365
        %v3437 = vunpack.c.l.b16 %v3366
        %v3438 = vunpack.c.l.b16 %v3367
        %v3439 = vunpack.c.l.b16 %v3368
        %v3440 = vunpack.c.l.b16 %v3369
        %v3441 = vunpack.c.l.b16 %v3370
        %v3442 = vunpack.c.l.b16 %v3371
        %v3443 = vunpack.c.l.b16 %v3372
        %v3444 = vunpack.c.l.b16 %v3373
        %v3445 = vunpack.c.l.b16 %v3374
        %v3446 = vunpack.c.l.b16 %v3375
        %v3447 = vunpack.c.l.b16 %v3376
        %v3448 = vunpack.c.l.b16 %v3377
        %v3449 = vunpack.c.l.b16 %v3378
        %v3450 = vunpack.c.l.b16 %v3379
        %v3451 = vunpack.c.l.b16 %v3380
        %v3452 = vunpack.c.l.b16 %v3381
        %v3453 = vunpack.c.l.b16 %v3382
        %v3454 = vunpack.c.l.b16 %v3383
        %v3455 = vunpack.c.l.b16 %v3384
        %v3456 = vunpack.c.l.b16 %v3385
        %v3457 = vunpack.c.l.b16 %v3386
        %v3458 = vunpack.c.l.b16 %v3387
        %v3459 = vunpack.c.l.b16 %v3388
        %v3460 = vunpack.c.l.b16 %v3389
        %v3461 = vunpack.c.l.b16 %v3390
        %v3462 = vunpack.c.l.b16 %v3391
        %v3463 = vpack.c.b16 %v3432, %v3431
        %v3464 = vpack.c.b16 %v3434, %v3433
        %v3465 = vpack.c.b16 %v3436, %v3435
        %v3466 = vpack.c.b16 %v3438, %v3437
        %v3467 = vpack.c.b16 %v3440, %v3439
        %v3468 = vpack.c.b16 %v3442, %v3441
        %v3469 = vpack.c.b16 %v3444, %v3443
        %v3470 = vpack.c.b16 %v3446, %v3445
        %v3471 = vpack.c.b16 %v3448, %v3447
        %v3472 = vpack.c.b16 %v3450, %v3449
        %v3473 = vpack.c.b16 %v3452, %v3451
        %v3474 = vpack.c.b16 %v3454, %v3453
        %v3475 = vpack.c.b16 %v3456, %v3455
        %v3476 = vpack.c.b16 %v3458, %v3457
        %v3477 = vpack.c.b16 %v3460, %v3459
        %v3478 = vpack.c.b16 %v3462, %v3461
        %3495 = vmatprep.subr.bf16.mxu0 0
        %3496 = vmatpush1.bf16.msra.mxu0 %v3470
        %3497 = vmatprep.subr.bf16.mxu0 0
        %3498 = vmatpush1.bf16.msra.mxu0 %v3469
        %3499 = vmatprep.subr.bf16.mxu0 0
        %3500 = vmatpush1.bf16.msra.mxu0 %v3468
        %3501 = vmatprep.subr.bf16.mxu0 0
        %3502 = vmatpush1.bf16.msra.mxu0 %v3467
        %3503 = vmatprep.subr.bf16.mxu0 0
        %3504 = vmatpush1.bf16.msra.mxu0 %v3466
        %3505 = vmatprep.subr.bf16.mxu0 0
        %3506 = vmatpush1.bf16.msra.mxu0 %v3465
        %3507 = vmatprep.subr.bf16.mxu0 0
        %3508 = vmatpush1.bf16.msra.mxu0 %v3464
        %3509 = vmatprep.subr.bf16.mxu0 0
        %3510 = vmatpush1.bf16.msra.mxu0 %v3463
        %3511 = vmatprep.subr.bf16.mxu0 0
        %3512 = vmatpush2.bf16.msra.mxu0 %v3478
        %3513 = vmatprep.subr.bf16.mxu0 0
        %3514 = vmatpush2.bf16.msra.mxu0 %v3477
        %3515 = vmatprep.subr.bf16.mxu0 0
        %3516 = vmatpush2.bf16.msra.mxu0 %v3476
        %3517 = vmatprep.subr.bf16.mxu0 0
        %3518 = vmatpush2.bf16.msra.mxu0 %v3475
        %3519 = vmatprep.subr.bf16.mxu0 0
        %3520 = vmatpush2.bf16.msra.mxu0 %v3474
        %3521 = vmatprep.subr.bf16.mxu0 0
        %3522 = vmatpush2.bf16.msra.mxu0 %v3473
        %3523 = vmatprep.subr.bf16.mxu0 0
        %3524 = vmatpush2.bf16.msra.mxu0 %v3472
        %3525 = vmatprep.subr.bf16.mxu0 0
        %3526 = vmatpush2.bf16.msra.mxu0 %v3471
        %3527 = vmatprep.mubr.bf16.mxu0 %v3357
        %3528 = vmatmul.mubr.bf16.gmra.mxu0 %v3356
        %v3529 = vpop.f32.mrf.mxu0
        %v3530 = vadd.f32 %v3397, %v3529
        %v3531 = vpop.f32.mrf.mxu0
        %v3532 = vpop.f32.mrf.mxu0
        %v3533 = vadd.f32 %v3397, %v3532
        %v3534 = vpop.f32.mrf.mxu0
        %3535 = vmatprep.mubr.bf16.mxu0 %v3359
        %3536 = vmatmul.mubr.bf16.gmra.mxu0 %v3358
        %v3537 = vpop.f32.mrf.mxu0
        %v3538 = vadd.f32 %v3397, %v3537
        %v3539 = vpop.f32.mrf.mxu0
        %v3540 = vpop.f32.mrf.mxu0
        %v3541 = vadd.f32 %v3397, %v3540
        %v3542 = vpop.f32.mrf.mxu0
        %3543 = vdwg.mxu0
        %3544 = vst [vmem:[#allocation2] sm:$0xff] %v3530
        %3545 = vst [vmem:[#allocation2 + $0x8] sm:$0xff] %v3533
        %3546 = vst [vmem:[#allocation2 + $0x10] sm:$0xff] %v3538
        %3547 = vst [vmem:[#allocation2 + $0x18] sm:$0xff] %v3541
        %p3548 = scmp.eq.s32.totalorder %s38, 1
        // Predicated region
        $region109: #{transformer_forward.1} parent=71 // pred_check
          %p3549 = pneg %p3548
        $region110: #{transformer_forward.1} parent=71 // pred_check_branch
          %3551 = sbr.rel (%p3549) target = $region112
        $region111: #{transformer_forward.1} parent=71 // pred_region
          %3552 = vst [vmem:[#allocation18] sm:$0xff] %v3530
          %3553 = vst [vmem:[#allocation18 + $0x8] sm:$0xff] %v3533
          %3554 = vst [vmem:[#allocation18 + $0x10] sm:$0xff] %v3538
          %3555 = vst [vmem:[#allocation18 + $0x18] sm:$0xff] %v3541
        $region112: #{transformer_forward.1} parent=71 // pred_fallthru
          _
        // Predicated region
        $region113: #{transformer_forward.1} parent=71 // pred_check
          %p3556 = pneg %p384
        $region114: #{transformer_forward.1} parent=71 // pred_check_branch
          %3558 = sbr.rel (%p3556) target = $region116
        $region115: #{transformer_forward.1} parent=71 // pred_region
          %s3560 = ssub.s32 512, 512
          %3561 = vsyncadd [#allocation6], %s3560
          %s3562 = sshll.u32 [#allocation18], 4
          %s3563 = int_to_ptr.vmem [resolvable:$true] %s3562
          %3568 = dma.vmem_to_hbm [thread:$0]  %s3563, 512, %s13, [#allocation6], 128, 128, 8
        $region116: #{transformer_forward.1} parent=71 // pred_fallthru
          _
        // Predicated region
        $region117: #{transformer_forward.1} parent=71 // pred_check
          %p3569 = pneg %p384
        $region118: #{transformer_forward.1} parent=71 // pred_check_branch
          %3571 = sbr.rel (%p3569) target = $region120
        $region119: #{transformer_forward.1} parent=71 // pred_region
          %3572 = dma.done [#allocation6], 512
        $region120: #{transformer_forward.1} parent=71 // pred_fallthru
          _
      $region72: #{transformer_forward.1} parent=5 // pred_fallthru
        _
      %p3573 = scmp.le.s32.totalorder 2, %s33
      // Predicated region
      $region121: #{transformer_forward.1} parent=5 // pred_check
        %p3574 = pneg %p3573
      $region122: #{transformer_forward.1} parent=5 // pred_check_branch
        %3576 = sbr.rel (%p3574) target = $region124
      $region123: #{transformer_forward.1} parent=5 // pred_region
        %s3577 = ssub.s32 %s33, 2
      $region124: #{transformer_forward.1} parent=5 // pred_fallthru
        _
    $region6: #{transformer_forward.1} parent=1 // loop_footer
      %s37 = sadd.s32 1, %s33
    $region7: #{transformer_forward.1} parent=1 // loop_footer_branch
      %32 = sbr.rel target = $region3
    $region8: #{transformer_forward.1} parent=1 // loop_exit
      _
    %3578 = vsyncpa [#allocation5], 1
    %s3579 = scalar_lea.sflag [#allocation5], 1
    %3580 = vsyncpa %s3579, 1
    %3581 = vsyncpa [#allocation8], 1
    %s3582 = scalar_lea.sflag [#allocation8], 1
    %3583 = vsyncpa %s3582, 1
    %3584 = vsyncpa [#allocation11], 1
    %s3585 = scalar_lea.sflag [#allocation11], 1
    %3586 = vsyncpa %s3585, 1
    %3587 = vsyncpa [#allocation14], 1
    %s3588 = scalar_lea.sflag [#allocation14], 1
    %3589 = vsyncpa %s3588, 1
    %3590 = vsyncpa [#allocation17], 1
    %s3591 = scalar_lea.sflag [#allocation17], 1
    %3592 = vsyncpa %s3591, 1
    %3593 = vsyncpa [#allocation6], 1
    %s3594 = scalar_lea.sflag [#allocation6], 1
    %3595 = vsyncpa %s3594, 1

</llo_original>
